<compile_context>
chip_gen: v6e
topology: v6e:2x2x1
jax: 0.10.0
libtpu: 0.0.40
codegen_flags: <defaults>
</compile_context>

<pallas_src>
import jax
import jax.numpy as jnp
from jax.experimental import pallas as pl
from jax.experimental.pallas import tpu as pltpu  # noqa: F401  (kept for TPU-specific tuning hooks)


# ----------------------------------------------------------------------------
# Fused kernel: 3 LSTM layers + Linear head, no grid, everything in VMEM.
# ----------------------------------------------------------------------------
def _fused_param_lstm_kernel(
        x_ref,
        wih1_ref, whh1_ref, b1_ref,
        wih2_ref, whh2_ref, b2_ref,
        wih3_ref, whh3_ref, b3_ref,
        lw_ref, lb_ref,
        out_ref):
    B, T, D = x_ref.shape

    # ---- batch_first (B,T,D) -> time-major rows (T*B, Din), done once in-kernel ----
    x = x_ref[...]
    seq = jnp.concatenate([x[:, t, :] for t in range(T)], axis=0)      # row = t*B + b

    layer_refs = ((wih1_ref, whh1_ref, b1_ref),
                  (wih2_ref, whh2_ref, b2_ref),
                  (wih3_ref, whh3_ref, b3_ref))

    for wih_ref, whh_ref, b_ref in layer_refs:
        H = whh_ref.shape[0]

        # Hoisted input projection + bias: one (T*B,Din)@(Din,4H) MXU matmul for the
        # whole sequence, off the serial recurrence path (raises MXU row utilization
        # from B=2 to T*B=16 rows per push).
        x_proj = (jnp.dot(seq, wih_ref[...], preferred_element_type=jnp.float32)
                  + b_ref[...])                                        # (T*B, 4H)

        whh = whh_ref[...]                                             # (H, 4H), loop-invariant
        h = jnp.zeros((B, H), jnp.float32)
        c = jnp.zeros((B, H), jnp.float32)
        hs = []
        for t in range(T):                 # static unroll (T=8): no grid/step overhead
            gates = (x_proj[t * B:(t + 1) * B, :]
                     + jnp.dot(h, whh, preferred_element_type=jnp.float32))   # (B, 4H)
            # PyTorch gate order [i, f, g, o]; static lane slices of the gate vector.
            i_g = jax.nn.sigmoid(gates[:, 0 * H:1 * H])
            f_g = jax.nn.sigmoid(gates[:, 1 * H:2 * H])
            g_g = jnp.tanh(gates[:, 2 * H:3 * H])
            o_g = jax.nn.sigmoid(gates[:, 3 * H:4 * H])
            c = f_g * c + i_g * g_g
            h = o_g * jnp.tanh(c)
            hs.append(h)

        # Next layer's input, still time-major (row = t*B + b).  Intermediate hidden
        # sequences never leave VMEM (no masked sub-128-lane HBM stores).
        seq = jnp.concatenate(hs, axis=0)                              # (T*B, H)
        # Dropout(p=0.5) between layers is identity in eval/inference mode.
        # TODO(synk): training-mode dropout (random mask + 2x scale) not implemented.

    # PyTorch head: `params[-1, :]` with batch_first selects the LAST BATCH element,
    # all timesteps -> (T, 16); then Linear(16, 1).
    feats = jnp.concatenate(
        [seq[t * B + (B - 1): t * B + B, :] for t in range(T)], axis=0)  # (T, 16)
    out_ref[...] = (jnp.dot(feats, lw_ref[...], preferred_element_type=jnp.float32)
                    + lb_ref[...])


# ----------------------------------------------------------------------------
# Wrapper: weight layout prep (once, outside jit) + single pallas_call forward.
# ----------------------------------------------------------------------------
def prepare_kernel_params(weights):
    """Pre-transpose PyTorch-layout weights into kernel-friendly (Din,4H)/(H,4H) layout
    and fuse the two bias vectors.  Done once so the jitted forward is ONE pallas_call."""
    flat = []
    for (w_ih, w_hh, b_ih, b_hh) in weights["lstms"]:
        h = w_hh.shape[1]
        flat.append(jnp.transpose(w_ih))                 # (Din, 4H)
        flat.append(jnp.transpose(w_hh))                 # (H, 4H)
        flat.append((b_ih + b_hh).reshape(1, 4 * h))     # (1, 4H) combined bias
    flat.append(weights["linear_w"])                     # (16, 1)
    flat.append(weights["linear_b"])                     # (1, 1)
    return tuple(flat)


def _full_vmem_spec(shape):
    n = len(shape)
    return pl.BlockSpec(shape, lambda: (0,) * n)         # whole-array block, no grid


def param_lstm_forward(params_btd, kernel_params):
    """params_btd: (B, T, 128) batch_first.  Returns (T, 1), matching
    linear(lstm_stack(params)[-1, :]) of the PyTorch module (eval mode)."""
    B, T, D = params_btd.shape
    args = (params_btd,) + tuple(kernel_params)
    return pl.pallas_call(
        _fused_param_lstm_kernel,
        out_shape=jax.ShapeDtypeStruct((T, 1), jnp.float32),
        in_specs=[_full_vmem_spec(a.shape) for a in args],
        out_specs=_full_vmem_spec((T, 1)),
    )(*args)


# ----------------------------------------------------------------------------
# Deterministic parameter init (PyTorch-style uniform(-1/sqrt(H), 1/sqrt(H))).
# ----------------------------------------------------------------------------
def init_weights(key):
    sizes = [(128, 64), (64, 32), (32, 16)]
    lstms = []
    for (din, h) in sizes:
        k = 1.0 / jnp.sqrt(h)
        key, k1, k2, k3, k4 = jax.random.split(key, 5)
        w_ih = jax.random.uniform(k1, (4 * h, din), jnp.float32, -k, k)
        w_hh = jax.random.uniform(k2, (4 * h, h), jnp.float32, -k, k)
        b_ih = jax.random.uniform(k3, (4 * h,), jnp.float32, -k, k)
        b_hh = jax.random.uniform(k4, (4 * h,), jnp.float32, -k, k)
        lstms.append((w_ih, w_hh, b_ih, b_hh))
    key, k1, k2 = jax.random.split(key, 3)
    kl = 1.0 / jnp.sqrt(16.0)
    linear_w = jax.random.uniform(k1, (16, 1), jnp.float32, -kl, kl)
    linear_b = jax.random.uniform(k2, (1, 1), jnp.float32, -kl, kl)
    return {"lstms": lstms, "linear_w": linear_w, "linear_b": linear_b}


# ----------------------------------------------------------------------------
# Pure-JAX reference (lax.scan) for correctness check.
# ----------------------------------------------------------------------------
def _ref_lstm_layer(x_btd, w_ih, w_hh, b_ih, b_hh):
    B, T, D = x_btd.shape
    H = w_hh.shape[1]

    def step(carry, x_t):
        h, c = carry
        g = x_t @ w_ih.T + h @ w_hh.T + b_ih + b_hh
        i, f, gg, o = jnp.split(g, 4, axis=-1)
        i, f, o = jax.nn.sigmoid(i), jax.nn.sigmoid(f), jax.nn.sigmoid(o)
        gg = jnp.tanh(gg)
        c = f * c + i * gg
        h = o * jnp.tanh(c)
        return (h, c), h

    h0 = jnp.zeros((B, H), jnp.float32)
    c0 = jnp.zeros((B, H), jnp.float32)
    _, hs = jax.lax.scan(step, (h0, c0), jnp.transpose(x_btd, (1, 0, 2)))
    return jnp.transpose(hs, (1, 0, 2))   # (B, T, H)


def param_lstm_reference(params_btd, weights):
    x = params_btd
    for (w_ih, w_hh, b_ih, b_hh) in weights["lstms"]:
        x = _ref_lstm_layer(x, w_ih, w_hh, b_ih, b_hh)
    last = x[-1, :, :]                                 # (T, 16): last batch element
    return last @ weights["linear_w"] + weights["linear_b"]


if __name__ == "__main__":
    key = jax.random.PRNGKey(0)
    kw, kx = jax.random.split(key)
    weights = init_weights(kw)
    kparams = prepare_kernel_params(weights)

    B, T, D = 2, 8, 128
    x = jax.random.normal(kx, (B, T, D), jnp.float32)

    out = jax.jit(param_lstm_forward)(x, kparams)
    out = jax.block_until_ready(out)

    ref = param_lstm_reference(x, weights)
    assert out.shape == (T, 1), out.shape
    assert jnp.allclose(out, ref, atol=1e-4, rtol=1e-4), (out, ref)

    print("KERNEL_OK")
</pallas_src>

<mosaic_0001>
module attributes {stable_mosaic.version = 11 : i64} {
  func.func @_fused_param_lstm_kernel(%arg0: memref<2x8x128xf32, #tpu.memory_space<vmem>>, %arg1: memref<128x256xf32, #tpu.memory_space<vmem>>, %arg2: memref<64x256xf32, #tpu.memory_space<vmem>>, %arg3: memref<1x256xf32, #tpu.memory_space<vmem>>, %arg4: memref<64x128xf32, #tpu.memory_space<vmem>>, %arg5: memref<32x128xf32, #tpu.memory_space<vmem>>, %arg6: memref<1x128xf32, #tpu.memory_space<vmem>>, %arg7: memref<32x64xf32, #tpu.memory_space<vmem>>, %arg8: memref<16x64xf32, #tpu.memory_space<vmem>>, %arg9: memref<1x64xf32, #tpu.memory_space<vmem>>, %arg10: memref<16x1xf32, #tpu.memory_space<vmem>>, %arg11: memref<1x1xf32, #tpu.memory_space<vmem>>, %arg12: memref<8x1xf32, #tpu.memory_space<vmem>>) attributes {dimension_semantics = [], scalar_prefetch = 0 : i64, scratch_operands = 0 : i64, tpu.core_type = #tpu.core_type<tc>} {
    %c0 = arith.constant 0 : index
    %c0_0 = arith.constant 0 : index
    %c0_1 = arith.constant 0 : index
    %0 = vector.load %arg0[%c0, %c0_0, %c0_1] : memref<2x8x128xf32, #tpu.memory_space<vmem>>, vector<2x8x128xf32>
    %1 = vector.extract_strided_slice %0 {offsets = [0, 0, 0], sizes = [2, 1, 128], strides = [1, 1, 1]} : vector<2x8x128xf32> to vector<2x1x128xf32>
    %2 = vector.shape_cast %1 : vector<2x1x128xf32> to vector<2x128xf32>
    %3 = vector.extract_strided_slice %0 {offsets = [0, 1, 0], sizes = [2, 1, 128], strides = [1, 1, 1]} : vector<2x8x128xf32> to vector<2x1x128xf32>
    %4 = vector.shape_cast %3 : vector<2x1x128xf32> to vector<2x128xf32>
    %5 = vector.extract_strided_slice %0 {offsets = [0, 2, 0], sizes = [2, 1, 128], strides = [1, 1, 1]} : vector<2x8x128xf32> to vector<2x1x128xf32>
    %6 = vector.shape_cast %5 : vector<2x1x128xf32> to vector<2x128xf32>
    %7 = vector.extract_strided_slice %0 {offsets = [0, 3, 0], sizes = [2, 1, 128], strides = [1, 1, 1]} : vector<2x8x128xf32> to vector<2x1x128xf32>
    %8 = vector.shape_cast %7 : vector<2x1x128xf32> to vector<2x128xf32>
    %9 = vector.extract_strided_slice %0 {offsets = [0, 4, 0], sizes = [2, 1, 128], strides = [1, 1, 1]} : vector<2x8x128xf32> to vector<2x1x128xf32>
    %10 = vector.shape_cast %9 : vector<2x1x128xf32> to vector<2x128xf32>
    %11 = vector.extract_strided_slice %0 {offsets = [0, 5, 0], sizes = [2, 1, 128], strides = [1, 1, 1]} : vector<2x8x128xf32> to vector<2x1x128xf32>
    %12 = vector.shape_cast %11 : vector<2x1x128xf32> to vector<2x128xf32>
    %13 = vector.extract_strided_slice %0 {offsets = [0, 6, 0], sizes = [2, 1, 128], strides = [1, 1, 1]} : vector<2x8x128xf32> to vector<2x1x128xf32>
    %14 = vector.shape_cast %13 : vector<2x1x128xf32> to vector<2x128xf32>
    %15 = vector.extract_strided_slice %0 {offsets = [0, 7, 0], sizes = [2, 1, 128], strides = [1, 1, 1]} : vector<2x8x128xf32> to vector<2x1x128xf32>
    %16 = vector.shape_cast %15 : vector<2x1x128xf32> to vector<2x128xf32>
    %17 = tpu.concatenate %2, %4, %6, %8, %10, %12, %14, %16 in 0 : vector<2x128xf32>, vector<2x128xf32>, vector<2x128xf32>, vector<2x128xf32>, vector<2x128xf32>, vector<2x128xf32>, vector<2x128xf32>, vector<2x128xf32> -> vector<16x128xf32>
    %c0_2 = arith.constant 0 : index
    %c0_3 = arith.constant 0 : index
    %18 = vector.load %arg1[%c0_2, %c0_3] : memref<128x256xf32, #tpu.memory_space<vmem>>, vector<128x256xf32>
    %cst = arith.constant dense<0.000000e+00> : vector<16x256xf32>
    %19 = tpu.matmul %17, %18, %cst {dimension_numbers = #tpu.dot_dimension_numbers<[1], [0], [0], [1], [0, 0, 1, 1], [], []>} : vector<16x128xf32>, vector<128x256xf32>, vector<16x256xf32> -> vector<16x256xf32>
    %c0_4 = arith.constant 0 : index
    %c0_5 = arith.constant 0 : index
    %20 = vector.load %arg3[%c0_4, %c0_5] : memref<1x256xf32, #tpu.memory_space<vmem>>, vector<1x256xf32>
    %21 = vector.broadcast %20 : vector<1x256xf32> to vector<16x256xf32>
    %22 = arith.addf %19, %21 : vector<16x256xf32>
    %c0_6 = arith.constant 0 : index
    %c0_7 = arith.constant 0 : index
    %23 = vector.load %arg2[%c0_6, %c0_7] : memref<64x256xf32, #tpu.memory_space<vmem>>, vector<64x256xf32>
    %cst_8 = arith.constant 0.000000e+00 : f32
    %24 = vector.broadcast %cst_8 : f32 to vector<2x64xf32>
    %cst_9 = arith.constant 0.000000e+00 : f32
    %25 = vector.broadcast %cst_9 : f32 to vector<2x64xf32>
    %26 = vector.extract_strided_slice %22 {offsets = [0, 0], sizes = [2, 256], strides = [1, 1]} : vector<16x256xf32> to vector<2x256xf32>
    %cst_10 = arith.constant dense<0.000000e+00> : vector<2x256xf32>
    %27 = tpu.matmul %24, %23, %cst_10 {dimension_numbers = #tpu.dot_dimension_numbers<[1], [0], [0], [1], [0, 0, 1, 1], [], []>} : vector<2x64xf32>, vector<64x256xf32>, vector<2x256xf32> -> vector<2x256xf32>
    %28 = arith.addf %26, %27 : vector<2x256xf32>
    %29 = vector.extract_strided_slice %28 {offsets = [0, 0], sizes = [2, 64], strides = [1, 1]} : vector<2x256xf32> to vector<2x64xf32>
    %30 = arith.negf %29 : vector<2x64xf32>
    %31 = math.exp %30 : vector<2x64xf32>
    %cst_11 = arith.constant 1.000000e+00 : f32
    %32 = vector.broadcast %cst_11 : f32 to vector<2x64xf32>
    %33 = arith.addf %32, %31 : vector<2x64xf32>
    %34 = arith.divf %32, %33 : vector<2x64xf32>
    %35 = vector.extract_strided_slice %28 {offsets = [0, 64], sizes = [2, 64], strides = [1, 1]} : vector<2x256xf32> to vector<2x64xf32>
    %36 = arith.negf %35 : vector<2x64xf32>
    %37 = math.exp %36 : vector<2x64xf32>
    %cst_12 = arith.constant 1.000000e+00 : f32
    %38 = vector.broadcast %cst_12 : f32 to vector<2x64xf32>
    %39 = arith.addf %38, %37 : vector<2x64xf32>
    %40 = arith.divf %38, %39 : vector<2x64xf32>
    %41 = vector.extract_strided_slice %28 {offsets = [0, 128], sizes = [2, 64], strides = [1, 1]} : vector<2x256xf32> to vector<2x64xf32>
    %42 = math.tanh %41 : vector<2x64xf32>
    %43 = vector.extract_strided_slice %28 {offsets = [0, 192], sizes = [2, 64], strides = [1, 1]} : vector<2x256xf32> to vector<2x64xf32>
    %44 = arith.negf %43 : vector<2x64xf32>
    %45 = math.exp %44 : vector<2x64xf32>
    %cst_13 = arith.constant 1.000000e+00 : f32
    %46 = vector.broadcast %cst_13 : f32 to vector<2x64xf32>
    %47 = arith.addf %46, %45 : vector<2x64xf32>
    %48 = arith.divf %46, %47 : vector<2x64xf32>
    %49 = arith.mulf %40, %25 : vector<2x64xf32>
    %50 = arith.mulf %34, %42 : vector<2x64xf32>
    %51 = arith.addf %49, %50 : vector<2x64xf32>
    %52 = math.tanh %51 : vector<2x64xf32>
    %53 = arith.mulf %48, %52 : vector<2x64xf32>
    %54 = vector.extract_strided_slice %22 {offsets = [2, 0], sizes = [2, 256], strides = [1, 1]} : vector<16x256xf32> to vector<2x256xf32>
    %cst_14 = arith.constant dense<0.000000e+00> : vector<2x256xf32>
    %55 = tpu.matmul %53, %23, %cst_14 {dimension_numbers = #tpu.dot_dimension_numbers<[1], [0], [0], [1], [0, 0, 1, 1], [], []>} : vector<2x64xf32>, vector<64x256xf32>, vector<2x256xf32> -> vector<2x256xf32>
    %56 = arith.addf %54, %55 : vector<2x256xf32>
    %57 = vector.extract_strided_slice %56 {offsets = [0, 0], sizes = [2, 64], strides = [1, 1]} : vector<2x256xf32> to vector<2x64xf32>
    %58 = arith.negf %57 : vector<2x64xf32>
    %59 = math.exp %58 : vector<2x64xf32>
    %cst_15 = arith.constant 1.000000e+00 : f32
    %60 = vector.broadcast %cst_15 : f32 to vector<2x64xf32>
    %61 = arith.addf %60, %59 : vector<2x64xf32>
    %62 = arith.divf %60, %61 : vector<2x64xf32>
    %63 = vector.extract_strided_slice %56 {offsets = [0, 64], sizes = [2, 64], strides = [1, 1]} : vector<2x256xf32> to vector<2x64xf32>
    %64 = arith.negf %63 : vector<2x64xf32>
    %65 = math.exp %64 : vector<2x64xf32>
    %cst_16 = arith.constant 1.000000e+00 : f32
    %66 = vector.broadcast %cst_16 : f32 to vector<2x64xf32>
    %67 = arith.addf %66, %65 : vector<2x64xf32>
    %68 = arith.divf %66, %67 : vector<2x64xf32>
    %69 = vector.extract_strided_slice %56 {offsets = [0, 128], sizes = [2, 64], strides = [1, 1]} : vector<2x256xf32> to vector<2x64xf32>
    %70 = math.tanh %69 : vector<2x64xf32>
    %71 = vector.extract_strided_slice %56 {offsets = [0, 192], sizes = [2, 64], strides = [1, 1]} : vector<2x256xf32> to vector<2x64xf32>
    %72 = arith.negf %71 : vector<2x64xf32>
    %73 = math.exp %72 : vector<2x64xf32>
    %cst_17 = arith.constant 1.000000e+00 : f32
    %74 = vector.broadcast %cst_17 : f32 to vector<2x64xf32>
    %75 = arith.addf %74, %73 : vector<2x64xf32>
    %76 = arith.divf %74, %75 : vector<2x64xf32>
    %77 = arith.mulf %68, %51 : vector<2x64xf32>
    %78 = arith.mulf %62, %70 : vector<2x64xf32>
    %79 = arith.addf %77, %78 : vector<2x64xf32>
    %80 = math.tanh %79 : vector<2x64xf32>
    %81 = arith.mulf %76, %80 : vector<2x64xf32>
    %82 = vector.extract_strided_slice %22 {offsets = [4, 0], sizes = [2, 256], strides = [1, 1]} : vector<16x256xf32> to vector<2x256xf32>
    %cst_18 = arith.constant dense<0.000000e+00> : vector<2x256xf32>
    %83 = tpu.matmul %81, %23, %cst_18 {dimension_numbers = #tpu.dot_dimension_numbers<[1], [0], [0], [1], [0, 0, 1, 1], [], []>} : vector<2x64xf32>, vector<64x256xf32>, vector<2x256xf32> -> vector<2x256xf32>
    %84 = arith.addf %82, %83 : vector<2x256xf32>
    %85 = vector.extract_strided_slice %84 {offsets = [0, 0], sizes = [2, 64], strides = [1, 1]} : vector<2x256xf32> to vector<2x64xf32>
    %86 = arith.negf %85 : vector<2x64xf32>
    %87 = math.exp %86 : vector<2x64xf32>
    %cst_19 = arith.constant 1.000000e+00 : f32
    %88 = vector.broadcast %cst_19 : f32 to vector<2x64xf32>
    %89 = arith.addf %88, %87 : vector<2x64xf32>
    %90 = arith.divf %88, %89 : vector<2x64xf32>
    %91 = vector.extract_strided_slice %84 {offsets = [0, 64], sizes = [2, 64], strides = [1, 1]} : vector<2x256xf32> to vector<2x64xf32>
    %92 = arith.negf %91 : vector<2x64xf32>
    %93 = math.exp %92 : vector<2x64xf32>
    %cst_20 = arith.constant 1.000000e+00 : f32
    %94 = vector.broadcast %cst_20 : f32 to vector<2x64xf32>
    %95 = arith.addf %94, %93 : vector<2x64xf32>
    %96 = arith.divf %94, %95 : vector<2x64xf32>
    %97 = vector.extract_strided_slice %84 {offsets = [0, 128], sizes = [2, 64], strides = [1, 1]} : vector<2x256xf32> to vector<2x64xf32>
    %98 = math.tanh %97 : vector<2x64xf32>
    %99 = vector.extract_strided_slice %84 {offsets = [0, 192], sizes = [2, 64], strides = [1, 1]} : vector<2x256xf32> to vector<2x64xf32>
    %100 = arith.negf %99 : vector<2x64xf32>
    %101 = math.exp %100 : vector<2x64xf32>
    %cst_21 = arith.constant 1.000000e+00 : f32
    %102 = vector.broadcast %cst_21 : f32 to vector<2x64xf32>
    %103 = arith.addf %102, %101 : vector<2x64xf32>
    %104 = arith.divf %102, %103 : vector<2x64xf32>
    %105 = arith.mulf %96, %79 : vector<2x64xf32>
    %106 = arith.mulf %90, %98 : vector<2x64xf32>
    %107 = arith.addf %105, %106 : vector<2x64xf32>
    %108 = math.tanh %107 : vector<2x64xf32>
    %109 = arith.mulf %104, %108 : vector<2x64xf32>
    %110 = vector.extract_strided_slice %22 {offsets = [6, 0], sizes = [2, 256], strides = [1, 1]} : vector<16x256xf32> to vector<2x256xf32>
    %cst_22 = arith.constant dense<0.000000e+00> : vector<2x256xf32>
    %111 = tpu.matmul %109, %23, %cst_22 {dimension_numbers = #tpu.dot_dimension_numbers<[1], [0], [0], [1], [0, 0, 1, 1], [], []>} : vector<2x64xf32>, vector<64x256xf32>, vector<2x256xf32> -> vector<2x256xf32>
    %112 = arith.addf %110, %111 : vector<2x256xf32>
    %113 = vector.extract_strided_slice %112 {offsets = [0, 0], sizes = [2, 64], strides = [1, 1]} : vector<2x256xf32> to vector<2x64xf32>
    %114 = arith.negf %113 : vector<2x64xf32>
    %115 = math.exp %114 : vector<2x64xf32>
    %cst_23 = arith.constant 1.000000e+00 : f32
    %116 = vector.broadcast %cst_23 : f32 to vector<2x64xf32>
    %117 = arith.addf %116, %115 : vector<2x64xf32>
    %118 = arith.divf %116, %117 : vector<2x64xf32>
    %119 = vector.extract_strided_slice %112 {offsets = [0, 64], sizes = [2, 64], strides = [1, 1]} : vector<2x256xf32> to vector<2x64xf32>
    %120 = arith.negf %119 : vector<2x64xf32>
    %121 = math.exp %120 : vector<2x64xf32>
    %cst_24 = arith.constant 1.000000e+00 : f32
    %122 = vector.broadcast %cst_24 : f32 to vector<2x64xf32>
    %123 = arith.addf %122, %121 : vector<2x64xf32>
    %124 = arith.divf %122, %123 : vector<2x64xf32>
    %125 = vector.extract_strided_slice %112 {offsets = [0, 128], sizes = [2, 64], strides = [1, 1]} : vector<2x256xf32> to vector<2x64xf32>
    %126 = math.tanh %125 : vector<2x64xf32>
    %127 = vector.extract_strided_slice %112 {offsets = [0, 192], sizes = [2, 64], strides = [1, 1]} : vector<2x256xf32> to vector<2x64xf32>
    %128 = arith.negf %127 : vector<2x64xf32>
    %129 = math.exp %128 : vector<2x64xf32>
    %cst_25 = arith.constant 1.000000e+00 : f32
    %130 = vector.broadcast %cst_25 : f32 to vector<2x64xf32>
    %131 = arith.addf %130, %129 : vector<2x64xf32>
    %132 = arith.divf %130, %131 : vector<2x64xf32>
    %133 = arith.mulf %124, %107 : vector<2x64xf32>
    %134 = arith.mulf %118, %126 : vector<2x64xf32>
    %135 = arith.addf %133, %134 : vector<2x64xf32>
    %136 = math.tanh %135 : vector<2x64xf32>
    %137 = arith.mulf %132, %136 : vector<2x64xf32>
    %138 = vector.extract_strided_slice %22 {offsets = [8, 0], sizes = [2, 256], strides = [1, 1]} : vector<16x256xf32> to vector<2x256xf32>
    %cst_26 = arith.constant dense<0.000000e+00> : vector<2x256xf32>
    %139 = tpu.matmul %137, %23, %cst_26 {dimension_numbers = #tpu.dot_dimension_numbers<[1], [0], [0], [1], [0, 0, 1, 1], [], []>} : vector<2x64xf32>, vector<64x256xf32>, vector<2x256xf32> -> vector<2x256xf32>
    %140 = arith.addf %138, %139 : vector<2x256xf32>
    %141 = vector.extract_strided_slice %140 {offsets = [0, 0], sizes = [2, 64], strides = [1, 1]} : vector<2x256xf32> to vector<2x64xf32>
    %142 = arith.negf %141 : vector<2x64xf32>
    %143 = math.exp %142 : vector<2x64xf32>
    %cst_27 = arith.constant 1.000000e+00 : f32
    %144 = vector.broadcast %cst_27 : f32 to vector<2x64xf32>
    %145 = arith.addf %144, %143 : vector<2x64xf32>
    %146 = arith.divf %144, %145 : vector<2x64xf32>
    %147 = vector.extract_strided_slice %140 {offsets = [0, 64], sizes = [2, 64], strides = [1, 1]} : vector<2x256xf32> to vector<2x64xf32>
    %148 = arith.negf %147 : vector<2x64xf32>
    %149 = math.exp %148 : vector<2x64xf32>
    %cst_28 = arith.constant 1.000000e+00 : f32
    %150 = vector.broadcast %cst_28 : f32 to vector<2x64xf32>
    %151 = arith.addf %150, %149 : vector<2x64xf32>
    %152 = arith.divf %150, %151 : vector<2x64xf32>
    %153 = vector.extract_strided_slice %140 {offsets = [0, 128], sizes = [2, 64], strides = [1, 1]} : vector<2x256xf32> to vector<2x64xf32>
    %154 = math.tanh %153 : vector<2x64xf32>
    %155 = vector.extract_strided_slice %140 {offsets = [0, 192], sizes = [2, 64], strides = [1, 1]} : vector<2x256xf32> to vector<2x64xf32>
    %156 = arith.negf %155 : vector<2x64xf32>
    %157 = math.exp %156 : vector<2x64xf32>
    %cst_29 = arith.constant 1.000000e+00 : f32
    %158 = vector.broadcast %cst_29 : f32 to vector<2x64xf32>
    %159 = arith.addf %158, %157 : vector<2x64xf32>
    %160 = arith.divf %158, %159 : vector<2x64xf32>
    %161 = arith.mulf %152, %135 : vector<2x64xf32>
    %162 = arith.mulf %146, %154 : vector<2x64xf32>
    %163 = arith.addf %161, %162 : vector<2x64xf32>
    %164 = math.tanh %163 : vector<2x64xf32>
    %165 = arith.mulf %160, %164 : vector<2x64xf32>
    %166 = vector.extract_strided_slice %22 {offsets = [10, 0], sizes = [2, 256], strides = [1, 1]} : vector<16x256xf32> to vector<2x256xf32>
    %cst_30 = arith.constant dense<0.000000e+00> : vector<2x256xf32>
    %167 = tpu.matmul %165, %23, %cst_30 {dimension_numbers = #tpu.dot_dimension_numbers<[1], [0], [0], [1], [0, 0, 1, 1], [], []>} : vector<2x64xf32>, vector<64x256xf32>, vector<2x256xf32> -> vector<2x256xf32>
    %168 = arith.addf %166, %167 : vector<2x256xf32>
    %169 = vector.extract_strided_slice %168 {offsets = [0, 0], sizes = [2, 64], strides = [1, 1]} : vector<2x256xf32> to vector<2x64xf32>
    %170 = arith.negf %169 : vector<2x64xf32>
    %171 = math.exp %170 : vector<2x64xf32>
    %cst_31 = arith.constant 1.000000e+00 : f32
    %172 = vector.broadcast %cst_31 : f32 to vector<2x64xf32>
    %173 = arith.addf %172, %171 : vector<2x64xf32>
    %174 = arith.divf %172, %173 : vector<2x64xf32>
    %175 = vector.extract_strided_slice %168 {offsets = [0, 64], sizes = [2, 64], strides = [1, 1]} : vector<2x256xf32> to vector<2x64xf32>
    %176 = arith.negf %175 : vector<2x64xf32>
    %177 = math.exp %176 : vector<2x64xf32>
    %cst_32 = arith.constant 1.000000e+00 : f32
    %178 = vector.broadcast %cst_32 : f32 to vector<2x64xf32>
    %179 = arith.addf %178, %177 : vector<2x64xf32>
    %180 = arith.divf %178, %179 : vector<2x64xf32>
    %181 = vector.extract_strided_slice %168 {offsets = [0, 128], sizes = [2, 64], strides = [1, 1]} : vector<2x256xf32> to vector<2x64xf32>
    %182 = math.tanh %181 : vector<2x64xf32>
    %183 = vector.extract_strided_slice %168 {offsets = [0, 192], sizes = [2, 64], strides = [1, 1]} : vector<2x256xf32> to vector<2x64xf32>
    %184 = arith.negf %183 : vector<2x64xf32>
    %185 = math.exp %184 : vector<2x64xf32>
    %cst_33 = arith.constant 1.000000e+00 : f32
    %186 = vector.broadcast %cst_33 : f32 to vector<2x64xf32>
    %187 = arith.addf %186, %185 : vector<2x64xf32>
    %188 = arith.divf %186, %187 : vector<2x64xf32>
    %189 = arith.mulf %180, %163 : vector<2x64xf32>
    %190 = arith.mulf %174, %182 : vector<2x64xf32>
    %191 = arith.addf %189, %190 : vector<2x64xf32>
    %192 = math.tanh %191 : vector<2x64xf32>
    %193 = arith.mulf %188, %192 : vector<2x64xf32>
    %194 = vector.extract_strided_slice %22 {offsets = [12, 0], sizes = [2, 256], strides = [1, 1]} : vector<16x256xf32> to vector<2x256xf32>
    %cst_34 = arith.constant dense<0.000000e+00> : vector<2x256xf32>
    %195 = tpu.matmul %193, %23, %cst_34 {dimension_numbers = #tpu.dot_dimension_numbers<[1], [0], [0], [1], [0, 0, 1, 1], [], []>} : vector<2x64xf32>, vector<64x256xf32>, vector<2x256xf32> -> vector<2x256xf32>
    %196 = arith.addf %194, %195 : vector<2x256xf32>
    %197 = vector.extract_strided_slice %196 {offsets = [0, 0], sizes = [2, 64], strides = [1, 1]} : vector<2x256xf32> to vector<2x64xf32>
    %198 = arith.negf %197 : vector<2x64xf32>
    %199 = math.exp %198 : vector<2x64xf32>
    %cst_35 = arith.constant 1.000000e+00 : f32
    %200 = vector.broadcast %cst_35 : f32 to vector<2x64xf32>
    %201 = arith.addf %200, %199 : vector<2x64xf32>
    %202 = arith.divf %200, %201 : vector<2x64xf32>
    %203 = vector.extract_strided_slice %196 {offsets = [0, 64], sizes = [2, 64], strides = [1, 1]} : vector<2x256xf32> to vector<2x64xf32>
    %204 = arith.negf %203 : vector<2x64xf32>
    %205 = math.exp %204 : vector<2x64xf32>
    %cst_36 = arith.constant 1.000000e+00 : f32
    %206 = vector.broadcast %cst_36 : f32 to vector<2x64xf32>
    %207 = arith.addf %206, %205 : vector<2x64xf32>
    %208 = arith.divf %206, %207 : vector<2x64xf32>
    %209 = vector.extract_strided_slice %196 {offsets = [0, 128], sizes = [2, 64], strides = [1, 1]} : vector<2x256xf32> to vector<2x64xf32>
    %210 = math.tanh %209 : vector<2x64xf32>
    %211 = vector.extract_strided_slice %196 {offsets = [0, 192], sizes = [2, 64], strides = [1, 1]} : vector<2x256xf32> to vector<2x64xf32>
    %212 = arith.negf %211 : vector<2x64xf32>
    %213 = math.exp %212 : vector<2x64xf32>
    %cst_37 = arith.constant 1.000000e+00 : f32
    %214 = vector.broadcast %cst_37 : f32 to vector<2x64xf32>
    %215 = arith.addf %214, %213 : vector<2x64xf32>
    %216 = arith.divf %214, %215 : vector<2x64xf32>
    %217 = arith.mulf %208, %191 : vector<2x64xf32>
    %218 = arith.mulf %202, %210 : vector<2x64xf32>
    %219 = arith.addf %217, %218 : vector<2x64xf32>
    %220 = math.tanh %219 : vector<2x64xf32>
    %221 = arith.mulf %216, %220 : vector<2x64xf32>
    %222 = vector.extract_strided_slice %22 {offsets = [14, 0], sizes = [2, 256], strides = [1, 1]} : vector<16x256xf32> to vector<2x256xf32>
    %cst_38 = arith.constant dense<0.000000e+00> : vector<2x256xf32>
    %223 = tpu.matmul %221, %23, %cst_38 {dimension_numbers = #tpu.dot_dimension_numbers<[1], [0], [0], [1], [0, 0, 1, 1], [], []>} : vector<2x64xf32>, vector<64x256xf32>, vector<2x256xf32> -> vector<2x256xf32>
    %224 = arith.addf %222, %223 : vector<2x256xf32>
    %225 = vector.extract_strided_slice %224 {offsets = [0, 0], sizes = [2, 64], strides = [1, 1]} : vector<2x256xf32> to vector<2x64xf32>
    %226 = arith.negf %225 : vector<2x64xf32>
    %227 = math.exp %226 : vector<2x64xf32>
    %cst_39 = arith.constant 1.000000e+00 : f32
    %228 = vector.broadcast %cst_39 : f32 to vector<2x64xf32>
    %229 = arith.addf %228, %227 : vector<2x64xf32>
    %230 = arith.divf %228, %229 : vector<2x64xf32>
    %231 = vector.extract_strided_slice %224 {offsets = [0, 64], sizes = [2, 64], strides = [1, 1]} : vector<2x256xf32> to vector<2x64xf32>
    %232 = arith.negf %231 : vector<2x64xf32>
    %233 = math.exp %232 : vector<2x64xf32>
    %cst_40 = arith.constant 1.000000e+00 : f32
    %234 = vector.broadcast %cst_40 : f32 to vector<2x64xf32>
    %235 = arith.addf %234, %233 : vector<2x64xf32>
    %236 = arith.divf %234, %235 : vector<2x64xf32>
    %237 = vector.extract_strided_slice %224 {offsets = [0, 128], sizes = [2, 64], strides = [1, 1]} : vector<2x256xf32> to vector<2x64xf32>
    %238 = math.tanh %237 : vector<2x64xf32>
    %239 = vector.extract_strided_slice %224 {offsets = [0, 192], sizes = [2, 64], strides = [1, 1]} : vector<2x256xf32> to vector<2x64xf32>
    %240 = arith.negf %239 : vector<2x64xf32>
    %241 = math.exp %240 : vector<2x64xf32>
    %cst_41 = arith.constant 1.000000e+00 : f32
    %242 = vector.broadcast %cst_41 : f32 to vector<2x64xf32>
    %243 = arith.addf %242, %241 : vector<2x64xf32>
    %244 = arith.divf %242, %243 : vector<2x64xf32>
    %245 = arith.mulf %236, %219 : vector<2x64xf32>
    %246 = arith.mulf %230, %238 : vector<2x64xf32>
    %247 = arith.addf %245, %246 : vector<2x64xf32>
    %248 = math.tanh %247 : vector<2x64xf32>
    %249 = arith.mulf %244, %248 : vector<2x64xf32>
    %250 = tpu.concatenate %53, %81, %109, %137, %165, %193, %221, %249 in 0 : vector<2x64xf32>, vector<2x64xf32>, vector<2x64xf32>, vector<2x64xf32>, vector<2x64xf32>, vector<2x64xf32>, vector<2x64xf32>, vector<2x64xf32> -> vector<16x64xf32>
    %c0_42 = arith.constant 0 : index
    %c0_43 = arith.constant 0 : index
    %251 = vector.load %arg4[%c0_42, %c0_43] : memref<64x128xf32, #tpu.memory_space<vmem>>, vector<64x128xf32>
    %cst_44 = arith.constant dense<0.000000e+00> : vector<16x128xf32>
    %252 = tpu.matmul %250, %251, %cst_44 {dimension_numbers = #tpu.dot_dimension_numbers<[1], [0], [0], [1], [0, 0, 1, 1], [], []>} : vector<16x64xf32>, vector<64x128xf32>, vector<16x128xf32> -> vector<16x128xf32>
    %c0_45 = arith.constant 0 : index
    %c0_46 = arith.constant 0 : index
    %253 = vector.load %arg6[%c0_45, %c0_46] : memref<1x128xf32, #tpu.memory_space<vmem>>, vector<1x128xf32>
    %254 = vector.broadcast %253 : vector<1x128xf32> to vector<16x128xf32>
    %255 = arith.addf %252, %254 : vector<16x128xf32>
    %c0_47 = arith.constant 0 : index
    %c0_48 = arith.constant 0 : index
    %256 = vector.load %arg5[%c0_47, %c0_48] : memref<32x128xf32, #tpu.memory_space<vmem>>, vector<32x128xf32>
    %cst_49 = arith.constant 0.000000e+00 : f32
    %257 = vector.broadcast %cst_49 : f32 to vector<2x32xf32>
    %cst_50 = arith.constant 0.000000e+00 : f32
    %258 = vector.broadcast %cst_50 : f32 to vector<2x32xf32>
    %259 = vector.extract_strided_slice %255 {offsets = [0, 0], sizes = [2, 128], strides = [1, 1]} : vector<16x128xf32> to vector<2x128xf32>
    %cst_51 = arith.constant dense<0.000000e+00> : vector<2x128xf32>
    %260 = tpu.matmul %257, %256, %cst_51 {dimension_numbers = #tpu.dot_dimension_numbers<[1], [0], [0], [1], [0, 0, 1, 1], [], []>} : vector<2x32xf32>, vector<32x128xf32>, vector<2x128xf32> -> vector<2x128xf32>
    %261 = arith.addf %259, %260 : vector<2x128xf32>
    %262 = vector.extract_strided_slice %261 {offsets = [0, 0], sizes = [2, 32], strides = [1, 1]} : vector<2x128xf32> to vector<2x32xf32>
    %263 = arith.negf %262 : vector<2x32xf32>
    %264 = math.exp %263 : vector<2x32xf32>
    %cst_52 = arith.constant 1.000000e+00 : f32
    %265 = vector.broadcast %cst_52 : f32 to vector<2x32xf32>
    %266 = arith.addf %265, %264 : vector<2x32xf32>
    %267 = arith.divf %265, %266 : vector<2x32xf32>
    %268 = vector.extract_strided_slice %261 {offsets = [0, 32], sizes = [2, 32], strides = [1, 1]} : vector<2x128xf32> to vector<2x32xf32>
    %269 = arith.negf %268 : vector<2x32xf32>
    %270 = math.exp %269 : vector<2x32xf32>
    %cst_53 = arith.constant 1.000000e+00 : f32
    %271 = vector.broadcast %cst_53 : f32 to vector<2x32xf32>
    %272 = arith.addf %271, %270 : vector<2x32xf32>
    %273 = arith.divf %271, %272 : vector<2x32xf32>
    %274 = vector.extract_strided_slice %261 {offsets = [0, 64], sizes = [2, 32], strides = [1, 1]} : vector<2x128xf32> to vector<2x32xf32>
    %275 = math.tanh %274 : vector<2x32xf32>
    %276 = vector.extract_strided_slice %261 {offsets = [0, 96], sizes = [2, 32], strides = [1, 1]} : vector<2x128xf32> to vector<2x32xf32>
    %277 = arith.negf %276 : vector<2x32xf32>
    %278 = math.exp %277 : vector<2x32xf32>
    %cst_54 = arith.constant 1.000000e+00 : f32
    %279 = vector.broadcast %cst_54 : f32 to vector<2x32xf32>
    %280 = arith.addf %279, %278 : vector<2x32xf32>
    %281 = arith.divf %279, %280 : vector<2x32xf32>
    %282 = arith.mulf %273, %258 : vector<2x32xf32>
    %283 = arith.mulf %267, %275 : vector<2x32xf32>
    %284 = arith.addf %282, %283 : vector<2x32xf32>
    %285 = math.tanh %284 : vector<2x32xf32>
    %286 = arith.mulf %281, %285 : vector<2x32xf32>
    %287 = vector.extract_strided_slice %255 {offsets = [2, 0], sizes = [2, 128], strides = [1, 1]} : vector<16x128xf32> to vector<2x128xf32>
    %cst_55 = arith.constant dense<0.000000e+00> : vector<2x128xf32>
    %288 = tpu.matmul %286, %256, %cst_55 {dimension_numbers = #tpu.dot_dimension_numbers<[1], [0], [0], [1], [0, 0, 1, 1], [], []>} : vector<2x32xf32>, vector<32x128xf32>, vector<2x128xf32> -> vector<2x128xf32>
    %289 = arith.addf %287, %288 : vector<2x128xf32>
    %290 = vector.extract_strided_slice %289 {offsets = [0, 0], sizes = [2, 32], strides = [1, 1]} : vector<2x128xf32> to vector<2x32xf32>
    %291 = arith.negf %290 : vector<2x32xf32>
    %292 = math.exp %291 : vector<2x32xf32>
    %cst_56 = arith.constant 1.000000e+00 : f32
    %293 = vector.broadcast %cst_56 : f32 to vector<2x32xf32>
    %294 = arith.addf %293, %292 : vector<2x32xf32>
    %295 = arith.divf %293, %294 : vector<2x32xf32>
    %296 = vector.extract_strided_slice %289 {offsets = [0, 32], sizes = [2, 32], strides = [1, 1]} : vector<2x128xf32> to vector<2x32xf32>
    %297 = arith.negf %296 : vector<2x32xf32>
    %298 = math.exp %297 : vector<2x32xf32>
    %cst_57 = arith.constant 1.000000e+00 : f32
    %299 = vector.broadcast %cst_57 : f32 to vector<2x32xf32>
    %300 = arith.addf %299, %298 : vector<2x32xf32>
    %301 = arith.divf %299, %300 : vector<2x32xf32>
    %302 = vector.extract_strided_slice %289 {offsets = [0, 64], sizes = [2, 32], strides = [1, 1]} : vector<2x128xf32> to vector<2x32xf32>
    %303 = math.tanh %302 : vector<2x32xf32>
    %304 = vector.extract_strided_slice %289 {offsets = [0, 96], sizes = [2, 32], strides = [1, 1]} : vector<2x128xf32> to vector<2x32xf32>
    %305 = arith.negf %304 : vector<2x32xf32>
    %306 = math.exp %305 : vector<2x32xf32>
    %cst_58 = arith.constant 1.000000e+00 : f32
    %307 = vector.broadcast %cst_58 : f32 to vector<2x32xf32>
    %308 = arith.addf %307, %306 : vector<2x32xf32>
    %309 = arith.divf %307, %308 : vector<2x32xf32>
    %310 = arith.mulf %301, %284 : vector<2x32xf32>
    %311 = arith.mulf %295, %303 : vector<2x32xf32>
    %312 = arith.addf %310, %311 : vector<2x32xf32>
    %313 = math.tanh %312 : vector<2x32xf32>
    %314 = arith.mulf %309, %313 : vector<2x32xf32>
    %315 = vector.extract_strided_slice %255 {offsets = [4, 0], sizes = [2, 128], strides = [1, 1]} : vector<16x128xf32> to vector<2x128xf32>
    %cst_59 = arith.constant dense<0.000000e+00> : vector<2x128xf32>
    %316 = tpu.matmul %314, %256, %cst_59 {dimension_numbers = #tpu.dot_dimension_numbers<[1], [0], [0], [1], [0, 0, 1, 1], [], []>} : vector<2x32xf32>, vector<32x128xf32>, vector<2x128xf32> -> vector<2x128xf32>
    %317 = arith.addf %315, %316 : vector<2x128xf32>
    %318 = vector.extract_strided_slice %317 {offsets = [0, 0], sizes = [2, 32], strides = [1, 1]} : vector<2x128xf32> to vector<2x32xf32>
    %319 = arith.negf %318 : vector<2x32xf32>
    %320 = math.exp %319 : vector<2x32xf32>
    %cst_60 = arith.constant 1.000000e+00 : f32
    %321 = vector.broadcast %cst_60 : f32 to vector<2x32xf32>
    %322 = arith.addf %321, %320 : vector<2x32xf32>
    %323 = arith.divf %321, %322 : vector<2x32xf32>
    %324 = vector.extract_strided_slice %317 {offsets = [0, 32], sizes = [2, 32], strides = [1, 1]} : vector<2x128xf32> to vector<2x32xf32>
    %325 = arith.negf %324 : vector<2x32xf32>
    %326 = math.exp %325 : vector<2x32xf32>
    %cst_61 = arith.constant 1.000000e+00 : f32
    %327 = vector.broadcast %cst_61 : f32 to vector<2x32xf32>
    %328 = arith.addf %327, %326 : vector<2x32xf32>
    %329 = arith.divf %327, %328 : vector<2x32xf32>
    %330 = vector.extract_strided_slice %317 {offsets = [0, 64], sizes = [2, 32], strides = [1, 1]} : vector<2x128xf32> to vector<2x32xf32>
    %331 = math.tanh %330 : vector<2x32xf32>
    %332 = vector.extract_strided_slice %317 {offsets = [0, 96], sizes = [2, 32], strides = [1, 1]} : vector<2x128xf32> to vector<2x32xf32>
    %333 = arith.negf %332 : vector<2x32xf32>
    %334 = math.exp %333 : vector<2x32xf32>
    %cst_62 = arith.constant 1.000000e+00 : f32
    %335 = vector.broadcast %cst_62 : f32 to vector<2x32xf32>
    %336 = arith.addf %335, %334 : vector<2x32xf32>
    %337 = arith.divf %335, %336 : vector<2x32xf32>
    %338 = arith.mulf %329, %312 : vector<2x32xf32>
    %339 = arith.mulf %323, %331 : vector<2x32xf32>
    %340 = arith.addf %338, %339 : vector<2x32xf32>
    %341 = math.tanh %340 : vector<2x32xf32>
    %342 = arith.mulf %337, %341 : vector<2x32xf32>
    %343 = vector.extract_strided_slice %255 {offsets = [6, 0], sizes = [2, 128], strides = [1, 1]} : vector<16x128xf32> to vector<2x128xf32>
    %cst_63 = arith.constant dense<0.000000e+00> : vector<2x128xf32>
    %344 = tpu.matmul %342, %256, %cst_63 {dimension_numbers = #tpu.dot_dimension_numbers<[1], [0], [0], [1], [0, 0, 1, 1], [], []>} : vector<2x32xf32>, vector<32x128xf32>, vector<2x128xf32> -> vector<2x128xf32>
    %345 = arith.addf %343, %344 : vector<2x128xf32>
    %346 = vector.extract_strided_slice %345 {offsets = [0, 0], sizes = [2, 32], strides = [1, 1]} : vector<2x128xf32> to vector<2x32xf32>
    %347 = arith.negf %346 : vector<2x32xf32>
    %348 = math.exp %347 : vector<2x32xf32>
    %cst_64 = arith.constant 1.000000e+00 : f32
    %349 = vector.broadcast %cst_64 : f32 to vector<2x32xf32>
    %350 = arith.addf %349, %348 : vector<2x32xf32>
    %351 = arith.divf %349, %350 : vector<2x32xf32>
    %352 = vector.extract_strided_slice %345 {offsets = [0, 32], sizes = [2, 32], strides = [1, 1]} : vector<2x128xf32> to vector<2x32xf32>
    %353 = arith.negf %352 : vector<2x32xf32>
    %354 = math.exp %353 : vector<2x32xf32>
    %cst_65 = arith.constant 1.000000e+00 : f32
    %355 = vector.broadcast %cst_65 : f32 to vector<2x32xf32>
    %356 = arith.addf %355, %354 : vector<2x32xf32>
    %357 = arith.divf %355, %356 : vector<2x32xf32>
    %358 = vector.extract_strided_slice %345 {offsets = [0, 64], sizes = [2, 32], strides = [1, 1]} : vector<2x128xf32> to vector<2x32xf32>
    %359 = math.tanh %358 : vector<2x32xf32>
    %360 = vector.extract_strided_slice %345 {offsets = [0, 96], sizes = [2, 32], strides = [1, 1]} : vector<2x128xf32> to vector<2x32xf32>
    %361 = arith.negf %360 : vector<2x32xf32>
    %362 = math.exp %361 : vector<2x32xf32>
    %cst_66 = arith.constant 1.000000e+00 : f32
    %363 = vector.broadcast %cst_66 : f32 to vector<2x32xf32>
    %364 = arith.addf %363, %362 : vector<2x32xf32>
    %365 = arith.divf %363, %364 : vector<2x32xf32>
    %366 = arith.mulf %357, %340 : vector<2x32xf32>
    %367 = arith.mulf %351, %359 : vector<2x32xf32>
    %368 = arith.addf %366, %367 : vector<2x32xf32>
    %369 = math.tanh %368 : vector<2x32xf32>
    %370 = arith.mulf %365, %369 : vector<2x32xf32>
    %371 = vector.extract_strided_slice %255 {offsets = [8, 0], sizes = [2, 128], strides = [1, 1]} : vector<16x128xf32> to vector<2x128xf32>
    %cst_67 = arith.constant dense<0.000000e+00> : vector<2x128xf32>
    %372 = tpu.matmul %370, %256, %cst_67 {dimension_numbers = #tpu.dot_dimension_numbers<[1], [0], [0], [1], [0, 0, 1, 1], [], []>} : vector<2x32xf32>, vector<32x128xf32>, vector<2x128xf32> -> vector<2x128xf32>
    %373 = arith.addf %371, %372 : vector<2x128xf32>
    %374 = vector.extract_strided_slice %373 {offsets = [0, 0], sizes = [2, 32], strides = [1, 1]} : vector<2x128xf32> to vector<2x32xf32>
    %375 = arith.negf %374 : vector<2x32xf32>
    %376 = math.exp %375 : vector<2x32xf32>
    %cst_68 = arith.constant 1.000000e+00 : f32
    %377 = vector.broadcast %cst_68 : f32 to vector<2x32xf32>
    %378 = arith.addf %377, %376 : vector<2x32xf32>
    %379 = arith.divf %377, %378 : vector<2x32xf32>
    %380 = vector.extract_strided_slice %373 {offsets = [0, 32], sizes = [2, 32], strides = [1, 1]} : vector<2x128xf32> to vector<2x32xf32>
    %381 = arith.negf %380 : vector<2x32xf32>
    %382 = math.exp %381 : vector<2x32xf32>
    %cst_69 = arith.constant 1.000000e+00 : f32
    %383 = vector.broadcast %cst_69 : f32 to vector<2x32xf32>
    %384 = arith.addf %383, %382 : vector<2x32xf32>
    %385 = arith.divf %383, %384 : vector<2x32xf32>
    %386 = vector.extract_strided_slice %373 {offsets = [0, 64], sizes = [2, 32], strides = [1, 1]} : vector<2x128xf32> to vector<2x32xf32>
    %387 = math.tanh %386 : vector<2x32xf32>
    %388 = vector.extract_strided_slice %373 {offsets = [0, 96], sizes = [2, 32], strides = [1, 1]} : vector<2x128xf32> to vector<2x32xf32>
    %389 = arith.negf %388 : vector<2x32xf32>
    %390 = math.exp %389 : vector<2x32xf32>
    %cst_70 = arith.constant 1.000000e+00 : f32
    %391 = vector.broadcast %cst_70 : f32 to vector<2x32xf32>
    %392 = arith.addf %391, %390 : vector<2x32xf32>
    %393 = arith.divf %391, %392 : vector<2x32xf32>
    %394 = arith.mulf %385, %368 : vector<2x32xf32>
    %395 = arith.mulf %379, %387 : vector<2x32xf32>
    %396 = arith.addf %394, %395 : vector<2x32xf32>
    %397 = math.tanh %396 : vector<2x32xf32>
    %398 = arith.mulf %393, %397 : vector<2x32xf32>
    %399 = vector.extract_strided_slice %255 {offsets = [10, 0], sizes = [2, 128], strides = [1, 1]} : vector<16x128xf32> to vector<2x128xf32>
    %cst_71 = arith.constant dense<0.000000e+00> : vector<2x128xf32>
    %400 = tpu.matmul %398, %256, %cst_71 {dimension_numbers = #tpu.dot_dimension_numbers<[1], [0], [0], [1], [0, 0, 1, 1], [], []>} : vector<2x32xf32>, vector<32x128xf32>, vector<2x128xf32> -> vector<2x128xf32>
    %401 = arith.addf %399, %400 : vector<2x128xf32>
    %402 = vector.extract_strided_slice %401 {offsets = [0, 0], sizes = [2, 32], strides = [1, 1]} : vector<2x128xf32> to vector<2x32xf32>
    %403 = arith.negf %402 : vector<2x32xf32>
    %404 = math.exp %403 : vector<2x32xf32>
    %cst_72 = arith.constant 1.000000e+00 : f32
    %405 = vector.broadcast %cst_72 : f32 to vector<2x32xf32>
    %406 = arith.addf %405, %404 : vector<2x32xf32>
    %407 = arith.divf %405, %406 : vector<2x32xf32>
    %408 = vector.extract_strided_slice %401 {offsets = [0, 32], sizes = [2, 32], strides = [1, 1]} : vector<2x128xf32> to vector<2x32xf32>
    %409 = arith.negf %408 : vector<2x32xf32>
    %410 = math.exp %409 : vector<2x32xf32>
    %cst_73 = arith.constant 1.000000e+00 : f32
    %411 = vector.broadcast %cst_73 : f32 to vector<2x32xf32>
    %412 = arith.addf %411, %410 : vector<2x32xf32>
    %413 = arith.divf %411, %412 : vector<2x32xf32>
    %414 = vector.extract_strided_slice %401 {offsets = [0, 64], sizes = [2, 32], strides = [1, 1]} : vector<2x128xf32> to vector<2x32xf32>
    %415 = math.tanh %414 : vector<2x32xf32>
    %416 = vector.extract_strided_slice %401 {offsets = [0, 96], sizes = [2, 32], strides = [1, 1]} : vector<2x128xf32> to vector<2x32xf32>
    %417 = arith.negf %416 : vector<2x32xf32>
    %418 = math.exp %417 : vector<2x32xf32>
    %cst_74 = arith.constant 1.000000e+00 : f32
    %419 = vector.broadcast %cst_74 : f32 to vector<2x32xf32>
    %420 = arith.addf %419, %418 : vector<2x32xf32>
    %421 = arith.divf %419, %420 : vector<2x32xf32>
    %422 = arith.mulf %413, %396 : vector<2x32xf32>
    %423 = arith.mulf %407, %415 : vector<2x32xf32>
    %424 = arith.addf %422, %423 : vector<2x32xf32>
    %425 = math.tanh %424 : vector<2x32xf32>
    %426 = arith.mulf %421, %425 : vector<2x32xf32>
    %427 = vector.extract_strided_slice %255 {offsets = [12, 0], sizes = [2, 128], strides = [1, 1]} : vector<16x128xf32> to vector<2x128xf32>
    %cst_75 = arith.constant dense<0.000000e+00> : vector<2x128xf32>
    %428 = tpu.matmul %426, %256, %cst_75 {dimension_numbers = #tpu.dot_dimension_numbers<[1], [0], [0], [1], [0, 0, 1, 1], [], []>} : vector<2x32xf32>, vector<32x128xf32>, vector<2x128xf32> -> vector<2x128xf32>
    %429 = arith.addf %427, %428 : vector<2x128xf32>
    %430 = vector.extract_strided_slice %429 {offsets = [0, 0], sizes = [2, 32], strides = [1, 1]} : vector<2x128xf32> to vector<2x32xf32>
    %431 = arith.negf %430 : vector<2x32xf32>
    %432 = math.exp %431 : vector<2x32xf32>
    %cst_76 = arith.constant 1.000000e+00 : f32
    %433 = vector.broadcast %cst_76 : f32 to vector<2x32xf32>
    %434 = arith.addf %433, %432 : vector<2x32xf32>
    %435 = arith.divf %433, %434 : vector<2x32xf32>
    %436 = vector.extract_strided_slice %429 {offsets = [0, 32], sizes = [2, 32], strides = [1, 1]} : vector<2x128xf32> to vector<2x32xf32>
    %437 = arith.negf %436 : vector<2x32xf32>
    %438 = math.exp %437 : vector<2x32xf32>
    %cst_77 = arith.constant 1.000000e+00 : f32
    %439 = vector.broadcast %cst_77 : f32 to vector<2x32xf32>
    %440 = arith.addf %439, %438 : vector<2x32xf32>
    %441 = arith.divf %439, %440 : vector<2x32xf32>
    %442 = vector.extract_strided_slice %429 {offsets = [0, 64], sizes = [2, 32], strides = [1, 1]} : vector<2x128xf32> to vector<2x32xf32>
    %443 = math.tanh %442 : vector<2x32xf32>
    %444 = vector.extract_strided_slice %429 {offsets = [0, 96], sizes = [2, 32], strides = [1, 1]} : vector<2x128xf32> to vector<2x32xf32>
    %445 = arith.negf %444 : vector<2x32xf32>
    %446 = math.exp %445 : vector<2x32xf32>
    %cst_78 = arith.constant 1.000000e+00 : f32
    %447 = vector.broadcast %cst_78 : f32 to vector<2x32xf32>
    %448 = arith.addf %447, %446 : vector<2x32xf32>
    %449 = arith.divf %447, %448 : vector<2x32xf32>
    %450 = arith.mulf %441, %424 : vector<2x32xf32>
    %451 = arith.mulf %435, %443 : vector<2x32xf32>
    %452 = arith.addf %450, %451 : vector<2x32xf32>
    %453 = math.tanh %452 : vector<2x32xf32>
    %454 = arith.mulf %449, %453 : vector<2x32xf32>
    %455 = vector.extract_strided_slice %255 {offsets = [14, 0], sizes = [2, 128], strides = [1, 1]} : vector<16x128xf32> to vector<2x128xf32>
    %cst_79 = arith.constant dense<0.000000e+00> : vector<2x128xf32>
    %456 = tpu.matmul %454, %256, %cst_79 {dimension_numbers = #tpu.dot_dimension_numbers<[1], [0], [0], [1], [0, 0, 1, 1], [], []>} : vector<2x32xf32>, vector<32x128xf32>, vector<2x128xf32> -> vector<2x128xf32>
    %457 = arith.addf %455, %456 : vector<2x128xf32>
    %458 = vector.extract_strided_slice %457 {offsets = [0, 0], sizes = [2, 32], strides = [1, 1]} : vector<2x128xf32> to vector<2x32xf32>
    %459 = arith.negf %458 : vector<2x32xf32>
    %460 = math.exp %459 : vector<2x32xf32>
    %cst_80 = arith.constant 1.000000e+00 : f32
    %461 = vector.broadcast %cst_80 : f32 to vector<2x32xf32>
    %462 = arith.addf %461, %460 : vector<2x32xf32>
    %463 = arith.divf %461, %462 : vector<2x32xf32>
    %464 = vector.extract_strided_slice %457 {offsets = [0, 32], sizes = [2, 32], strides = [1, 1]} : vector<2x128xf32> to vector<2x32xf32>
    %465 = arith.negf %464 : vector<2x32xf32>
    %466 = math.exp %465 : vector<2x32xf32>
    %cst_81 = arith.constant 1.000000e+00 : f32
    %467 = vector.broadcast %cst_81 : f32 to vector<2x32xf32>
    %468 = arith.addf %467, %466 : vector<2x32xf32>
    %469 = arith.divf %467, %468 : vector<2x32xf32>
    %470 = vector.extract_strided_slice %457 {offsets = [0, 64], sizes = [2, 32], strides = [1, 1]} : vector<2x128xf32> to vector<2x32xf32>
    %471 = math.tanh %470 : vector<2x32xf32>
    %472 = vector.extract_strided_slice %457 {offsets = [0, 96], sizes = [2, 32], strides = [1, 1]} : vector<2x128xf32> to vector<2x32xf32>
    %473 = arith.negf %472 : vector<2x32xf32>
    %474 = math.exp %473 : vector<2x32xf32>
    %cst_82 = arith.constant 1.000000e+00 : f32
    %475 = vector.broadcast %cst_82 : f32 to vector<2x32xf32>
    %476 = arith.addf %475, %474 : vector<2x32xf32>
    %477 = arith.divf %475, %476 : vector<2x32xf32>
    %478 = arith.mulf %469, %452 : vector<2x32xf32>
    %479 = arith.mulf %463, %471 : vector<2x32xf32>
    %480 = arith.addf %478, %479 : vector<2x32xf32>
    %481 = math.tanh %480 : vector<2x32xf32>
    %482 = arith.mulf %477, %481 : vector<2x32xf32>
    %483 = tpu.concatenate %286, %314, %342, %370, %398, %426, %454, %482 in 0 : vector<2x32xf32>, vector<2x32xf32>, vector<2x32xf32>, vector<2x32xf32>, vector<2x32xf32>, vector<2x32xf32>, vector<2x32xf32>, vector<2x32xf32> -> vector<16x32xf32>
    %c0_83 = arith.constant 0 : index
    %c0_84 = arith.constant 0 : index
    %484 = vector.load %arg7[%c0_83, %c0_84] : memref<32x64xf32, #tpu.memory_space<vmem>>, vector<32x64xf32>
    %cst_85 = arith.constant dense<0.000000e+00> : vector<16x64xf32>
    %485 = tpu.matmul %483, %484, %cst_85 {dimension_numbers = #tpu.dot_dimension_numbers<[1], [0], [0], [1], [0, 0, 1, 1], [], []>} : vector<16x32xf32>, vector<32x64xf32>, vector<16x64xf32> -> vector<16x64xf32>
    %c0_86 = arith.constant 0 : index
    %c0_87 = arith.constant 0 : index
    %486 = vector.load %arg9[%c0_86, %c0_87] : memref<1x64xf32, #tpu.memory_space<vmem>>, vector<1x64xf32>
    %487 = vector.broadcast %486 : vector<1x64xf32> to vector<16x64xf32>
    %488 = arith.addf %485, %487 : vector<16x64xf32>
    %c0_88 = arith.constant 0 : index
    %c0_89 = arith.constant 0 : index
    %489 = vector.load %arg8[%c0_88, %c0_89] : memref<16x64xf32, #tpu.memory_space<vmem>>, vector<16x64xf32>
    %cst_90 = arith.constant 0.000000e+00 : f32
    %490 = vector.broadcast %cst_90 : f32 to vector<2x16xf32>
    %cst_91 = arith.constant 0.000000e+00 : f32
    %491 = vector.broadcast %cst_91 : f32 to vector<2x16xf32>
    %492 = vector.extract_strided_slice %488 {offsets = [0, 0], sizes = [2, 64], strides = [1, 1]} : vector<16x64xf32> to vector<2x64xf32>
    %cst_92 = arith.constant dense<0.000000e+00> : vector<2x64xf32>
    %493 = tpu.matmul %490, %489, %cst_92 {dimension_numbers = #tpu.dot_dimension_numbers<[1], [0], [0], [1], [0, 0, 1, 1], [], []>} : vector<2x16xf32>, vector<16x64xf32>, vector<2x64xf32> -> vector<2x64xf32>
    %494 = arith.addf %492, %493 : vector<2x64xf32>
    %495 = vector.extract_strided_slice %494 {offsets = [0, 0], sizes = [2, 16], strides = [1, 1]} : vector<2x64xf32> to vector<2x16xf32>
    %496 = arith.negf %495 : vector<2x16xf32>
    %497 = math.exp %496 : vector<2x16xf32>
    %cst_93 = arith.constant 1.000000e+00 : f32
    %498 = vector.broadcast %cst_93 : f32 to vector<2x16xf32>
    %499 = arith.addf %498, %497 : vector<2x16xf32>
    %500 = arith.divf %498, %499 : vector<2x16xf32>
    %501 = vector.extract_strided_slice %494 {offsets = [0, 16], sizes = [2, 16], strides = [1, 1]} : vector<2x64xf32> to vector<2x16xf32>
    %502 = arith.negf %501 : vector<2x16xf32>
    %503 = math.exp %502 : vector<2x16xf32>
    %cst_94 = arith.constant 1.000000e+00 : f32
    %504 = vector.broadcast %cst_94 : f32 to vector<2x16xf32>
    %505 = arith.addf %504, %503 : vector<2x16xf32>
    %506 = arith.divf %504, %505 : vector<2x16xf32>
    %507 = vector.extract_strided_slice %494 {offsets = [0, 32], sizes = [2, 16], strides = [1, 1]} : vector<2x64xf32> to vector<2x16xf32>
    %508 = math.tanh %507 : vector<2x16xf32>
    %509 = vector.extract_strided_slice %494 {offsets = [0, 48], sizes = [2, 16], strides = [1, 1]} : vector<2x64xf32> to vector<2x16xf32>
    %510 = arith.negf %509 : vector<2x16xf32>
    %511 = math.exp %510 : vector<2x16xf32>
    %cst_95 = arith.constant 1.000000e+00 : f32
    %512 = vector.broadcast %cst_95 : f32 to vector<2x16xf32>
    %513 = arith.addf %512, %511 : vector<2x16xf32>
    %514 = arith.divf %512, %513 : vector<2x16xf32>
    %515 = arith.mulf %506, %491 : vector<2x16xf32>
    %516 = arith.mulf %500, %508 : vector<2x16xf32>
    %517 = arith.addf %515, %516 : vector<2x16xf32>
    %518 = math.tanh %517 : vector<2x16xf32>
    %519 = arith.mulf %514, %518 : vector<2x16xf32>
    %520 = vector.extract_strided_slice %488 {offsets = [2, 0], sizes = [2, 64], strides = [1, 1]} : vector<16x64xf32> to vector<2x64xf32>
    %cst_96 = arith.constant dense<0.000000e+00> : vector<2x64xf32>
    %521 = tpu.matmul %519, %489, %cst_96 {dimension_numbers = #tpu.dot_dimension_numbers<[1], [0], [0], [1], [0, 0, 1, 1], [], []>} : vector<2x16xf32>, vector<16x64xf32>, vector<2x64xf32> -> vector<2x64xf32>
    %522 = arith.addf %520, %521 : vector<2x64xf32>
    %523 = vector.extract_strided_slice %522 {offsets = [0, 0], sizes = [2, 16], strides = [1, 1]} : vector<2x64xf32> to vector<2x16xf32>
    %524 = arith.negf %523 : vector<2x16xf32>
    %525 = math.exp %524 : vector<2x16xf32>
    %cst_97 = arith.constant 1.000000e+00 : f32
    %526 = vector.broadcast %cst_97 : f32 to vector<2x16xf32>
    %527 = arith.addf %526, %525 : vector<2x16xf32>
    %528 = arith.divf %526, %527 : vector<2x16xf32>
    %529 = vector.extract_strided_slice %522 {offsets = [0, 16], sizes = [2, 16], strides = [1, 1]} : vector<2x64xf32> to vector<2x16xf32>
    %530 = arith.negf %529 : vector<2x16xf32>
    %531 = math.exp %530 : vector<2x16xf32>
    %cst_98 = arith.constant 1.000000e+00 : f32
    %532 = vector.broadcast %cst_98 : f32 to vector<2x16xf32>
    %533 = arith.addf %532, %531 : vector<2x16xf32>
    %534 = arith.divf %532, %533 : vector<2x16xf32>
    %535 = vector.extract_strided_slice %522 {offsets = [0, 32], sizes = [2, 16], strides = [1, 1]} : vector<2x64xf32> to vector<2x16xf32>
    %536 = math.tanh %535 : vector<2x16xf32>
    %537 = vector.extract_strided_slice %522 {offsets = [0, 48], sizes = [2, 16], strides = [1, 1]} : vector<2x64xf32> to vector<2x16xf32>
    %538 = arith.negf %537 : vector<2x16xf32>
    %539 = math.exp %538 : vector<2x16xf32>
    %cst_99 = arith.constant 1.000000e+00 : f32
    %540 = vector.broadcast %cst_99 : f32 to vector<2x16xf32>
    %541 = arith.addf %540, %539 : vector<2x16xf32>
    %542 = arith.divf %540, %541 : vector<2x16xf32>
    %543 = arith.mulf %534, %517 : vector<2x16xf32>
    %544 = arith.mulf %528, %536 : vector<2x16xf32>
    %545 = arith.addf %543, %544 : vector<2x16xf32>
    %546 = math.tanh %545 : vector<2x16xf32>
    %547 = arith.mulf %542, %546 : vector<2x16xf32>
    %548 = vector.extract_strided_slice %488 {offsets = [4, 0], sizes = [2, 64], strides = [1, 1]} : vector<16x64xf32> to vector<2x64xf32>
    %cst_100 = arith.constant dense<0.000000e+00> : vector<2x64xf32>
    %549 = tpu.matmul %547, %489, %cst_100 {dimension_numbers = #tpu.dot_dimension_numbers<[1], [0], [0], [1], [0, 0, 1, 1], [], []>} : vector<2x16xf32>, vector<16x64xf32>, vector<2x64xf32> -> vector<2x64xf32>
    %550 = arith.addf %548, %549 : vector<2x64xf32>
    %551 = vector.extract_strided_slice %550 {offsets = [0, 0], sizes = [2, 16], strides = [1, 1]} : vector<2x64xf32> to vector<2x16xf32>
    %552 = arith.negf %551 : vector<2x16xf32>
    %553 = math.exp %552 : vector<2x16xf32>
    %cst_101 = arith.constant 1.000000e+00 : f32
    %554 = vector.broadcast %cst_101 : f32 to vector<2x16xf32>
    %555 = arith.addf %554, %553 : vector<2x16xf32>
    %556 = arith.divf %554, %555 : vector<2x16xf32>
    %557 = vector.extract_strided_slice %550 {offsets = [0, 16], sizes = [2, 16], strides = [1, 1]} : vector<2x64xf32> to vector<2x16xf32>
    %558 = arith.negf %557 : vector<2x16xf32>
    %559 = math.exp %558 : vector<2x16xf32>
    %cst_102 = arith.constant 1.000000e+00 : f32
    %560 = vector.broadcast %cst_102 : f32 to vector<2x16xf32>
    %561 = arith.addf %560, %559 : vector<2x16xf32>
    %562 = arith.divf %560, %561 : vector<2x16xf32>
    %563 = vector.extract_strided_slice %550 {offsets = [0, 32], sizes = [2, 16], strides = [1, 1]} : vector<2x64xf32> to vector<2x16xf32>
    %564 = math.tanh %563 : vector<2x16xf32>
    %565 = vector.extract_strided_slice %550 {offsets = [0, 48], sizes = [2, 16], strides = [1, 1]} : vector<2x64xf32> to vector<2x16xf32>
    %566 = arith.negf %565 : vector<2x16xf32>
    %567 = math.exp %566 : vector<2x16xf32>
    %cst_103 = arith.constant 1.000000e+00 : f32
    %568 = vector.broadcast %cst_103 : f32 to vector<2x16xf32>
    %569 = arith.addf %568, %567 : vector<2x16xf32>
    %570 = arith.divf %568, %569 : vector<2x16xf32>
    %571 = arith.mulf %562, %545 : vector<2x16xf32>
    %572 = arith.mulf %556, %564 : vector<2x16xf32>
    %573 = arith.addf %571, %572 : vector<2x16xf32>
    %574 = math.tanh %573 : vector<2x16xf32>
    %575 = arith.mulf %570, %574 : vector<2x16xf32>
    %576 = vector.extract_strided_slice %488 {offsets = [6, 0], sizes = [2, 64], strides = [1, 1]} : vector<16x64xf32> to vector<2x64xf32>
    %cst_104 = arith.constant dense<0.000000e+00> : vector<2x64xf32>
    %577 = tpu.matmul %575, %489, %cst_104 {dimension_numbers = #tpu.dot_dimension_numbers<[1], [0], [0], [1], [0, 0, 1, 1], [], []>} : vector<2x16xf32>, vector<16x64xf32>, vector<2x64xf32> -> vector<2x64xf32>
    %578 = arith.addf %576, %577 : vector<2x64xf32>
    %579 = vector.extract_strided_slice %578 {offsets = [0, 0], sizes = [2, 16], strides = [1, 1]} : vector<2x64xf32> to vector<2x16xf32>
    %580 = arith.negf %579 : vector<2x16xf32>
    %581 = math.exp %580 : vector<2x16xf32>
    %cst_105 = arith.constant 1.000000e+00 : f32
    %582 = vector.broadcast %cst_105 : f32 to vector<2x16xf32>
    %583 = arith.addf %582, %581 : vector<2x16xf32>
    %584 = arith.divf %582, %583 : vector<2x16xf32>
    %585 = vector.extract_strided_slice %578 {offsets = [0, 16], sizes = [2, 16], strides = [1, 1]} : vector<2x64xf32> to vector<2x16xf32>
    %586 = arith.negf %585 : vector<2x16xf32>
    %587 = math.exp %586 : vector<2x16xf32>
    %cst_106 = arith.constant 1.000000e+00 : f32
    %588 = vector.broadcast %cst_106 : f32 to vector<2x16xf32>
    %589 = arith.addf %588, %587 : vector<2x16xf32>
    %590 = arith.divf %588, %589 : vector<2x16xf32>
    %591 = vector.extract_strided_slice %578 {offsets = [0, 32], sizes = [2, 16], strides = [1, 1]} : vector<2x64xf32> to vector<2x16xf32>
    %592 = math.tanh %591 : vector<2x16xf32>
    %593 = vector.extract_strided_slice %578 {offsets = [0, 48], sizes = [2, 16], strides = [1, 1]} : vector<2x64xf32> to vector<2x16xf32>
    %594 = arith.negf %593 : vector<2x16xf32>
    %595 = math.exp %594 : vector<2x16xf32>
    %cst_107 = arith.constant 1.000000e+00 : f32
    %596 = vector.broadcast %cst_107 : f32 to vector<2x16xf32>
    %597 = arith.addf %596, %595 : vector<2x16xf32>
    %598 = arith.divf %596, %597 : vector<2x16xf32>
    %599 = arith.mulf %590, %573 : vector<2x16xf32>
    %600 = arith.mulf %584, %592 : vector<2x16xf32>
    %601 = arith.addf %599, %600 : vector<2x16xf32>
    %602 = math.tanh %601 : vector<2x16xf32>
    %603 = arith.mulf %598, %602 : vector<2x16xf32>
    %604 = vector.extract_strided_slice %488 {offsets = [8, 0], sizes = [2, 64], strides = [1, 1]} : vector<16x64xf32> to vector<2x64xf32>
    %cst_108 = arith.constant dense<0.000000e+00> : vector<2x64xf32>
    %605 = tpu.matmul %603, %489, %cst_108 {dimension_numbers = #tpu.dot_dimension_numbers<[1], [0], [0], [1], [0, 0, 1, 1], [], []>} : vector<2x16xf32>, vector<16x64xf32>, vector<2x64xf32> -> vector<2x64xf32>
    %606 = arith.addf %604, %605 : vector<2x64xf32>
    %607 = vector.extract_strided_slice %606 {offsets = [0, 0], sizes = [2, 16], strides = [1, 1]} : vector<2x64xf32> to vector<2x16xf32>
    %608 = arith.negf %607 : vector<2x16xf32>
    %609 = math.exp %608 : vector<2x16xf32>
    %cst_109 = arith.constant 1.000000e+00 : f32
    %610 = vector.broadcast %cst_109 : f32 to vector<2x16xf32>
    %611 = arith.addf %610, %609 : vector<2x16xf32>
    %612 = arith.divf %610, %611 : vector<2x16xf32>
    %613 = vector.extract_strided_slice %606 {offsets = [0, 16], sizes = [2, 16], strides = [1, 1]} : vector<2x64xf32> to vector<2x16xf32>
    %614 = arith.negf %613 : vector<2x16xf32>
    %615 = math.exp %614 : vector<2x16xf32>
    %cst_110 = arith.constant 1.000000e+00 : f32
    %616 = vector.broadcast %cst_110 : f32 to vector<2x16xf32>
    %617 = arith.addf %616, %615 : vector<2x16xf32>
    %618 = arith.divf %616, %617 : vector<2x16xf32>
    %619 = vector.extract_strided_slice %606 {offsets = [0, 32], sizes = [2, 16], strides = [1, 1]} : vector<2x64xf32> to vector<2x16xf32>
    %620 = math.tanh %619 : vector<2x16xf32>
    %621 = vector.extract_strided_slice %606 {offsets = [0, 48], sizes = [2, 16], strides = [1, 1]} : vector<2x64xf32> to vector<2x16xf32>
    %622 = arith.negf %621 : vector<2x16xf32>
    %623 = math.exp %622 : vector<2x16xf32>
    %cst_111 = arith.constant 1.000000e+00 : f32
    %624 = vector.broadcast %cst_111 : f32 to vector<2x16xf32>
    %625 = arith.addf %624, %623 : vector<2x16xf32>
    %626 = arith.divf %624, %625 : vector<2x16xf32>
    %627 = arith.mulf %618, %601 : vector<2x16xf32>
    %628 = arith.mulf %612, %620 : vector<2x16xf32>
    %629 = arith.addf %627, %628 : vector<2x16xf32>
    %630 = math.tanh %629 : vector<2x16xf32>
    %631 = arith.mulf %626, %630 : vector<2x16xf32>
    %632 = vector.extract_strided_slice %488 {offsets = [10, 0], sizes = [2, 64], strides = [1, 1]} : vector<16x64xf32> to vector<2x64xf32>
    %cst_112 = arith.constant dense<0.000000e+00> : vector<2x64xf32>
    %633 = tpu.matmul %631, %489, %cst_112 {dimension_numbers = #tpu.dot_dimension_numbers<[1], [0], [0], [1], [0, 0, 1, 1], [], []>} : vector<2x16xf32>, vector<16x64xf32>, vector<2x64xf32> -> vector<2x64xf32>
    %634 = arith.addf %632, %633 : vector<2x64xf32>
    %635 = vector.extract_strided_slice %634 {offsets = [0, 0], sizes = [2, 16], strides = [1, 1]} : vector<2x64xf32> to vector<2x16xf32>
    %636 = arith.negf %635 : vector<2x16xf32>
    %637 = math.exp %636 : vector<2x16xf32>
    %cst_113 = arith.constant 1.000000e+00 : f32
    %638 = vector.broadcast %cst_113 : f32 to vector<2x16xf32>
    %639 = arith.addf %638, %637 : vector<2x16xf32>
    %640 = arith.divf %638, %639 : vector<2x16xf32>
    %641 = vector.extract_strided_slice %634 {offsets = [0, 16], sizes = [2, 16], strides = [1, 1]} : vector<2x64xf32> to vector<2x16xf32>
    %642 = arith.negf %641 : vector<2x16xf32>
    %643 = math.exp %642 : vector<2x16xf32>
    %cst_114 = arith.constant 1.000000e+00 : f32
    %644 = vector.broadcast %cst_114 : f32 to vector<2x16xf32>
    %645 = arith.addf %644, %643 : vector<2x16xf32>
    %646 = arith.divf %644, %645 : vector<2x16xf32>
    %647 = vector.extract_strided_slice %634 {offsets = [0, 32], sizes = [2, 16], strides = [1, 1]} : vector<2x64xf32> to vector<2x16xf32>
    %648 = math.tanh %647 : vector<2x16xf32>
    %649 = vector.extract_strided_slice %634 {offsets = [0, 48], sizes = [2, 16], strides = [1, 1]} : vector<2x64xf32> to vector<2x16xf32>
    %650 = arith.negf %649 : vector<2x16xf32>
    %651 = math.exp %650 : vector<2x16xf32>
    %cst_115 = arith.constant 1.000000e+00 : f32
    %652 = vector.broadcast %cst_115 : f32 to vector<2x16xf32>
    %653 = arith.addf %652, %651 : vector<2x16xf32>
    %654 = arith.divf %652, %653 : vector<2x16xf32>
    %655 = arith.mulf %646, %629 : vector<2x16xf32>
    %656 = arith.mulf %640, %648 : vector<2x16xf32>
    %657 = arith.addf %655, %656 : vector<2x16xf32>
    %658 = math.tanh %657 : vector<2x16xf32>
    %659 = arith.mulf %654, %658 : vector<2x16xf32>
    %660 = vector.extract_strided_slice %488 {offsets = [12, 0], sizes = [2, 64], strides = [1, 1]} : vector<16x64xf32> to vector<2x64xf32>
    %cst_116 = arith.constant dense<0.000000e+00> : vector<2x64xf32>
    %661 = tpu.matmul %659, %489, %cst_116 {dimension_numbers = #tpu.dot_dimension_numbers<[1], [0], [0], [1], [0, 0, 1, 1], [], []>} : vector<2x16xf32>, vector<16x64xf32>, vector<2x64xf32> -> vector<2x64xf32>
    %662 = arith.addf %660, %661 : vector<2x64xf32>
    %663 = vector.extract_strided_slice %662 {offsets = [0, 0], sizes = [2, 16], strides = [1, 1]} : vector<2x64xf32> to vector<2x16xf32>
    %664 = arith.negf %663 : vector<2x16xf32>
    %665 = math.exp %664 : vector<2x16xf32>
    %cst_117 = arith.constant 1.000000e+00 : f32
    %666 = vector.broadcast %cst_117 : f32 to vector<2x16xf32>
    %667 = arith.addf %666, %665 : vector<2x16xf32>
    %668 = arith.divf %666, %667 : vector<2x16xf32>
    %669 = vector.extract_strided_slice %662 {offsets = [0, 16], sizes = [2, 16], strides = [1, 1]} : vector<2x64xf32> to vector<2x16xf32>
    %670 = arith.negf %669 : vector<2x16xf32>
    %671 = math.exp %670 : vector<2x16xf32>
    %cst_118 = arith.constant 1.000000e+00 : f32
    %672 = vector.broadcast %cst_118 : f32 to vector<2x16xf32>
    %673 = arith.addf %672, %671 : vector<2x16xf32>
    %674 = arith.divf %672, %673 : vector<2x16xf32>
    %675 = vector.extract_strided_slice %662 {offsets = [0, 32], sizes = [2, 16], strides = [1, 1]} : vector<2x64xf32> to vector<2x16xf32>
    %676 = math.tanh %675 : vector<2x16xf32>
    %677 = vector.extract_strided_slice %662 {offsets = [0, 48], sizes = [2, 16], strides = [1, 1]} : vector<2x64xf32> to vector<2x16xf32>
    %678 = arith.negf %677 : vector<2x16xf32>
    %679 = math.exp %678 : vector<2x16xf32>
    %cst_119 = arith.constant 1.000000e+00 : f32
    %680 = vector.broadcast %cst_119 : f32 to vector<2x16xf32>
    %681 = arith.addf %680, %679 : vector<2x16xf32>
    %682 = arith.divf %680, %681 : vector<2x16xf32>
    %683 = arith.mulf %674, %657 : vector<2x16xf32>
    %684 = arith.mulf %668, %676 : vector<2x16xf32>
    %685 = arith.addf %683, %684 : vector<2x16xf32>
    %686 = math.tanh %685 : vector<2x16xf32>
    %687 = arith.mulf %682, %686 : vector<2x16xf32>
    %688 = vector.extract_strided_slice %488 {offsets = [14, 0], sizes = [2, 64], strides = [1, 1]} : vector<16x64xf32> to vector<2x64xf32>
    %cst_120 = arith.constant dense<0.000000e+00> : vector<2x64xf32>
    %689 = tpu.matmul %687, %489, %cst_120 {dimension_numbers = #tpu.dot_dimension_numbers<[1], [0], [0], [1], [0, 0, 1, 1], [], []>} : vector<2x16xf32>, vector<16x64xf32>, vector<2x64xf32> -> vector<2x64xf32>
    %690 = arith.addf %688, %689 : vector<2x64xf32>
    %691 = vector.extract_strided_slice %690 {offsets = [0, 0], sizes = [2, 16], strides = [1, 1]} : vector<2x64xf32> to vector<2x16xf32>
    %692 = arith.negf %691 : vector<2x16xf32>
    %693 = math.exp %692 : vector<2x16xf32>
    %cst_121 = arith.constant 1.000000e+00 : f32
    %694 = vector.broadcast %cst_121 : f32 to vector<2x16xf32>
    %695 = arith.addf %694, %693 : vector<2x16xf32>
    %696 = arith.divf %694, %695 : vector<2x16xf32>
    %697 = vector.extract_strided_slice %690 {offsets = [0, 16], sizes = [2, 16], strides = [1, 1]} : vector<2x64xf32> to vector<2x16xf32>
    %698 = arith.negf %697 : vector<2x16xf32>
    %699 = math.exp %698 : vector<2x16xf32>
    %cst_122 = arith.constant 1.000000e+00 : f32
    %700 = vector.broadcast %cst_122 : f32 to vector<2x16xf32>
    %701 = arith.addf %700, %699 : vector<2x16xf32>
    %702 = arith.divf %700, %701 : vector<2x16xf32>
    %703 = vector.extract_strided_slice %690 {offsets = [0, 32], sizes = [2, 16], strides = [1, 1]} : vector<2x64xf32> to vector<2x16xf32>
    %704 = math.tanh %703 : vector<2x16xf32>
    %705 = vector.extract_strided_slice %690 {offsets = [0, 48], sizes = [2, 16], strides = [1, 1]} : vector<2x64xf32> to vector<2x16xf32>
    %706 = arith.negf %705 : vector<2x16xf32>
    %707 = math.exp %706 : vector<2x16xf32>
    %cst_123 = arith.constant 1.000000e+00 : f32
    %708 = vector.broadcast %cst_123 : f32 to vector<2x16xf32>
    %709 = arith.addf %708, %707 : vector<2x16xf32>
    %710 = arith.divf %708, %709 : vector<2x16xf32>
    %711 = arith.mulf %702, %685 : vector<2x16xf32>
    %712 = arith.mulf %696, %704 : vector<2x16xf32>
    %713 = arith.addf %711, %712 : vector<2x16xf32>
    %714 = math.tanh %713 : vector<2x16xf32>
    %715 = arith.mulf %710, %714 : vector<2x16xf32>
    %716 = tpu.concatenate %519, %547, %575, %603, %631, %659, %687, %715 in 0 : vector<2x16xf32>, vector<2x16xf32>, vector<2x16xf32>, vector<2x16xf32>, vector<2x16xf32>, vector<2x16xf32>, vector<2x16xf32>, vector<2x16xf32> -> vector<16x16xf32>
    %717 = vector.extract_strided_slice %716 {offsets = [1, 0], sizes = [1, 16], strides = [1, 1]} : vector<16x16xf32> to vector<1x16xf32>
    %718 = vector.extract_strided_slice %716 {offsets = [3, 0], sizes = [1, 16], strides = [1, 1]} : vector<16x16xf32> to vector<1x16xf32>
    %719 = vector.extract_strided_slice %716 {offsets = [5, 0], sizes = [1, 16], strides = [1, 1]} : vector<16x16xf32> to vector<1x16xf32>
    %720 = vector.extract_strided_slice %716 {offsets = [7, 0], sizes = [1, 16], strides = [1, 1]} : vector<16x16xf32> to vector<1x16xf32>
    %721 = vector.extract_strided_slice %716 {offsets = [9, 0], sizes = [1, 16], strides = [1, 1]} : vector<16x16xf32> to vector<1x16xf32>
    %722 = vector.extract_strided_slice %716 {offsets = [11, 0], sizes = [1, 16], strides = [1, 1]} : vector<16x16xf32> to vector<1x16xf32>
    %723 = vector.extract_strided_slice %716 {offsets = [13, 0], sizes = [1, 16], strides = [1, 1]} : vector<16x16xf32> to vector<1x16xf32>
    %724 = vector.extract_strided_slice %716 {offsets = [15, 0], sizes = [1, 16], strides = [1, 1]} : vector<16x16xf32> to vector<1x16xf32>
    %725 = tpu.concatenate %717, %718, %719, %720, %721, %722, %723, %724 in 0 : vector<1x16xf32>, vector<1x16xf32>, vector<1x16xf32>, vector<1x16xf32>, vector<1x16xf32>, vector<1x16xf32>, vector<1x16xf32>, vector<1x16xf32> -> vector<8x16xf32>
    %c0_124 = arith.constant 0 : index
    %c0_125 = arith.constant 0 : index
    %726 = vector.load %arg10[%c0_124, %c0_125] : memref<16x1xf32, #tpu.memory_space<vmem>>, vector<16x1xf32>
    %cst_126 = arith.constant dense<0.000000e+00> : vector<8x1xf32>
    %727 = tpu.matmul %725, %726, %cst_126 {dimension_numbers = #tpu.dot_dimension_numbers<[1], [0], [0], [1], [0, 0, 1, 1], [], []>} : vector<8x16xf32>, vector<16x1xf32>, vector<8x1xf32> -> vector<8x1xf32>
    %c0_127 = arith.constant 0 : index
    %c0_128 = arith.constant 0 : index
    %728 = vector.load %arg11[%c0_127, %c0_128] : memref<1x1xf32, #tpu.memory_space<vmem>>, vector<1x1xf32>
    %729 = vector.broadcast %728 : vector<1x1xf32> to vector<8x1xf32>
    %730 = arith.addf %727, %729 : vector<8x1xf32>
    %c0_129 = arith.constant 0 : index
    %c0_130 = arith.constant 0 : index
    %731 = vector.load %arg12[%c0_129, %c0_130] : memref<8x1xf32, #tpu.memory_space<vmem>>, vector<8x1xf32>
    tpu.vector_store %arg12[%c0_129, %c0_130], %730 {strides = array<i32>} : memref<8x1xf32, #tpu.memory_space<vmem>>, vector<8x1xf32>,
    return
  }
}

</mosaic_0001>

<llo_original>
// kernel: param_lstm_forward.1
$region0: #{param_lstm_forward.1}
  #allocation0 [shape = 'u32[]', space=smem, size = 0x4, offset = 0x4, fixed_abs, tag = 'smem constant byte address 0x4 - core index']
  #allocation1 [shape = 'u32[144,128]{1,0:T(1,128)}', space=vmem, size = 0x12000, scoped, tag = 'internal scratch']
  #allocation2 [shape = 'f32[1,1]{1,0:T(1,128)S(1)}', space=vmem, size = 0x200, scoped, tag = 'scoped memory for param_lstm_forward.1']
  %s0 = inlined_call_operand.vmem [shape: f32[2,8,128], index: 0, kind: input, shape index: {}]
  %s1 = inlined_call_operand.hbm [shape: f32[128,256], index: 1, kind: input, shape index: {}]
  %s2 = inlined_call_operand.hbm [shape: f32[64,256], index: 2, kind: input, shape index: {}]
  %s3 = inlined_call_operand.hbm [shape: f32[1,256], index: 3, kind: input, shape index: {}]
  %s4 = inlined_call_operand.hbm [shape: f32[64,128], index: 4, kind: input, shape index: {}]
  %s5 = inlined_call_operand.hbm [shape: f32[32,128], index: 5, kind: input, shape index: {}]
  %s6 = inlined_call_operand.vmem [shape: f32[1,128], index: 6, kind: input, shape index: {}]
  %s7 = inlined_call_operand.hbm [shape: f32[32,64], index: 7, kind: input, shape index: {}]
  %s8 = inlined_call_operand.vmem [shape: f32[16,64], index: 8, kind: input, shape index: {}]
  %s9 = inlined_call_operand.vmem [shape: f32[1,64], index: 9, kind: input, shape index: {}]
  %s10 = inlined_call_operand.vmem [shape: f32[16,1], index: 10, kind: input, shape index: {}]
  %s11 = inlined_call_operand.<no memory space> [shape: f32[1,1], index: 11, kind: input, shape index: {}]
  %s12 = inlined_call_operand.vmem [shape: f32[8,1], index: 12, kind: output, shape index: {}]
  %s13 = sld [smem:[#allocation0]]
  $region82: #{param_lstm_forward.1} parent=0
    _
  %s15 = ssub.s32 1, %s13
  %s16 = scalar_select 0, %s15, %s13
  %v17 = vstv %s11
  %18 = vst [vmem:[#allocation2] sm:$0x1] %v17
  $region1: #{param_lstm_forward.1} parent=0
    #allocation3 [shape = 'u8[131072]{0}', space=vmem, size = 0x20000, scoped, tag = 'input window, operand 1, single buffered']
    #allocation4 [shape = 's32[1]{0}', space=sflag, size = 0x4, scoped, tag = 'scoped memory for param_lstm_forward.1']
    #allocation5 [shape = 'u8[65536]{0}', space=vmem, size = 0x10000, scoped, tag = 'input window, operand 2, single buffered']
    #allocation6 [shape = 's32[1]{0}', space=sflag, size = 0x4, scoped, tag = 'scoped memory for param_lstm_forward.1']
    #allocation7 [shape = 'u8[1024]{0}', space=vmem, size = 0x400, scoped, tag = 'input window, operand 3, single buffered']
    #allocation8 [shape = 'u8[32768]{0}', space=vmem, size = 0x8000, scoped, tag = 'input window, operand 4, single buffered']
    #allocation9 [shape = 's32[1]{0}', space=sflag, size = 0x4, scoped, tag = 'scoped memory for param_lstm_forward.1']
    #allocation10 [shape = 'u8[16384]{0}', space=vmem, size = 0x4000, scoped, tag = 'input window, operand 5, single buffered']
    #allocation11 [shape = 'u8[16384]{0}', space=vmem, size = 0x4000, scoped, tag = 'input window, operand 7, single buffered']
    #allocation12 [shape = 's32[1]{0}', space=sflag, size = 0x4, scoped, tag = 'scoped memory for param_lstm_forward.1']
    %19 = vsyncpa [#allocation4], 0
    %20 = vsyncpa [#allocation6], 0
    %21 = vsyncpa [#allocation9], 0
    %22 = vsyncpa [#allocation12], 0
    // Predicated region
    $region2: #{param_lstm_forward.1} parent=1 // pred_check
      _
    $region3: #{param_lstm_forward.1} parent=1 // pred_check_branch
      %24 = sbr.rel (0) target = $region5
    $region4: #{param_lstm_forward.1} parent=1 // pred_region
      _
    $region5: #{param_lstm_forward.1} parent=1 // pred_fallthru
      _
    // Predicated region
    $region6: #{param_lstm_forward.1} parent=1 // pred_check
      _
    $region7: #{param_lstm_forward.1} parent=1 // pred_check_branch
      %26 = sbr.rel (0) target = $region9
    $region8: #{param_lstm_forward.1} parent=1 // pred_region
      %s28 = ssub.s32 4096, 4096
      %29 = vsyncadd [#allocation4], %s28
      %s30 = sshll.u32 [#allocation3], 4
      %s31 = int_to_ptr.vmem [resolvable:$true] %s30
      %36 = dma.hbm_to_vmem [thread:$0]  %s1, 4096, %s31, [#allocation4], 256, 256, 16
    $region9: #{param_lstm_forward.1} parent=1 // pred_fallthru
      _
    // Predicated region
    $region10: #{param_lstm_forward.1} parent=1 // pred_check
      _
    $region11: #{param_lstm_forward.1} parent=1 // pred_check_branch
      %38 = sbr.rel (0) target = $region13
    $region12: #{param_lstm_forward.1} parent=1 // pred_region
      %s40 = ssub.s32 2048, 2048
      %41 = vsyncadd [#allocation6], %s40
      %s42 = sshll.u32 [#allocation5], 4
      %s43 = int_to_ptr.vmem [resolvable:$true] %s42
      %48 = dma.hbm_to_vmem [thread:$0]  %s2, 2048, %s43, [#allocation6], 256, 256, 16
    $region13: #{param_lstm_forward.1} parent=1 // pred_fallthru
      _
    // Predicated region
    $region14: #{param_lstm_forward.1} parent=1 // pred_check
      _
    $region15: #{param_lstm_forward.1} parent=1 // pred_check_branch
      %50 = sbr.rel (0) target = $region17
    $region16: #{param_lstm_forward.1} parent=1 // pred_region
      %s52 = ssub.s32 32, 32
      %53 = vsyncadd [#allocation6], %s52
      %s55 = sshll.u32 [#allocation7], 4
      %s56 = int_to_ptr.vmem [resolvable:$true] %s55
      %58 = dma.hbm_to_vmem [thread:$0]  %s3, 32, %s56, [#allocation6]
    $region17: #{param_lstm_forward.1} parent=1 // pred_fallthru
      _
    // Predicated region
    $region18: #{param_lstm_forward.1} parent=1 // pred_check
      _
    $region19: #{param_lstm_forward.1} parent=1 // pred_check_branch
      %60 = sbr.rel (0) target = $region21
    $region20: #{param_lstm_forward.1} parent=1 // pred_region
      %s62 = ssub.s32 1024, 1024
      %63 = vsyncadd [#allocation9], %s62
      %s64 = sshll.u32 [#allocation8], 4
      %s65 = int_to_ptr.vmem [resolvable:$true] %s64
      %70 = dma.hbm_to_vmem [thread:$0]  %s4, 1024, %s65, [#allocation9], 128, 128, 8
    $region21: #{param_lstm_forward.1} parent=1 // pred_fallthru
      _
    // Predicated region
    $region22: #{param_lstm_forward.1} parent=1 // pred_check
      _
    $region23: #{param_lstm_forward.1} parent=1 // pred_check_branch
      %72 = sbr.rel (0) target = $region25
    $region24: #{param_lstm_forward.1} parent=1 // pred_region
      %s74 = ssub.s32 512, 512
      %75 = vsyncadd [#allocation9], %s74
      %s76 = sshll.u32 [#allocation10], 4
      %s77 = int_to_ptr.vmem [resolvable:$true] %s76
      %82 = dma.hbm_to_vmem [thread:$0]  %s5, 512, %s77, [#allocation9], 128, 128, 8
    $region25: #{param_lstm_forward.1} parent=1 // pred_fallthru
      _
    // Predicated region
    $region26: #{param_lstm_forward.1} parent=1 // pred_check
      _
    $region27: #{param_lstm_forward.1} parent=1 // pred_check_branch
      %84 = sbr.rel (0) target = $region29
    $region28: #{param_lstm_forward.1} parent=1 // pred_region
      _
    $region29: #{param_lstm_forward.1} parent=1 // pred_fallthru
      _
    // Predicated region
    $region30: #{param_lstm_forward.1} parent=1 // pred_check
      _
    $region31: #{param_lstm_forward.1} parent=1 // pred_check_branch
      %86 = sbr.rel (0) target = $region33
    $region32: #{param_lstm_forward.1} parent=1 // pred_region
      %s88 = ssub.s32 512, 512
      %89 = vsyncadd [#allocation12], %s88
      %s90 = sshll.u32 [#allocation11], 4
      %s91 = int_to_ptr.vmem [resolvable:$true] %s90
      %96 = dma.hbm_to_vmem [thread:$0]  %s7, 512, %s91, [#allocation12], 128, 128, 8
    $region33: #{param_lstm_forward.1} parent=1 // pred_fallthru
      _
    // Predicated region
    $region34: #{param_lstm_forward.1} parent=1 // pred_check
      _
    $region35: #{param_lstm_forward.1} parent=1 // pred_check_branch
      %98 = sbr.rel (0) target = $region37
    $region36: #{param_lstm_forward.1} parent=1 // pred_region
      _
    $region37: #{param_lstm_forward.1} parent=1 // pred_fallthru
      _
    // Predicated region
    $region38: #{param_lstm_forward.1} parent=1 // pred_check
      _
    $region39: #{param_lstm_forward.1} parent=1 // pred_check_branch
      %100 = sbr.rel (0) target = $region41
    $region40: #{param_lstm_forward.1} parent=1 // pred_region
      _
    $region41: #{param_lstm_forward.1} parent=1 // pred_fallthru
      _
    // Predicated region
    $region42: #{param_lstm_forward.1} parent=1 // pred_check
      _
    $region43: #{param_lstm_forward.1} parent=1 // pred_check_branch
      %102 = sbr.rel (0) target = $region45
    $region44: #{param_lstm_forward.1} parent=1 // pred_region
      _
    $region45: #{param_lstm_forward.1} parent=1 // pred_fallthru
      _
    // Predicated region
    $region46: #{param_lstm_forward.1} parent=1 // pred_check
      _
    $region47: #{param_lstm_forward.1} parent=1 // pred_check_branch
      %104 = sbr.rel (0) target = $region49
    $region48: #{param_lstm_forward.1} parent=1 // pred_region
      _
    $region49: #{param_lstm_forward.1} parent=1 // pred_fallthru
      _
    // Predicated region
    $region50: #{param_lstm_forward.1} parent=1 // pred_check
      _
    $region51: #{param_lstm_forward.1} parent=1 // pred_check_branch
      %106 = sbr.rel (0) target = $region53
    $region52: #{param_lstm_forward.1} parent=1 // pred_region
      %107 = dma.done [#allocation4], 4096
    $region53: #{param_lstm_forward.1} parent=1 // pred_fallthru
      _
    // Predicated region
    $region54: #{param_lstm_forward.1} parent=1 // pred_check
      _
    $region55: #{param_lstm_forward.1} parent=1 // pred_check_branch
      %109 = sbr.rel (0) target = $region57
    $region56: #{param_lstm_forward.1} parent=1 // pred_region
      %110 = dma.done [#allocation6], 2048
    $region57: #{param_lstm_forward.1} parent=1 // pred_fallthru
      _
    // Predicated region
    $region58: #{param_lstm_forward.1} parent=1 // pred_check
      _
    $region59: #{param_lstm_forward.1} parent=1 // pred_check_branch
      %112 = sbr.rel (0) target = $region61
    $region60: #{param_lstm_forward.1} parent=1 // pred_region
      %113 = dma.done [#allocation6], 32
    $region61: #{param_lstm_forward.1} parent=1 // pred_fallthru
      _
    // Predicated region
    $region62: #{param_lstm_forward.1} parent=1 // pred_check
      _
    $region63: #{param_lstm_forward.1} parent=1 // pred_check_branch
      %115 = sbr.rel (0) target = $region65
    $region64: #{param_lstm_forward.1} parent=1 // pred_region
      %116 = dma.done [#allocation9], 1024
    $region65: #{param_lstm_forward.1} parent=1 // pred_fallthru
      _
    // Predicated region
    $region66: #{param_lstm_forward.1} parent=1 // pred_check
      _
    $region67: #{param_lstm_forward.1} parent=1 // pred_check_branch
      %118 = sbr.rel (0) target = $region69
    $region68: #{param_lstm_forward.1} parent=1 // pred_region
      %119 = dma.done [#allocation9], 512
    $region69: #{param_lstm_forward.1} parent=1 // pred_fallthru
      _
    // Predicated region
    $region70: #{param_lstm_forward.1} parent=1 // pred_check
      _
    $region71: #{param_lstm_forward.1} parent=1 // pred_check_branch
      %121 = sbr.rel (0) target = $region73
    $region72: #{param_lstm_forward.1} parent=1 // pred_region
      %122 = dma.done [#allocation12], 512
    $region73: #{param_lstm_forward.1} parent=1 // pred_fallthru
      _
    %v123 = vld [vmem:[%s0] sm:$0xff]
    %v124 = vld [vmem:[%s0 + $0x8] sm:$0xff]
    %v127 = vrot.slane %v124, 7
    %vm128 = vcmask 1041409
    %v129 = vsel %vm128, %v127, %v123
    %v131 = vrot.slane %v123, 7
    %v132 = vrot.slane %v124, 6
    %vm133 = vcmask 1043459
    %v134 = vsel %vm133, %v132, %v131
    %v136 = vrot.slane %v123, 6
    %v137 = vrot.slane %v124, 5
    %vm138 = vcmask 1045509
    %v139 = vsel %vm138, %v137, %v136
    %v141 = vrot.slane %v123, 5
    %v142 = vrot.slane %v124, 4
    %vm143 = vcmask 1047559
    %v144 = vsel %vm143, %v142, %v141
    %v146 = vrot.slane %v123, 4
    %v147 = vrot.slane %v124, 3
    %v148 = vsel %vm128, %v147, %v146
    %v150 = vrot.slane %v123, 3
    %v151 = vrot.slane %v124, 2
    %v152 = vsel %vm133, %v151, %v150
    %v154 = vrot.slane %v123, 2
    %v155 = vrot.slane %v124, 1
    %v156 = vsel %vm138, %v155, %v154
    %v158 = vrot.slane %v123, 1
    %v159 = vsel %vm143, %v124, %v158
    %vm161 = vcmask 1041408
    %v162 = vsel %vm161, %v129, %v134
    %vm163 = vcmask 1043456
    %v164 = vsel %vm163, %v162, %v139
    %vm165 = vcmask 1045504
    %v166 = vsel %vm165, %v164, %v144
    %v167 = vsel %vm161, %v148, %v152
    %v168 = vsel %vm163, %v167, %v156
    %v169 = vsel %vm165, %v168, %v159
    %v170 = vld [vmem:[#allocation3] sm:$0xff]
    %v171 = vld [vmem:[#allocation3 + $0x8] sm:$0xff]
    %v172 = vld [vmem:[#allocation3 + $0x10] sm:$0xff]
    %v173 = vld [vmem:[#allocation3 + $0x18] sm:$0xff]
    %v174 = vld [vmem:[#allocation3 + $0x20] sm:$0xff]
    %v175 = vld [vmem:[#allocation3 + $0x28] sm:$0xff]
    %v176 = vld [vmem:[#allocation3 + $0x30] sm:$0xff]
    %v177 = vld [vmem:[#allocation3 + $0x38] sm:$0xff]
    %v178 = vld [vmem:[#allocation3 + $0x40] sm:$0xff]
    %v179 = vld [vmem:[#allocation3 + $0x48] sm:$0xff]
    %v180 = vld [vmem:[#allocation3 + $0x50] sm:$0xff]
    %v181 = vld [vmem:[#allocation3 + $0x58] sm:$0xff]
    %v182 = vld [vmem:[#allocation3 + $0x60] sm:$0xff]
    %v183 = vld [vmem:[#allocation3 + $0x68] sm:$0xff]
    %v184 = vld [vmem:[#allocation3 + $0x70] sm:$0xff]
    %v185 = vld [vmem:[#allocation3 + $0x78] sm:$0xff]
    %v186 = vld [vmem:[#allocation3 + $0x80] sm:$0xff]
    %v187 = vld [vmem:[#allocation3 + $0x88] sm:$0xff]
    %v188 = vld [vmem:[#allocation3 + $0x90] sm:$0xff]
    %v189 = vld [vmem:[#allocation3 + $0x98] sm:$0xff]
    %v190 = vld [vmem:[#allocation3 + $0xa0] sm:$0xff]
    %v191 = vld [vmem:[#allocation3 + $0xa8] sm:$0xff]
    %v192 = vld [vmem:[#allocation3 + $0xb0] sm:$0xff]
    %v193 = vld [vmem:[#allocation3 + $0xb8] sm:$0xff]
    %v194 = vld [vmem:[#allocation3 + $0xc0] sm:$0xff]
    %v195 = vld [vmem:[#allocation3 + $0xc8] sm:$0xff]
    %v196 = vld [vmem:[#allocation3 + $0xd0] sm:$0xff]
    %v197 = vld [vmem:[#allocation3 + $0xd8] sm:$0xff]
    %v198 = vld [vmem:[#allocation3 + $0xe0] sm:$0xff]
    %v199 = vld [vmem:[#allocation3 + $0xe8] sm:$0xff]
    %v200 = vld [vmem:[#allocation3 + $0xf0] sm:$0xff]
    %v201 = vld [vmem:[#allocation3 + $0xf8] sm:$0xff]
    %v202 = vld [vmem:[#allocation7] sm:$0x3]
    %v204 = vlaneseq
    %v205 = vshrl.u32 %v204, 7
    %v206 = vsub.s32 0, %v205
    %v207 = vrot.slane %v202, %v206
    %v208 = vlaneseq
    %v209 = vshrl.u32 %v208, 7
    %v210 = vsub.s32 1, %v209
    %v211 = vrot.slane %v202, %v210
    %214 = vmatprep.subr.mxu0 %v201
    %215 = vmatpush1.msra.mxu0 %v200
    %216 = vmatprep.subr.mxu0 %v199
    %217 = vmatpush1.msra.mxu0 %v198
    %218 = vmatprep.subr.mxu0 %v197
    %219 = vmatpush1.msra.mxu0 %v196
    %220 = vmatprep.subr.mxu0 %v195
    %221 = vmatpush1.msra.mxu0 %v194
    %222 = vmatprep.subr.mxu0 %v193
    %223 = vmatpush1.msra.mxu0 %v192
    %224 = vmatprep.subr.mxu0 %v191
    %225 = vmatpush1.msra.mxu0 %v190
    %226 = vmatprep.subr.mxu0 %v189
    %227 = vmatpush1.msra.mxu0 %v188
    %228 = vmatprep.subr.mxu0 %v187
    %229 = vmatpush1.msra.mxu0 %v186
    %230 = vmatprep.subr.mxu0 %v185
    %231 = vmatpush1.msra.mxu0 %v184
    %232 = vmatprep.subr.mxu0 %v183
    %233 = vmatpush1.msra.mxu0 %v182
    %234 = vmatprep.subr.mxu0 %v181
    %235 = vmatpush1.msra.mxu0 %v180
    %236 = vmatprep.subr.mxu0 %v179
    %237 = vmatpush1.msra.mxu0 %v178
    %238 = vmatprep.subr.mxu0 %v177
    %239 = vmatpush1.msra.mxu0 %v176
    %240 = vmatprep.subr.mxu0 %v175
    %241 = vmatpush1.msra.mxu0 %v174
    %242 = vmatprep.subr.mxu0 %v173
    %243 = vmatpush1.msra.mxu0 %v172
    %244 = vmatprep.subr.mxu0 %v171
    %245 = vmatpush1.msra.mxu0 %v170
    %246 = vmatprep.subr.mxu0 0.0
    %247 = vmatpush2.msra.mxu0 0.0
    %248 = vmatprep.subr.mxu0 0.0
    %249 = vmatpush2.msra.mxu0 0.0
    %250 = vmatprep.subr.mxu0 0.0
    %251 = vmatpush2.msra.mxu0 0.0
    %252 = vmatprep.subr.mxu0 0.0
    %253 = vmatpush2.msra.mxu0 0.0
    %254 = vmatprep.subr.mxu0 0.0
    %255 = vmatpush2.msra.mxu0 0.0
    %256 = vmatprep.subr.mxu0 0.0
    %257 = vmatpush2.msra.mxu0 0.0
    %258 = vmatprep.subr.mxu0 0.0
    %259 = vmatpush2.msra.mxu0 0.0
    %260 = vmatprep.subr.mxu0 0.0
    %261 = vmatpush2.msra.mxu0 0.0
    %262 = vmatprep.subr.mxu0 0.0
    %263 = vmatpush2.msra.mxu0 0.0
    %264 = vmatprep.subr.mxu0 0.0
    %265 = vmatpush2.msra.mxu0 0.0
    %266 = vmatprep.subr.mxu0 0.0
    %267 = vmatpush2.msra.mxu0 0.0
    %268 = vmatprep.subr.mxu0 0.0
    %269 = vmatpush2.msra.mxu0 0.0
    %270 = vmatprep.subr.mxu0 0.0
    %271 = vmatpush2.msra.mxu0 0.0
    %272 = vmatprep.subr.mxu0 0.0
    %273 = vmatpush2.msra.mxu0 0.0
    %274 = vmatprep.subr.mxu0 0.0
    %275 = vmatpush2.msra.mxu0 0.0
    %276 = vmatprep.subr.mxu0 0.0
    %277 = vmatpush2.msra.mxu0 0.0
    %278 = vmatprep.mubr.f32.mxu0 0.0
    %279 = vmatmul.mubr.f32.gmra.mxu0 %v166
    %v280 = vpop.f32.mrf.mxu0
    %v281 = vadd.f32 %v207, %v280
    %v282 = vpop.f32.mrf.mxu0
    %v283 = vadd.f32 %v211, %v282
    %284 = vmatprep.mubr.f32.mxu0 0.0
    %285 = vmatmul.mubr.f32.gmra.mxu0 %v169
    %v286 = vpop.f32.mrf.mxu0
    %v287 = vadd.f32 %v207, %v286
    %v288 = vpop.f32.mrf.mxu0
    %v289 = vadd.f32 %v211, %v288
    %290 = vdwg.mxu0
    %v291 = vld [vmem:[#allocation5] sm:$0xff]
    %v292 = vld [vmem:[#allocation5 + $0x8] sm:$0xff]
    %v293 = vld [vmem:[#allocation5 + $0x10] sm:$0xff]
    %v294 = vld [vmem:[#allocation5 + $0x18] sm:$0xff]
    %v295 = vld [vmem:[#allocation5 + $0x20] sm:$0xff]
    %v296 = vld [vmem:[#allocation5 + $0x28] sm:$0xff]
    %v297 = vld [vmem:[#allocation5 + $0x30] sm:$0xff]
    %v298 = vld [vmem:[#allocation5 + $0x38] sm:$0xff]
    %v299 = vld [vmem:[#allocation5 + $0x40] sm:$0xff]
    %v300 = vld [vmem:[#allocation5 + $0x48] sm:$0xff]
    %v301 = vld [vmem:[#allocation5 + $0x50] sm:$0xff]
    %v302 = vld [vmem:[#allocation5 + $0x58] sm:$0xff]
    %v303 = vld [vmem:[#allocation5 + $0x60] sm:$0xff]
    %v304 = vld [vmem:[#allocation5 + $0x68] sm:$0xff]
    %v305 = vld [vmem:[#allocation5 + $0x70] sm:$0xff]
    %v306 = vld [vmem:[#allocation5 + $0x78] sm:$0xff]
    %vm307 = vcmask 523264
    %v309 = vsel %vm307, 0.0, 0
    %311 = vmatprep.subr.mxu0 0.0
    %312 = vmatpush1.msra.mxu0 0.0
    %313 = vmatprep.subr.mxu0 0.0
    %314 = vmatpush1.msra.mxu0 0.0
    %315 = vmatprep.subr.mxu0 0.0
    %316 = vmatpush1.msra.mxu0 0.0
    %317 = vmatprep.subr.mxu0 0.0
    %318 = vmatpush1.msra.mxu0 0.0
    %319 = vmatprep.subr.mxu0 0.0
    %320 = vmatpush1.msra.mxu0 0.0
    %321 = vmatprep.subr.mxu0 0.0
    %322 = vmatpush1.msra.mxu0 0.0
    %323 = vmatprep.subr.mxu0 0.0
    %324 = vmatpush1.msra.mxu0 0.0
    %325 = vmatprep.subr.mxu0 0.0
    %326 = vmatpush1.msra.mxu0 0.0
    %327 = vmatprep.subr.mxu0 %v306
    %328 = vmatpush1.msra.mxu0 %v305
    %329 = vmatprep.subr.mxu0 %v304
    %330 = vmatpush1.msra.mxu0 %v303
    %331 = vmatprep.subr.mxu0 %v302
    %332 = vmatpush1.msra.mxu0 %v301
    %333 = vmatprep.subr.mxu0 %v300
    %334 = vmatpush1.msra.mxu0 %v299
    %335 = vmatprep.subr.mxu0 %v298
    %336 = vmatpush1.msra.mxu0 %v297
    %337 = vmatprep.subr.mxu0 %v296
    %338 = vmatpush1.msra.mxu0 %v295
    %339 = vmatprep.subr.mxu0 %v294
    %340 = vmatpush1.msra.mxu0 %v293
    %341 = vmatprep.subr.mxu0 %v292
    %342 = vmatpush1.msra.mxu0 %v291
    %343 = vmatprep.subr.mxu0 0.0
    %344 = vmatpush2.msra.mxu0 0.0
    %345 = vmatprep.subr.mxu0 0.0
    %346 = vmatpush2.msra.mxu0 0.0
    %347 = vmatprep.subr.mxu0 0.0
    %348 = vmatpush2.msra.mxu0 0.0
    %349 = vmatprep.subr.mxu0 0.0
    %350 = vmatpush2.msra.mxu0 0.0
    %351 = vmatprep.subr.mxu0 0.0
    %352 = vmatpush2.msra.mxu0 0.0
    %353 = vmatprep.subr.mxu0 0.0
    %354 = vmatpush2.msra.mxu0 0.0
    %355 = vmatprep.subr.mxu0 0.0
    %356 = vmatpush2.msra.mxu0 0.0
    %357 = vmatprep.subr.mxu0 0.0
    %358 = vmatpush2.msra.mxu0 0.0
    %359 = vmatprep.subr.mxu0 0.0
    %360 = vmatpush2.msra.mxu0 0.0
    %361 = vmatprep.subr.mxu0 0.0
    %362 = vmatpush2.msra.mxu0 0.0
    %363 = vmatprep.subr.mxu0 0.0
    %364 = vmatpush2.msra.mxu0 0.0
    %365 = vmatprep.subr.mxu0 0.0
    %366 = vmatpush2.msra.mxu0 0.0
    %367 = vmatprep.subr.mxu0 0.0
    %368 = vmatpush2.msra.mxu0 0.0
    %369 = vmatprep.subr.mxu0 0.0
    %370 = vmatpush2.msra.mxu0 0.0
    %371 = vmatprep.subr.mxu0 0.0
    %372 = vmatpush2.msra.mxu0 0.0
    %373 = vmatprep.subr.mxu0 0.0
    %374 = vmatpush2.msra.mxu0 0.0
    %375 = vmatprep.mubr.f32.mxu0 0.0
    %376 = vmatmul.mubr.f32.gmra.mxu0 %v309
    %v377 = vpop.f32.mrf.mxu0
    %v378 = vadd.f32 0.0, %v377
    %v379 = vpop.f32.mrf.mxu0
    %v380 = vadd.f32 0.0, %v379
    %381 = vdwg.mxu0
    %v382 = vadd.f32 %v281, %v378
    %v383 = vadd.f32 %v283, %v380
    %v384 = vxor.u32 %v382, 2147483648
    %v385 = vmul.f32 %v384, 1.442695
    %v386 = vpow.pop %v385
    %v387 = vadd.f32 %v386, 1.0
    %v388 = vrcp.pop %v387
    %v389 = vmul.f32 1.0, %v388
    %v390 = vtanh.pop %v383
    %v391 = vxor.u32 %v383, 2147483648
    %v392 = vmul.f32 %v391, 1.442695
    %v393 = vpow.pop %v392
    %v394 = vadd.f32 %v393, 1.0
    %v395 = vrcp.pop %v394
    %v396 = vmul.f32 1.0, %v395
    %v397 = vmul.f32 %v389, 0.0
    %v398 = vmul.f32 %v389, %v390
    %400 = vrot.lane.b32.xlu0 %v398, 64
    %v401 = vpop.permute.xlu0 %400
    %v403 = vadd.f32 %v397, %v401
    %v404 = vtanh.pop %v403
    %v405 = vmul.f32 %v396, %v404
    %407 = vrot.lane.b32.xlu0 %v405, 64
    %v408 = vpop.permute.xlu0 %407
    %v409 = vsel %vm307, %v408, 0
    %411 = vmatprep.subr.mxu0 0.0
    %412 = vmatpush1.msra.mxu0 0.0
    %413 = vmatprep.subr.mxu0 0.0
    %414 = vmatpush1.msra.mxu0 0.0
    %415 = vmatprep.subr.mxu0 0.0
    %416 = vmatpush1.msra.mxu0 0.0
    %417 = vmatprep.subr.mxu0 0.0
    %418 = vmatpush1.msra.mxu0 0.0
    %419 = vmatprep.subr.mxu0 0.0
    %420 = vmatpush1.msra.mxu0 0.0
    %421 = vmatprep.subr.mxu0 0.0
    %422 = vmatpush1.msra.mxu0 0.0
    %423 = vmatprep.subr.mxu0 0.0
    %424 = vmatpush1.msra.mxu0 0.0
    %425 = vmatprep.subr.mxu0 0.0
    %426 = vmatpush1.msra.mxu0 0.0
    %427 = vmatprep.subr.mxu0 %v306
    %428 = vmatpush1.msra.mxu0 %v305
    %429 = vmatprep.subr.mxu0 %v304
    %430 = vmatpush1.msra.mxu0 %v303
    %431 = vmatprep.subr.mxu0 %v302
    %432 = vmatpush1.msra.mxu0 %v301
    %433 = vmatprep.subr.mxu0 %v300
    %434 = vmatpush1.msra.mxu0 %v299
    %435 = vmatprep.subr.mxu0 %v298
    %436 = vmatpush1.msra.mxu0 %v297
    %437 = vmatprep.subr.mxu0 %v296
    %438 = vmatpush1.msra.mxu0 %v295
    %439 = vmatprep.subr.mxu0 %v294
    %440 = vmatpush1.msra.mxu0 %v293
    %441 = vmatprep.subr.mxu0 %v292
    %442 = vmatpush1.msra.mxu0 %v291
    %443 = vmatprep.subr.mxu0 0.0
    %444 = vmatpush2.msra.mxu0 0.0
    %445 = vmatprep.subr.mxu0 0.0
    %446 = vmatpush2.msra.mxu0 0.0
    %447 = vmatprep.subr.mxu0 0.0
    %448 = vmatpush2.msra.mxu0 0.0
    %449 = vmatprep.subr.mxu0 0.0
    %450 = vmatpush2.msra.mxu0 0.0
    %451 = vmatprep.subr.mxu0 0.0
    %452 = vmatpush2.msra.mxu0 0.0
    %453 = vmatprep.subr.mxu0 0.0
    %454 = vmatpush2.msra.mxu0 0.0
    %455 = vmatprep.subr.mxu0 0.0
    %456 = vmatpush2.msra.mxu0 0.0
    %457 = vmatprep.subr.mxu0 0.0
    %458 = vmatpush2.msra.mxu0 0.0
    %459 = vmatprep.subr.mxu0 0.0
    %460 = vmatpush2.msra.mxu0 0.0
    %461 = vmatprep.subr.mxu0 0.0
    %462 = vmatpush2.msra.mxu0 0.0
    %463 = vmatprep.subr.mxu0 0.0
    %464 = vmatpush2.msra.mxu0 0.0
    %465 = vmatprep.subr.mxu0 0.0
    %466 = vmatpush2.msra.mxu0 0.0
    %467 = vmatprep.subr.mxu0 0.0
    %468 = vmatpush2.msra.mxu0 0.0
    %469 = vmatprep.subr.mxu0 0.0
    %470 = vmatpush2.msra.mxu0 0.0
    %471 = vmatprep.subr.mxu0 0.0
    %472 = vmatpush2.msra.mxu0 0.0
    %473 = vmatprep.subr.mxu0 0.0
    %474 = vmatpush2.msra.mxu0 0.0
    %475 = vmatprep.mubr.f32.mxu0 0.0
    %476 = vmatmul.mubr.f32.gmra.mxu0 %v409
    %v477 = vpop.f32.mrf.mxu0
    %v478 = vadd.f32 0.0, %v477
    %v479 = vpop.f32.mrf.mxu0
    %v480 = vadd.f32 0.0, %v479
    %481 = vdwg.mxu0
    %v484 = vrot.slane %v478, 6
    %v485 = vrot.slane %v480, 6
    %v488 = vadd.f32 %v281, %v484
    %v489 = vadd.f32 %v283, %v485
    %v490 = vxor.u32 %v488, 2147483648
    %v491 = vmul.f32 %v490, 1.442695
    %v492 = vpow.pop %v491
    %v493 = vadd.f32 %v492, 1.0
    %v494 = vrcp.pop %v493
    %v495 = vmul.f32 1.0, %v494
    %v496 = vtanh.pop %v489
    %v497 = vxor.u32 %v489, 2147483648
    %v498 = vmul.f32 %v497, 1.442695
    %v499 = vpow.pop %v498
    %v500 = vadd.f32 %v499, 1.0
    %v501 = vrcp.pop %v500
    %v502 = vmul.f32 1.0, %v501
    %v504 = vrot.slane %v403, 6
    %v506 = vmul.f32 %v495, %v504
    %v507 = vmul.f32 %v495, %v496
    %509 = vrot.lane.b32.xlu0 %v507, 64
    %v510 = vpop.permute.xlu0 %509
    %v512 = vadd.f32 %v506, %v510
    %v513 = vtanh.pop %v512
    %v514 = vmul.f32 %v502, %v513
    %v516 = vrot.slane %v514, 2
    %517 = vrot.lane.b32.xlu0 %v516, 64
    %v518 = vpop.permute.xlu0 %517
    %v519 = vsel %vm307, %v518, 0
    %521 = vmatprep.subr.mxu0 0.0
    %522 = vmatpush1.msra.mxu0 0.0
    %523 = vmatprep.subr.mxu0 0.0
    %524 = vmatpush1.msra.mxu0 0.0
    %525 = vmatprep.subr.mxu0 0.0
    %526 = vmatpush1.msra.mxu0 0.0
    %527 = vmatprep.subr.mxu0 0.0
    %528 = vmatpush1.msra.mxu0 0.0
    %529 = vmatprep.subr.mxu0 0.0
    %530 = vmatpush1.msra.mxu0 0.0
    %531 = vmatprep.subr.mxu0 0.0
    %532 = vmatpush1.msra.mxu0 0.0
    %533 = vmatprep.subr.mxu0 0.0
    %534 = vmatpush1.msra.mxu0 0.0
    %535 = vmatprep.subr.mxu0 0.0
    %536 = vmatpush1.msra.mxu0 0.0
    %537 = vmatprep.subr.mxu0 %v306
    %538 = vmatpush1.msra.mxu0 %v305
    %539 = vmatprep.subr.mxu0 %v304
    %540 = vmatpush1.msra.mxu0 %v303
    %541 = vmatprep.subr.mxu0 %v302
    %542 = vmatpush1.msra.mxu0 %v301
    %543 = vmatprep.subr.mxu0 %v300
    %544 = vmatpush1.msra.mxu0 %v299
    %545 = vmatprep.subr.mxu0 %v298
    %546 = vmatpush1.msra.mxu0 %v297
    %547 = vmatprep.subr.mxu0 %v296
    %548 = vmatpush1.msra.mxu0 %v295
    %549 = vmatprep.subr.mxu0 %v294
    %550 = vmatpush1.msra.mxu0 %v293
    %551 = vmatprep.subr.mxu0 %v292
    %552 = vmatpush1.msra.mxu0 %v291
    %553 = vmatprep.subr.mxu0 0.0
    %554 = vmatpush2.msra.mxu0 0.0
    %555 = vmatprep.subr.mxu0 0.0
    %556 = vmatpush2.msra.mxu0 0.0
    %557 = vmatprep.subr.mxu0 0.0
    %558 = vmatpush2.msra.mxu0 0.0
    %559 = vmatprep.subr.mxu0 0.0
    %560 = vmatpush2.msra.mxu0 0.0
    %561 = vmatprep.subr.mxu0 0.0
    %562 = vmatpush2.msra.mxu0 0.0
    %563 = vmatprep.subr.mxu0 0.0
    %564 = vmatpush2.msra.mxu0 0.0
    %565 = vmatprep.subr.mxu0 0.0
    %566 = vmatpush2.msra.mxu0 0.0
    %567 = vmatprep.subr.mxu0 0.0
    %568 = vmatpush2.msra.mxu0 0.0
    %569 = vmatprep.subr.mxu0 0.0
    %570 = vmatpush2.msra.mxu0 0.0
    %571 = vmatprep.subr.mxu0 0.0
    %572 = vmatpush2.msra.mxu0 0.0
    %573 = vmatprep.subr.mxu0 0.0
    %574 = vmatpush2.msra.mxu0 0.0
    %575 = vmatprep.subr.mxu0 0.0
    %576 = vmatpush2.msra.mxu0 0.0
    %577 = vmatprep.subr.mxu0 0.0
    %578 = vmatpush2.msra.mxu0 0.0
    %579 = vmatprep.subr.mxu0 0.0
    %580 = vmatpush2.msra.mxu0 0.0
    %581 = vmatprep.subr.mxu0 0.0
    %582 = vmatpush2.msra.mxu0 0.0
    %583 = vmatprep.subr.mxu0 0.0
    %584 = vmatpush2.msra.mxu0 0.0
    %585 = vmatprep.mubr.f32.mxu0 0.0
    %586 = vmatmul.mubr.f32.gmra.mxu0 %v519
    %v587 = vpop.f32.mrf.mxu0
    %v588 = vadd.f32 0.0, %v587
    %v589 = vpop.f32.mrf.mxu0
    %v590 = vadd.f32 0.0, %v589
    %591 = vdwg.mxu0
    %v594 = vrot.slane %v588, 4
    %v595 = vrot.slane %v590, 4
    %v598 = vadd.f32 %v281, %v594
    %v599 = vadd.f32 %v283, %v595
    %v600 = vxor.u32 %v598, 2147483648
    %v601 = vmul.f32 %v600, 1.442695
    %v602 = vpow.pop %v601
    %v603 = vadd.f32 %v602, 1.0
    %v604 = vrcp.pop %v603
    %v605 = vmul.f32 1.0, %v604
    %v606 = vtanh.pop %v599
    %v607 = vxor.u32 %v599, 2147483648
    %v608 = vmul.f32 %v607, 1.442695
    %v609 = vpow.pop %v608
    %v610 = vadd.f32 %v609, 1.0
    %v611 = vrcp.pop %v610
    %v612 = vmul.f32 1.0, %v611
    %v614 = vrot.slane %v512, 6
    %v616 = vmul.f32 %v605, %v614
    %v617 = vmul.f32 %v605, %v606
    %619 = vrot.lane.b32.xlu0 %v617, 64
    %v620 = vpop.permute.xlu0 %619
    %v622 = vadd.f32 %v616, %v620
    %v623 = vtanh.pop %v622
    %v624 = vmul.f32 %v612, %v623
    %v626 = vrot.slane %v624, 4
    %627 = vrot.lane.b32.xlu0 %v626, 64
    %v628 = vpop.permute.xlu0 %627
    %v629 = vsel %vm307, %v628, 0
    %631 = vmatprep.subr.mxu0 0.0
    %632 = vmatpush1.msra.mxu0 0.0
    %633 = vmatprep.subr.mxu0 0.0
    %634 = vmatpush1.msra.mxu0 0.0
    %635 = vmatprep.subr.mxu0 0.0
    %636 = vmatpush1.msra.mxu0 0.0
    %637 = vmatprep.subr.mxu0 0.0
    %638 = vmatpush1.msra.mxu0 0.0
    %639 = vmatprep.subr.mxu0 0.0
    %640 = vmatpush1.msra.mxu0 0.0
    %641 = vmatprep.subr.mxu0 0.0
    %642 = vmatpush1.msra.mxu0 0.0
    %643 = vmatprep.subr.mxu0 0.0
    %644 = vmatpush1.msra.mxu0 0.0
    %645 = vmatprep.subr.mxu0 0.0
    %646 = vmatpush1.msra.mxu0 0.0
    %647 = vmatprep.subr.mxu0 %v306
    %648 = vmatpush1.msra.mxu0 %v305
    %649 = vmatprep.subr.mxu0 %v304
    %650 = vmatpush1.msra.mxu0 %v303
    %651 = vmatprep.subr.mxu0 %v302
    %652 = vmatpush1.msra.mxu0 %v301
    %653 = vmatprep.subr.mxu0 %v300
    %654 = vmatpush1.msra.mxu0 %v299
    %655 = vmatprep.subr.mxu0 %v298
    %656 = vmatpush1.msra.mxu0 %v297
    %657 = vmatprep.subr.mxu0 %v296
    %658 = vmatpush1.msra.mxu0 %v295
    %659 = vmatprep.subr.mxu0 %v294
    %660 = vmatpush1.msra.mxu0 %v293
    %661 = vmatprep.subr.mxu0 %v292
    %662 = vmatpush1.msra.mxu0 %v291
    %663 = vmatprep.subr.mxu0 0.0
    %664 = vmatpush2.msra.mxu0 0.0
    %665 = vmatprep.subr.mxu0 0.0
    %666 = vmatpush2.msra.mxu0 0.0
    %667 = vmatprep.subr.mxu0 0.0
    %668 = vmatpush2.msra.mxu0 0.0
    %669 = vmatprep.subr.mxu0 0.0
    %670 = vmatpush2.msra.mxu0 0.0
    %671 = vmatprep.subr.mxu0 0.0
    %672 = vmatpush2.msra.mxu0 0.0
    %673 = vmatprep.subr.mxu0 0.0
    %674 = vmatpush2.msra.mxu0 0.0
    %675 = vmatprep.subr.mxu0 0.0
    %676 = vmatpush2.msra.mxu0 0.0
    %677 = vmatprep.subr.mxu0 0.0
    %678 = vmatpush2.msra.mxu0 0.0
    %679 = vmatprep.subr.mxu0 0.0
    %680 = vmatpush2.msra.mxu0 0.0
    %681 = vmatprep.subr.mxu0 0.0
    %682 = vmatpush2.msra.mxu0 0.0
    %683 = vmatprep.subr.mxu0 0.0
    %684 = vmatpush2.msra.mxu0 0.0
    %685 = vmatprep.subr.mxu0 0.0
    %686 = vmatpush2.msra.mxu0 0.0
    %687 = vmatprep.subr.mxu0 0.0
    %688 = vmatpush2.msra.mxu0 0.0
    %689 = vmatprep.subr.mxu0 0.0
    %690 = vmatpush2.msra.mxu0 0.0
    %691 = vmatprep.subr.mxu0 0.0
    %692 = vmatpush2.msra.mxu0 0.0
    %693 = vmatprep.subr.mxu0 0.0
    %694 = vmatpush2.msra.mxu0 0.0
    %695 = vmatprep.mubr.f32.mxu0 0.0
    %696 = vmatmul.mubr.f32.gmra.mxu0 %v629
    %v697 = vpop.f32.mrf.mxu0
    %v698 = vadd.f32 0.0, %v697
    %v699 = vpop.f32.mrf.mxu0
    %v700 = vadd.f32 0.0, %v699
    %701 = vdwg.mxu0
    %v704 = vrot.slane %v698, 2
    %v705 = vrot.slane %v700, 2
    %v708 = vadd.f32 %v281, %v704
    %v709 = vadd.f32 %v283, %v705
    %v710 = vxor.u32 %v708, 2147483648
    %v711 = vmul.f32 %v710, 1.442695
    %v712 = vpow.pop %v711
    %v713 = vadd.f32 %v712, 1.0
    %v714 = vrcp.pop %v713
    %v715 = vmul.f32 1.0, %v714
    %v716 = vtanh.pop %v709
    %v717 = vxor.u32 %v709, 2147483648
    %v718 = vmul.f32 %v717, 1.442695
    %v719 = vpow.pop %v718
    %v720 = vadd.f32 %v719, 1.0
    %v721 = vrcp.pop %v720
    %v722 = vmul.f32 1.0, %v721
    %v724 = vrot.slane %v622, 6
    %v726 = vmul.f32 %v715, %v724
    %v727 = vmul.f32 %v715, %v716
    %729 = vrot.lane.b32.xlu0 %v727, 64
    %v730 = vpop.permute.xlu0 %729
    %v732 = vadd.f32 %v726, %v730
    %v733 = vtanh.pop %v732
    %v734 = vmul.f32 %v722, %v733
    %v736 = vrot.slane %v734, 6
    %737 = vrot.lane.b32.xlu0 %v736, 64
    %v738 = vpop.permute.xlu0 %737
    %v739 = vsel %vm307, %v738, 0
    %741 = vmatprep.subr.mxu0 0.0
    %742 = vmatpush1.msra.mxu0 0.0
    %743 = vmatprep.subr.mxu0 0.0
    %744 = vmatpush1.msra.mxu0 0.0
    %745 = vmatprep.subr.mxu0 0.0
    %746 = vmatpush1.msra.mxu0 0.0
    %747 = vmatprep.subr.mxu0 0.0
    %748 = vmatpush1.msra.mxu0 0.0
    %749 = vmatprep.subr.mxu0 0.0
    %750 = vmatpush1.msra.mxu0 0.0
    %751 = vmatprep.subr.mxu0 0.0
    %752 = vmatpush1.msra.mxu0 0.0
    %753 = vmatprep.subr.mxu0 0.0
    %754 = vmatpush1.msra.mxu0 0.0
    %755 = vmatprep.subr.mxu0 0.0
    %756 = vmatpush1.msra.mxu0 0.0
    %757 = vmatprep.subr.mxu0 %v306
    %758 = vmatpush1.msra.mxu0 %v305
    %759 = vmatprep.subr.mxu0 %v304
    %760 = vmatpush1.msra.mxu0 %v303
    %761 = vmatprep.subr.mxu0 %v302
    %762 = vmatpush1.msra.mxu0 %v301
    %763 = vmatprep.subr.mxu0 %v300
    %764 = vmatpush1.msra.mxu0 %v299
    %765 = vmatprep.subr.mxu0 %v298
    %766 = vmatpush1.msra.mxu0 %v297
    %767 = vmatprep.subr.mxu0 %v296
    %768 = vmatpush1.msra.mxu0 %v295
    %769 = vmatprep.subr.mxu0 %v294
    %770 = vmatpush1.msra.mxu0 %v293
    %771 = vmatprep.subr.mxu0 %v292
    %772 = vmatpush1.msra.mxu0 %v291
    %773 = vmatprep.subr.mxu0 0.0
    %774 = vmatpush2.msra.mxu0 0.0
    %775 = vmatprep.subr.mxu0 0.0
    %776 = vmatpush2.msra.mxu0 0.0
    %777 = vmatprep.subr.mxu0 0.0
    %778 = vmatpush2.msra.mxu0 0.0
    %779 = vmatprep.subr.mxu0 0.0
    %780 = vmatpush2.msra.mxu0 0.0
    %781 = vmatprep.subr.mxu0 0.0
    %782 = vmatpush2.msra.mxu0 0.0
    %783 = vmatprep.subr.mxu0 0.0
    %784 = vmatpush2.msra.mxu0 0.0
    %785 = vmatprep.subr.mxu0 0.0
    %786 = vmatpush2.msra.mxu0 0.0
    %787 = vmatprep.subr.mxu0 0.0
    %788 = vmatpush2.msra.mxu0 0.0
    %789 = vmatprep.subr.mxu0 0.0
    %790 = vmatpush2.msra.mxu0 0.0
    %791 = vmatprep.subr.mxu0 0.0
    %792 = vmatpush2.msra.mxu0 0.0
    %793 = vmatprep.subr.mxu0 0.0
    %794 = vmatpush2.msra.mxu0 0.0
    %795 = vmatprep.subr.mxu0 0.0
    %796 = vmatpush2.msra.mxu0 0.0
    %797 = vmatprep.subr.mxu0 0.0
    %798 = vmatpush2.msra.mxu0 0.0
    %799 = vmatprep.subr.mxu0 0.0
    %800 = vmatpush2.msra.mxu0 0.0
    %801 = vmatprep.subr.mxu0 0.0
    %802 = vmatpush2.msra.mxu0 0.0
    %803 = vmatprep.subr.mxu0 0.0
    %804 = vmatpush2.msra.mxu0 0.0
    %805 = vmatprep.mubr.f32.mxu0 0.0
    %806 = vmatmul.mubr.f32.gmra.mxu0 %v739
    %v807 = vpop.f32.mrf.mxu0
    %v808 = vadd.f32 0.0, %v807
    %v809 = vpop.f32.mrf.mxu0
    %v810 = vadd.f32 0.0, %v809
    %811 = vdwg.mxu0
    %v812 = vadd.f32 %v287, %v808
    %v813 = vadd.f32 %v289, %v810
    %v814 = vxor.u32 %v812, 2147483648
    %v815 = vmul.f32 %v814, 1.442695
    %v816 = vpow.pop %v815
    %v817 = vadd.f32 %v816, 1.0
    %v818 = vrcp.pop %v817
    %v819 = vmul.f32 1.0, %v818
    %v820 = vtanh.pop %v813
    %v821 = vxor.u32 %v813, 2147483648
    %v822 = vmul.f32 %v821, 1.442695
    %v823 = vpow.pop %v822
    %v824 = vadd.f32 %v823, 1.0
    %v825 = vrcp.pop %v824
    %v826 = vmul.f32 1.0, %v825
    %v828 = vrot.slane %v732, 6
    %v830 = vmul.f32 %v819, %v828
    %v831 = vmul.f32 %v819, %v820
    %833 = vrot.lane.b32.xlu0 %v831, 64
    %v834 = vpop.permute.xlu0 %833
    %v836 = vadd.f32 %v830, %v834
    %v837 = vtanh.pop %v836
    %v838 = vmul.f32 %v826, %v837
    %840 = vrot.lane.b32.xlu0 %v838, 64
    %v841 = vpop.permute.xlu0 %840
    %v842 = vsel %vm307, %v841, 0
    %844 = vmatprep.subr.mxu0 0.0
    %845 = vmatpush1.msra.mxu0 0.0
    %846 = vmatprep.subr.mxu0 0.0
    %847 = vmatpush1.msra.mxu0 0.0
    %848 = vmatprep.subr.mxu0 0.0
    %849 = vmatpush1.msra.mxu0 0.0
    %850 = vmatprep.subr.mxu0 0.0
    %851 = vmatpush1.msra.mxu0 0.0
    %852 = vmatprep.subr.mxu0 0.0
    %853 = vmatpush1.msra.mxu0 0.0
    %854 = vmatprep.subr.mxu0 0.0
    %855 = vmatpush1.msra.mxu0 0.0
    %856 = vmatprep.subr.mxu0 0.0
    %857 = vmatpush1.msra.mxu0 0.0
    %858 = vmatprep.subr.mxu0 0.0
    %859 = vmatpush1.msra.mxu0 0.0
    %860 = vmatprep.subr.mxu0 %v306
    %861 = vmatpush1.msra.mxu0 %v305
    %862 = vmatprep.subr.mxu0 %v304
    %863 = vmatpush1.msra.mxu0 %v303
    %864 = vmatprep.subr.mxu0 %v302
    %865 = vmatpush1.msra.mxu0 %v301
    %866 = vmatprep.subr.mxu0 %v300
    %867 = vmatpush1.msra.mxu0 %v299
    %868 = vmatprep.subr.mxu0 %v298
    %869 = vmatpush1.msra.mxu0 %v297
    %870 = vmatprep.subr.mxu0 %v296
    %871 = vmatpush1.msra.mxu0 %v295
    %872 = vmatprep.subr.mxu0 %v294
    %873 = vmatpush1.msra.mxu0 %v293
    %874 = vmatprep.subr.mxu0 %v292
    %875 = vmatpush1.msra.mxu0 %v291
    %876 = vmatprep.subr.mxu0 0.0
    %877 = vmatpush2.msra.mxu0 0.0
    %878 = vmatprep.subr.mxu0 0.0
    %879 = vmatpush2.msra.mxu0 0.0
    %880 = vmatprep.subr.mxu0 0.0
    %881 = vmatpush2.msra.mxu0 0.0
    %882 = vmatprep.subr.mxu0 0.0
    %883 = vmatpush2.msra.mxu0 0.0
    %884 = vmatprep.subr.mxu0 0.0
    %885 = vmatpush2.msra.mxu0 0.0
    %886 = vmatprep.subr.mxu0 0.0
    %887 = vmatpush2.msra.mxu0 0.0
    %888 = vmatprep.subr.mxu0 0.0
    %889 = vmatpush2.msra.mxu0 0.0
    %890 = vmatprep.subr.mxu0 0.0
    %891 = vmatpush2.msra.mxu0 0.0
    %892 = vmatprep.subr.mxu0 0.0
    %893 = vmatpush2.msra.mxu0 0.0
    %894 = vmatprep.subr.mxu0 0.0
    %895 = vmatpush2.msra.mxu0 0.0
    %896 = vmatprep.subr.mxu0 0.0
    %897 = vmatpush2.msra.mxu0 0.0
    %898 = vmatprep.subr.mxu0 0.0
    %899 = vmatpush2.msra.mxu0 0.0
    %900 = vmatprep.subr.mxu0 0.0
    %901 = vmatpush2.msra.mxu0 0.0
    %902 = vmatprep.subr.mxu0 0.0
    %903 = vmatpush2.msra.mxu0 0.0
    %904 = vmatprep.subr.mxu0 0.0
    %905 = vmatpush2.msra.mxu0 0.0
    %906 = vmatprep.subr.mxu0 0.0
    %907 = vmatpush2.msra.mxu0 0.0
    %908 = vmatprep.mubr.f32.mxu0 0.0
    %909 = vmatmul.mubr.f32.gmra.mxu0 %v842
    %v910 = vpop.f32.mrf.mxu0
    %v911 = vadd.f32 0.0, %v910
    %v912 = vpop.f32.mrf.mxu0
    %v913 = vadd.f32 0.0, %v912
    %914 = vdwg.mxu0
    %v917 = vrot.slane %v911, 6
    %v918 = vrot.slane %v913, 6
    %v921 = vadd.f32 %v287, %v917
    %v922 = vadd.f32 %v289, %v918
    %v923 = vxor.u32 %v921, 2147483648
    %v924 = vmul.f32 %v923, 1.442695
    %v925 = vpow.pop %v924
    %v926 = vadd.f32 %v925, 1.0
    %v927 = vrcp.pop %v926
    %v928 = vmul.f32 1.0, %v927
    %v929 = vtanh.pop %v922
    %v930 = vxor.u32 %v922, 2147483648
    %v931 = vmul.f32 %v930, 1.442695
    %v932 = vpow.pop %v931
    %v933 = vadd.f32 %v932, 1.0
    %v934 = vrcp.pop %v933
    %v935 = vmul.f32 1.0, %v934
    %v937 = vrot.slane %v836, 6
    %v939 = vmul.f32 %v928, %v937
    %v940 = vmul.f32 %v928, %v929
    %942 = vrot.lane.b32.xlu0 %v940, 64
    %v943 = vpop.permute.xlu0 %942
    %v945 = vadd.f32 %v939, %v943
    %v946 = vtanh.pop %v945
    %v947 = vmul.f32 %v935, %v946
    %v949 = vrot.slane %v947, 2
    %950 = vrot.lane.b32.xlu0 %v949, 64
    %v951 = vpop.permute.xlu0 %950
    %v952 = vsel %vm307, %v951, 0
    %954 = vmatprep.subr.mxu0 0.0
    %955 = vmatpush1.msra.mxu0 0.0
    %956 = vmatprep.subr.mxu0 0.0
    %957 = vmatpush1.msra.mxu0 0.0
    %958 = vmatprep.subr.mxu0 0.0
    %959 = vmatpush1.msra.mxu0 0.0
    %960 = vmatprep.subr.mxu0 0.0
    %961 = vmatpush1.msra.mxu0 0.0
    %962 = vmatprep.subr.mxu0 0.0
    %963 = vmatpush1.msra.mxu0 0.0
    %964 = vmatprep.subr.mxu0 0.0
    %965 = vmatpush1.msra.mxu0 0.0
    %966 = vmatprep.subr.mxu0 0.0
    %967 = vmatpush1.msra.mxu0 0.0
    %968 = vmatprep.subr.mxu0 0.0
    %969 = vmatpush1.msra.mxu0 0.0
    %970 = vmatprep.subr.mxu0 %v306
    %971 = vmatpush1.msra.mxu0 %v305
    %972 = vmatprep.subr.mxu0 %v304
    %973 = vmatpush1.msra.mxu0 %v303
    %974 = vmatprep.subr.mxu0 %v302
    %975 = vmatpush1.msra.mxu0 %v301
    %976 = vmatprep.subr.mxu0 %v300
    %977 = vmatpush1.msra.mxu0 %v299
    %978 = vmatprep.subr.mxu0 %v298
    %979 = vmatpush1.msra.mxu0 %v297
    %980 = vmatprep.subr.mxu0 %v296
    %981 = vmatpush1.msra.mxu0 %v295
    %982 = vmatprep.subr.mxu0 %v294
    %983 = vmatpush1.msra.mxu0 %v293
    %984 = vmatprep.subr.mxu0 %v292
    %985 = vmatpush1.msra.mxu0 %v291
    %986 = vmatprep.subr.mxu0 0.0
    %987 = vmatpush2.msra.mxu0 0.0
    %988 = vmatprep.subr.mxu0 0.0
    %989 = vmatpush2.msra.mxu0 0.0
    %990 = vmatprep.subr.mxu0 0.0
    %991 = vmatpush2.msra.mxu0 0.0
    %992 = vmatprep.subr.mxu0 0.0
    %993 = vmatpush2.msra.mxu0 0.0
    %994 = vmatprep.subr.mxu0 0.0
    %995 = vmatpush2.msra.mxu0 0.0
    %996 = vmatprep.subr.mxu0 0.0
    %997 = vmatpush2.msra.mxu0 0.0
    %998 = vmatprep.subr.mxu0 0.0
    %999 = vmatpush2.msra.mxu0 0.0
    %1000 = vmatprep.subr.mxu0 0.0
    %1001 = vmatpush2.msra.mxu0 0.0
    %1002 = vmatprep.subr.mxu0 0.0
    %1003 = vmatpush2.msra.mxu0 0.0
    %1004 = vmatprep.subr.mxu0 0.0
    %1005 = vmatpush2.msra.mxu0 0.0
    %1006 = vmatprep.subr.mxu0 0.0
    %1007 = vmatpush2.msra.mxu0 0.0
    %1008 = vmatprep.subr.mxu0 0.0
    %1009 = vmatpush2.msra.mxu0 0.0
    %1010 = vmatprep.subr.mxu0 0.0
    %1011 = vmatpush2.msra.mxu0 0.0
    %1012 = vmatprep.subr.mxu0 0.0
    %1013 = vmatpush2.msra.mxu0 0.0
    %1014 = vmatprep.subr.mxu0 0.0
    %1015 = vmatpush2.msra.mxu0 0.0
    %1016 = vmatprep.subr.mxu0 0.0
    %1017 = vmatpush2.msra.mxu0 0.0
    %1018 = vmatprep.mubr.f32.mxu0 0.0
    %1019 = vmatmul.mubr.f32.gmra.mxu0 %v952
    %v1020 = vpop.f32.mrf.mxu0
    %v1021 = vadd.f32 0.0, %v1020
    %v1022 = vpop.f32.mrf.mxu0
    %v1023 = vadd.f32 0.0, %v1022
    %1024 = vdwg.mxu0
    %v1027 = vrot.slane %v1021, 4
    %v1028 = vrot.slane %v1023, 4
    %v1031 = vadd.f32 %v287, %v1027
    %v1032 = vadd.f32 %v289, %v1028
    %v1033 = vxor.u32 %v1031, 2147483648
    %v1034 = vmul.f32 %v1033, 1.442695
    %v1035 = vpow.pop %v1034
    %v1036 = vadd.f32 %v1035, 1.0
    %v1037 = vrcp.pop %v1036
    %v1038 = vmul.f32 1.0, %v1037
    %v1039 = vtanh.pop %v1032
    %v1040 = vxor.u32 %v1032, 2147483648
    %v1041 = vmul.f32 %v1040, 1.442695
    %v1042 = vpow.pop %v1041
    %v1043 = vadd.f32 %v1042, 1.0
    %v1044 = vrcp.pop %v1043
    %v1045 = vmul.f32 1.0, %v1044
    %v1047 = vrot.slane %v945, 6
    %v1049 = vmul.f32 %v1038, %v1047
    %v1050 = vmul.f32 %v1038, %v1039
    %1052 = vrot.lane.b32.xlu0 %v1050, 64
    %v1053 = vpop.permute.xlu0 %1052
    %v1055 = vadd.f32 %v1049, %v1053
    %v1056 = vtanh.pop %v1055
    %v1057 = vmul.f32 %v1045, %v1056
    %v1059 = vrot.slane %v1057, 4
    %1060 = vrot.lane.b32.xlu0 %v1059, 64
    %v1061 = vpop.permute.xlu0 %1060
    %v1062 = vsel %vm307, %v1061, 0
    %1064 = vmatprep.subr.mxu0 0.0
    %1065 = vmatpush1.msra.mxu0 0.0
    %1066 = vmatprep.subr.mxu0 0.0
    %1067 = vmatpush1.msra.mxu0 0.0
    %1068 = vmatprep.subr.mxu0 0.0
    %1069 = vmatpush1.msra.mxu0 0.0
    %1070 = vmatprep.subr.mxu0 0.0
    %1071 = vmatpush1.msra.mxu0 0.0
    %1072 = vmatprep.subr.mxu0 0.0
    %1073 = vmatpush1.msra.mxu0 0.0
    %1074 = vmatprep.subr.mxu0 0.0
    %1075 = vmatpush1.msra.mxu0 0.0
    %1076 = vmatprep.subr.mxu0 0.0
    %1077 = vmatpush1.msra.mxu0 0.0
    %1078 = vmatprep.subr.mxu0 0.0
    %1079 = vmatpush1.msra.mxu0 0.0
    %1080 = vmatprep.subr.mxu0 %v306
    %1081 = vmatpush1.msra.mxu0 %v305
    %1082 = vmatprep.subr.mxu0 %v304
    %1083 = vmatpush1.msra.mxu0 %v303
    %1084 = vmatprep.subr.mxu0 %v302
    %1085 = vmatpush1.msra.mxu0 %v301
    %1086 = vmatprep.subr.mxu0 %v300
    %1087 = vmatpush1.msra.mxu0 %v299
    %1088 = vmatprep.subr.mxu0 %v298
    %1089 = vmatpush1.msra.mxu0 %v297
    %1090 = vmatprep.subr.mxu0 %v296
    %1091 = vmatpush1.msra.mxu0 %v295
    %1092 = vmatprep.subr.mxu0 %v294
    %1093 = vmatpush1.msra.mxu0 %v293
    %1094 = vmatprep.subr.mxu0 %v292
    %1095 = vmatpush1.msra.mxu0 %v291
    %1096 = vmatprep.subr.mxu0 0.0
    %1097 = vmatpush2.msra.mxu0 0.0
    %1098 = vmatprep.subr.mxu0 0.0
    %1099 = vmatpush2.msra.mxu0 0.0
    %1100 = vmatprep.subr.mxu0 0.0
    %1101 = vmatpush2.msra.mxu0 0.0
    %1102 = vmatprep.subr.mxu0 0.0
    %1103 = vmatpush2.msra.mxu0 0.0
    %1104 = vmatprep.subr.mxu0 0.0
    %1105 = vmatpush2.msra.mxu0 0.0
    %1106 = vmatprep.subr.mxu0 0.0
    %1107 = vmatpush2.msra.mxu0 0.0
    %1108 = vmatprep.subr.mxu0 0.0
    %1109 = vmatpush2.msra.mxu0 0.0
    %1110 = vmatprep.subr.mxu0 0.0
    %1111 = vmatpush2.msra.mxu0 0.0
    %1112 = vmatprep.subr.mxu0 0.0
    %1113 = vmatpush2.msra.mxu0 0.0
    %1114 = vmatprep.subr.mxu0 0.0
    %1115 = vmatpush2.msra.mxu0 0.0
    %1116 = vmatprep.subr.mxu0 0.0
    %1117 = vmatpush2.msra.mxu0 0.0
    %1118 = vmatprep.subr.mxu0 0.0
    %1119 = vmatpush2.msra.mxu0 0.0
    %1120 = vmatprep.subr.mxu0 0.0
    %1121 = vmatpush2.msra.mxu0 0.0
    %1122 = vmatprep.subr.mxu0 0.0
    %1123 = vmatpush2.msra.mxu0 0.0
    %1124 = vmatprep.subr.mxu0 0.0
    %1125 = vmatpush2.msra.mxu0 0.0
    %1126 = vmatprep.subr.mxu0 0.0
    %1127 = vmatpush2.msra.mxu0 0.0
    %1128 = vmatprep.mubr.f32.mxu0 0.0
    %1129 = vmatmul.mubr.f32.gmra.mxu0 %v1062
    %v1130 = vpop.f32.mrf.mxu0
    %v1131 = vadd.f32 0.0, %v1130
    %v1132 = vpop.f32.mrf.mxu0
    %v1133 = vadd.f32 0.0, %v1132
    %1134 = vdwg.mxu0
    %v1137 = vrot.slane %v1131, 2
    %v1138 = vrot.slane %v1133, 2
    %v1141 = vadd.f32 %v287, %v1137
    %v1142 = vadd.f32 %v289, %v1138
    %v1143 = vxor.u32 %v1141, 2147483648
    %v1144 = vmul.f32 %v1143, 1.442695
    %v1145 = vpow.pop %v1144
    %v1146 = vadd.f32 %v1145, 1.0
    %v1147 = vrcp.pop %v1146
    %v1148 = vmul.f32 1.0, %v1147
    %v1149 = vtanh.pop %v1142
    %v1150 = vxor.u32 %v1142, 2147483648
    %v1151 = vmul.f32 %v1150, 1.442695
    %v1152 = vpow.pop %v1151
    %v1153 = vadd.f32 %v1152, 1.0
    %v1154 = vrcp.pop %v1153
    %v1155 = vmul.f32 1.0, %v1154
    %v1157 = vrot.slane %v1055, 6
    %v1159 = vmul.f32 %v1148, %v1157
    %v1160 = vmul.f32 %v1148, %v1149
    %1162 = vrot.lane.b32.xlu0 %v1160, 64
    %v1163 = vpop.permute.xlu0 %1162
    %v1165 = vadd.f32 %v1159, %v1163
    %v1166 = vtanh.pop %v1165
    %v1167 = vmul.f32 %v1155, %v1166
    %v1168 = vsel %vm161, %v405, %v514
    %v1169 = vsel %vm163, %v1168, %v624
    %v1170 = vsel %vm165, %v1169, %v734
    %v1171 = vsel %vm161, %v838, %v947
    %v1172 = vsel %vm163, %v1171, %v1057
    %v1173 = vsel %vm165, %v1172, %v1167
    %v1174 = vld [vmem:[#allocation8] sm:$0xff]
    %v1175 = vld [vmem:[#allocation8 + $0x8] sm:$0xff]
    %v1176 = vld [vmem:[#allocation8 + $0x10] sm:$0xff]
    %v1177 = vld [vmem:[#allocation8 + $0x18] sm:$0xff]
    %v1178 = vld [vmem:[#allocation8 + $0x20] sm:$0xff]
    %v1179 = vld [vmem:[#allocation8 + $0x28] sm:$0xff]
    %v1180 = vld [vmem:[#allocation8 + $0x30] sm:$0xff]
    %v1181 = vld [vmem:[#allocation8 + $0x38] sm:$0xff]
    %v1182 = vld [vmem:[%s6] sm:$0x1]
    %v1184 = vlaneseq
    %v1185 = vshrl.u32 %v1184, 7
    %v1186 = vsub.s32 0, %v1185
    %v1187 = vrot.slane %v1182, %v1186
    %1191 = vrot.lane.b32.xlu0 %v1170, 64
    %v1192 = vpop.permute.xlu0 %1191
    %1193 = vrot.lane.b32.xlu0 %v1173, 64
    %v1194 = vpop.permute.xlu0 %1193
    %v1195 = vsel %vm307, %v1192, 0
    %v1197 = vsel %vm307, %v1194, 0
    %1199 = vmatprep.subr.mxu0 0.0
    %1200 = vmatpush1.msra.mxu0 0.0
    %1201 = vmatprep.subr.mxu0 0.0
    %1202 = vmatpush1.msra.mxu0 0.0
    %1203 = vmatprep.subr.mxu0 0.0
    %1204 = vmatpush1.msra.mxu0 0.0
    %1205 = vmatprep.subr.mxu0 0.0
    %1206 = vmatpush1.msra.mxu0 0.0
    %1207 = vmatprep.subr.mxu0 0.0
    %1208 = vmatpush1.msra.mxu0 0.0
    %1209 = vmatprep.subr.mxu0 0.0
    %1210 = vmatpush1.msra.mxu0 0.0
    %1211 = vmatprep.subr.mxu0 0.0
    %1212 = vmatpush1.msra.mxu0 0.0
    %1213 = vmatprep.subr.mxu0 0.0
    %1214 = vmatpush1.msra.mxu0 0.0
    %1215 = vmatprep.subr.mxu0 0.0
    %1216 = vmatpush1.msra.mxu0 %v1181
    %1217 = vmatprep.subr.mxu0 0.0
    %1218 = vmatpush1.msra.mxu0 %v1180
    %1219 = vmatprep.subr.mxu0 0.0
    %1220 = vmatpush1.msra.mxu0 %v1179
    %1221 = vmatprep.subr.mxu0 0.0
    %1222 = vmatpush1.msra.mxu0 %v1178
    %1223 = vmatprep.subr.mxu0 0.0
    %1224 = vmatpush1.msra.mxu0 %v1177
    %1225 = vmatprep.subr.mxu0 0.0
    %1226 = vmatpush1.msra.mxu0 %v1176
    %1227 = vmatprep.subr.mxu0 0.0
    %1228 = vmatpush1.msra.mxu0 %v1175
    %1229 = vmatprep.subr.mxu0 0.0
    %1230 = vmatpush1.msra.mxu0 %v1174
    %1231 = vmatprep.subr.mxu0 0.0
    %1232 = vmatpush2.msra.mxu0 0.0
    %1233 = vmatprep.subr.mxu0 0.0
    %1234 = vmatpush2.msra.mxu0 0.0
    %1235 = vmatprep.subr.mxu0 0.0
    %1236 = vmatpush2.msra.mxu0 0.0
    %1237 = vmatprep.subr.mxu0 0.0
    %1238 = vmatpush2.msra.mxu0 0.0
    %1239 = vmatprep.subr.mxu0 0.0
    %1240 = vmatpush2.msra.mxu0 0.0
    %1241 = vmatprep.subr.mxu0 0.0
    %1242 = vmatpush2.msra.mxu0 0.0
    %1243 = vmatprep.subr.mxu0 0.0
    %1244 = vmatpush2.msra.mxu0 0.0
    %1245 = vmatprep.subr.mxu0 0.0
    %1246 = vmatpush2.msra.mxu0 0.0
    %1247 = vmatprep.subr.mxu0 0.0
    %1248 = vmatpush2.msra.mxu0 0.0
    %1249 = vmatprep.subr.mxu0 0.0
    %1250 = vmatpush2.msra.mxu0 0.0
    %1251 = vmatprep.subr.mxu0 0.0
    %1252 = vmatpush2.msra.mxu0 0.0
    %1253 = vmatprep.subr.mxu0 0.0
    %1254 = vmatpush2.msra.mxu0 0.0
    %1255 = vmatprep.subr.mxu0 0.0
    %1256 = vmatpush2.msra.mxu0 0.0
    %1257 = vmatprep.subr.mxu0 0.0
    %1258 = vmatpush2.msra.mxu0 0.0
    %1259 = vmatprep.subr.mxu0 0.0
    %1260 = vmatpush2.msra.mxu0 0.0
    %1261 = vmatprep.subr.mxu0 0.0
    %1262 = vmatpush2.msra.mxu0 0.0
    %1263 = vmatprep.mubr.f32.mxu0 0.0
    %1264 = vmatmul.mubr.f32.gmra.mxu0 %v1195
    %v1265 = vpop.f32.mrf.mxu0
    %v1266 = vadd.f32 %v1187, %v1265
    %v1267 = vpop.f32.mrf.mxu0
    %1268 = vmatprep.mubr.f32.mxu0 0.0
    %1269 = vmatmul.mubr.f32.gmra.mxu0 %v1197
    %v1270 = vpop.f32.mrf.mxu0
    %v1271 = vadd.f32 %v1187, %v1270
    %v1272 = vpop.f32.mrf.mxu0
    %1273 = vdwg.mxu0
    %v1274 = vld [vmem:[#allocation10] sm:$0xff]
    %v1275 = vld [vmem:[#allocation10 + $0x8] sm:$0xff]
    %v1276 = vld [vmem:[#allocation10 + $0x10] sm:$0xff]
    %v1277 = vld [vmem:[#allocation10 + $0x18] sm:$0xff]
    %vm1278 = vcmask 261120
    %v1279 = vsel %vm1278, 0.0, 0
    %1281 = vmatprep.subr.mxu0 0.0
    %1282 = vmatpush1.msra.mxu0 0.0
    %1283 = vmatprep.subr.mxu0 0.0
    %1284 = vmatpush1.msra.mxu0 0.0
    %1285 = vmatprep.subr.mxu0 0.0
    %1286 = vmatpush1.msra.mxu0 0.0
    %1287 = vmatprep.subr.mxu0 0.0
    %1288 = vmatpush1.msra.mxu0 0.0
    %1289 = vmatprep.subr.mxu0 0.0
    %1290 = vmatpush1.msra.mxu0 0.0
    %1291 = vmatprep.subr.mxu0 0.0
    %1292 = vmatpush1.msra.mxu0 0.0
    %1293 = vmatprep.subr.mxu0 0.0
    %1294 = vmatpush1.msra.mxu0 0.0
    %1295 = vmatprep.subr.mxu0 0.0
    %1296 = vmatpush1.msra.mxu0 0.0
    %1297 = vmatprep.subr.mxu0 0.0
    %1298 = vmatpush1.msra.mxu0 0.0
    %1299 = vmatprep.subr.mxu0 0.0
    %1300 = vmatpush1.msra.mxu0 0.0
    %1301 = vmatprep.subr.mxu0 0.0
    %1302 = vmatpush1.msra.mxu0 0.0
    %1303 = vmatprep.subr.mxu0 0.0
    %1304 = vmatpush1.msra.mxu0 0.0
    %1305 = vmatprep.subr.mxu0 0.0
    %1306 = vmatpush1.msra.mxu0 %v1277
    %1307 = vmatprep.subr.mxu0 0.0
    %1308 = vmatpush1.msra.mxu0 %v1276
    %1309 = vmatprep.subr.mxu0 0.0
    %1310 = vmatpush1.msra.mxu0 %v1275
    %1311 = vmatprep.subr.mxu0 0.0
    %1312 = vmatpush1.msra.mxu0 %v1274
    %1313 = vmatprep.subr.mxu0 0.0
    %1314 = vmatpush2.msra.mxu0 0.0
    %1315 = vmatprep.subr.mxu0 0.0
    %1316 = vmatpush2.msra.mxu0 0.0
    %1317 = vmatprep.subr.mxu0 0.0
    %1318 = vmatpush2.msra.mxu0 0.0
    %1319 = vmatprep.subr.mxu0 0.0
    %1320 = vmatpush2.msra.mxu0 0.0
    %1321 = vmatprep.subr.mxu0 0.0
    %1322 = vmatpush2.msra.mxu0 0.0
    %1323 = vmatprep.subr.mxu0 0.0
    %1324 = vmatpush2.msra.mxu0 0.0
    %1325 = vmatprep.subr.mxu0 0.0
    %1326 = vmatpush2.msra.mxu0 0.0
    %1327 = vmatprep.subr.mxu0 0.0
    %1328 = vmatpush2.msra.mxu0 0.0
    %1329 = vmatprep.subr.mxu0 0.0
    %1330 = vmatpush2.msra.mxu0 0.0
    %1331 = vmatprep.subr.mxu0 0.0
    %1332 = vmatpush2.msra.mxu0 0.0
    %1333 = vmatprep.subr.mxu0 0.0
    %1334 = vmatpush2.msra.mxu0 0.0
    %1335 = vmatprep.subr.mxu0 0.0
    %1336 = vmatpush2.msra.mxu0 0.0
    %1337 = vmatprep.subr.mxu0 0.0
    %1338 = vmatpush2.msra.mxu0 0.0
    %1339 = vmatprep.subr.mxu0 0.0
    %1340 = vmatpush2.msra.mxu0 0.0
    %1341 = vmatprep.subr.mxu0 0.0
    %1342 = vmatpush2.msra.mxu0 0.0
    %1343 = vmatprep.subr.mxu0 0.0
    %1344 = vmatpush2.msra.mxu0 0.0
    %1345 = vmatprep.mubr.f32.mxu0 0.0
    %1346 = vmatmul.mubr.f32.gmra.mxu0 %v1279
    %v1347 = vpop.f32.mrf.mxu0
    %v1348 = vadd.f32 0.0, %v1347
    %v1349 = vpop.f32.mrf.mxu0
    %1350 = vdwg.mxu0
    %v1351 = vadd.f32 %v1266, %v1348
    %v1352 = vxor.u32 %v1351, 2147483648
    %v1353 = vmul.f32 %v1352, 1.442695
    %v1354 = vpow.pop %v1353
    %v1355 = vadd.f32 %v1354, 1.0
    %v1356 = vrcp.pop %v1355
    %v1357 = vmul.f32 1.0, %v1356
    %v1358 = vtanh.pop %v1351
    %v1359 = vmul.f32 %v1357, 0.0
    %1361 = vrot.lane.b32.xlu0 %v1358, 64
    %v1362 = vpop.permute.xlu0 %1361
    %v1364 = vmul.f32 %v1357, %v1362
    %1366 = vrot.lane.b32.xlu0 %v1364, 32
    %v1367 = vpop.permute.xlu0 %1366
    %v1369 = vadd.f32 %v1359, %v1367
    %v1370 = vtanh.pop %v1369
    %1372 = vrot.lane.b32.xlu0 %v1370, 64
    %v1373 = vpop.permute.xlu0 %1372
    %v1375 = vmul.f32 %v1357, %v1373
    %1377 = vrot.lane.b32.xlu0 %v1375, 32
    %v1378 = vpop.permute.xlu0 %1377
    %v1379 = vsel %vm1278, %v1378, 0
    %1381 = vmatprep.subr.mxu0 0.0
    %1382 = vmatpush1.msra.mxu0 0.0
    %1383 = vmatprep.subr.mxu0 0.0
    %1384 = vmatpush1.msra.mxu0 0.0
    %1385 = vmatprep.subr.mxu0 0.0
    %1386 = vmatpush1.msra.mxu0 0.0
    %1387 = vmatprep.subr.mxu0 0.0
    %1388 = vmatpush1.msra.mxu0 0.0
    %1389 = vmatprep.subr.mxu0 0.0
    %1390 = vmatpush1.msra.mxu0 0.0
    %1391 = vmatprep.subr.mxu0 0.0
    %1392 = vmatpush1.msra.mxu0 0.0
    %1393 = vmatprep.subr.mxu0 0.0
    %1394 = vmatpush1.msra.mxu0 0.0
    %1395 = vmatprep.subr.mxu0 0.0
    %1396 = vmatpush1.msra.mxu0 0.0
    %1397 = vmatprep.subr.mxu0 0.0
    %1398 = vmatpush1.msra.mxu0 0.0
    %1399 = vmatprep.subr.mxu0 0.0
    %1400 = vmatpush1.msra.mxu0 0.0
    %1401 = vmatprep.subr.mxu0 0.0
    %1402 = vmatpush1.msra.mxu0 0.0
    %1403 = vmatprep.subr.mxu0 0.0
    %1404 = vmatpush1.msra.mxu0 0.0
    %1405 = vmatprep.subr.mxu0 0.0
    %1406 = vmatpush1.msra.mxu0 %v1277
    %1407 = vmatprep.subr.mxu0 0.0
    %1408 = vmatpush1.msra.mxu0 %v1276
    %1409 = vmatprep.subr.mxu0 0.0
    %1410 = vmatpush1.msra.mxu0 %v1275
    %1411 = vmatprep.subr.mxu0 0.0
    %1412 = vmatpush1.msra.mxu0 %v1274
    %1413 = vmatprep.subr.mxu0 0.0
    %1414 = vmatpush2.msra.mxu0 0.0
    %1415 = vmatprep.subr.mxu0 0.0
    %1416 = vmatpush2.msra.mxu0 0.0
    %1417 = vmatprep.subr.mxu0 0.0
    %1418 = vmatpush2.msra.mxu0 0.0
    %1419 = vmatprep.subr.mxu0 0.0
    %1420 = vmatpush2.msra.mxu0 0.0
    %1421 = vmatprep.subr.mxu0 0.0
    %1422 = vmatpush2.msra.mxu0 0.0
    %1423 = vmatprep.subr.mxu0 0.0
    %1424 = vmatpush2.msra.mxu0 0.0
    %1425 = vmatprep.subr.mxu0 0.0
    %1426 = vmatpush2.msra.mxu0 0.0
    %1427 = vmatprep.subr.mxu0 0.0
    %1428 = vmatpush2.msra.mxu0 0.0
    %1429 = vmatprep.subr.mxu0 0.0
    %1430 = vmatpush2.msra.mxu0 0.0
    %1431 = vmatprep.subr.mxu0 0.0
    %1432 = vmatpush2.msra.mxu0 0.0
    %1433 = vmatprep.subr.mxu0 0.0
    %1434 = vmatpush2.msra.mxu0 0.0
    %1435 = vmatprep.subr.mxu0 0.0
    %1436 = vmatpush2.msra.mxu0 0.0
    %1437 = vmatprep.subr.mxu0 0.0
    %1438 = vmatpush2.msra.mxu0 0.0
    %1439 = vmatprep.subr.mxu0 0.0
    %1440 = vmatpush2.msra.mxu0 0.0
    %1441 = vmatprep.subr.mxu0 0.0
    %1442 = vmatpush2.msra.mxu0 0.0
    %1443 = vmatprep.subr.mxu0 0.0
    %1444 = vmatpush2.msra.mxu0 0.0
    %1445 = vmatprep.mubr.f32.mxu0 0.0
    %1446 = vmatmul.mubr.f32.gmra.mxu0 %v1379
    %v1447 = vpop.f32.mrf.mxu0
    %v1448 = vadd.f32 0.0, %v1447
    %v1449 = vpop.f32.mrf.mxu0
    %1450 = vdwg.mxu0
    %v1452 = vrot.slane %v1448, 6
    %v1454 = vadd.f32 %v1266, %v1452
    %v1455 = vxor.u32 %v1454, 2147483648
    %v1456 = vmul.f32 %v1455, 1.442695
    %v1457 = vpow.pop %v1456
    %v1458 = vadd.f32 %v1457, 1.0
    %v1459 = vrcp.pop %v1458
    %v1460 = vmul.f32 1.0, %v1459
    %v1461 = vtanh.pop %v1454
    %v1463 = vrot.slane %v1369, 6
    %v1465 = vmul.f32 %v1460, %v1463
    %1467 = vrot.lane.b32.xlu0 %v1461, 64
    %v1468 = vpop.permute.xlu0 %1467
    %v1470 = vmul.f32 %v1460, %v1468
    %1472 = vrot.lane.b32.xlu0 %v1470, 32
    %v1473 = vpop.permute.xlu0 %1472
    %v1475 = vadd.f32 %v1465, %v1473
    %v1476 = vtanh.pop %v1475
    %1478 = vrot.lane.b32.xlu0 %v1476, 64
    %v1479 = vpop.permute.xlu0 %1478
    %v1481 = vmul.f32 %v1460, %v1479
    %v1483 = vrot.slane %v1481, 2
    %1484 = vrot.lane.b32.xlu0 %v1483, 32
    %v1485 = vpop.permute.xlu0 %1484
    %v1486 = vsel %vm1278, %v1485, 0
    %1488 = vmatprep.subr.mxu0 0.0
    %1489 = vmatpush1.msra.mxu0 0.0
    %1490 = vmatprep.subr.mxu0 0.0
    %1491 = vmatpush1.msra.mxu0 0.0
    %1492 = vmatprep.subr.mxu0 0.0
    %1493 = vmatpush1.msra.mxu0 0.0
    %1494 = vmatprep.subr.mxu0 0.0
    %1495 = vmatpush1.msra.mxu0 0.0
    %1496 = vmatprep.subr.mxu0 0.0
    %1497 = vmatpush1.msra.mxu0 0.0
    %1498 = vmatprep.subr.mxu0 0.0
    %1499 = vmatpush1.msra.mxu0 0.0
    %1500 = vmatprep.subr.mxu0 0.0
    %1501 = vmatpush1.msra.mxu0 0.0
    %1502 = vmatprep.subr.mxu0 0.0
    %1503 = vmatpush1.msra.mxu0 0.0
    %1504 = vmatprep.subr.mxu0 0.0
    %1505 = vmatpush1.msra.mxu0 0.0
    %1506 = vmatprep.subr.mxu0 0.0
    %1507 = vmatpush1.msra.mxu0 0.0
    %1508 = vmatprep.subr.mxu0 0.0
    %1509 = vmatpush1.msra.mxu0 0.0
    %1510 = vmatprep.subr.mxu0 0.0
    %1511 = vmatpush1.msra.mxu0 0.0
    %1512 = vmatprep.subr.mxu0 0.0
    %1513 = vmatpush1.msra.mxu0 %v1277
    %1514 = vmatprep.subr.mxu0 0.0
    %1515 = vmatpush1.msra.mxu0 %v1276
    %1516 = vmatprep.subr.mxu0 0.0
    %1517 = vmatpush1.msra.mxu0 %v1275
    %1518 = vmatprep.subr.mxu0 0.0
    %1519 = vmatpush1.msra.mxu0 %v1274
    %1520 = vmatprep.subr.mxu0 0.0
    %1521 = vmatpush2.msra.mxu0 0.0
    %1522 = vmatprep.subr.mxu0 0.0
    %1523 = vmatpush2.msra.mxu0 0.0
    %1524 = vmatprep.subr.mxu0 0.0
    %1525 = vmatpush2.msra.mxu0 0.0
    %1526 = vmatprep.subr.mxu0 0.0
    %1527 = vmatpush2.msra.mxu0 0.0
    %1528 = vmatprep.subr.mxu0 0.0
    %1529 = vmatpush2.msra.mxu0 0.0
    %1530 = vmatprep.subr.mxu0 0.0
    %1531 = vmatpush2.msra.mxu0 0.0
    %1532 = vmatprep.subr.mxu0 0.0
    %1533 = vmatpush2.msra.mxu0 0.0
    %1534 = vmatprep.subr.mxu0 0.0
    %1535 = vmatpush2.msra.mxu0 0.0
    %1536 = vmatprep.subr.mxu0 0.0
    %1537 = vmatpush2.msra.mxu0 0.0
    %1538 = vmatprep.subr.mxu0 0.0
    %1539 = vmatpush2.msra.mxu0 0.0
    %1540 = vmatprep.subr.mxu0 0.0
    %1541 = vmatpush2.msra.mxu0 0.0
    %1542 = vmatprep.subr.mxu0 0.0
    %1543 = vmatpush2.msra.mxu0 0.0
    %1544 = vmatprep.subr.mxu0 0.0
    %1545 = vmatpush2.msra.mxu0 0.0
    %1546 = vmatprep.subr.mxu0 0.0
    %1547 = vmatpush2.msra.mxu0 0.0
    %1548 = vmatprep.subr.mxu0 0.0
    %1549 = vmatpush2.msra.mxu0 0.0
    %1550 = vmatprep.subr.mxu0 0.0
    %1551 = vmatpush2.msra.mxu0 0.0
    %1552 = vmatprep.mubr.f32.mxu0 0.0
    %1553 = vmatmul.mubr.f32.gmra.mxu0 %v1486
    %v1554 = vpop.f32.mrf.mxu0
    %v1555 = vadd.f32 0.0, %v1554
    %v1556 = vpop.f32.mrf.mxu0
    %1557 = vdwg.mxu0
    %v1559 = vrot.slane %v1555, 4
    %v1561 = vadd.f32 %v1266, %v1559
    %v1562 = vxor.u32 %v1561, 2147483648
    %v1563 = vmul.f32 %v1562, 1.442695
    %v1564 = vpow.pop %v1563
    %v1565 = vadd.f32 %v1564, 1.0
    %v1566 = vrcp.pop %v1565
    %v1567 = vmul.f32 1.0, %v1566
    %v1568 = vtanh.pop %v1561
    %v1570 = vrot.slane %v1475, 6
    %v1572 = vmul.f32 %v1567, %v1570
    %1574 = vrot.lane.b32.xlu0 %v1568, 64
    %v1575 = vpop.permute.xlu0 %1574
    %v1577 = vmul.f32 %v1567, %v1575
    %1579 = vrot.lane.b32.xlu0 %v1577, 32
    %v1580 = vpop.permute.xlu0 %1579
    %v1582 = vadd.f32 %v1572, %v1580
    %v1583 = vtanh.pop %v1582
    %1585 = vrot.lane.b32.xlu0 %v1583, 64
    %v1586 = vpop.permute.xlu0 %1585
    %v1588 = vmul.f32 %v1567, %v1586
    %v1590 = vrot.slane %v1588, 4
    %1591 = vrot.lane.b32.xlu0 %v1590, 32
    %v1592 = vpop.permute.xlu0 %1591
    %v1593 = vsel %vm1278, %v1592, 0
    %1595 = vmatprep.subr.mxu0 0.0
    %1596 = vmatpush1.msra.mxu0 0.0
    %1597 = vmatprep.subr.mxu0 0.0
    %1598 = vmatpush1.msra.mxu0 0.0
    %1599 = vmatprep.subr.mxu0 0.0
    %1600 = vmatpush1.msra.mxu0 0.0
    %1601 = vmatprep.subr.mxu0 0.0
    %1602 = vmatpush1.msra.mxu0 0.0
    %1603 = vmatprep.subr.mxu0 0.0
    %1604 = vmatpush1.msra.mxu0 0.0
    %1605 = vmatprep.subr.mxu0 0.0
    %1606 = vmatpush1.msra.mxu0 0.0
    %1607 = vmatprep.subr.mxu0 0.0
    %1608 = vmatpush1.msra.mxu0 0.0
    %1609 = vmatprep.subr.mxu0 0.0
    %1610 = vmatpush1.msra.mxu0 0.0
    %1611 = vmatprep.subr.mxu0 0.0
    %1612 = vmatpush1.msra.mxu0 0.0
    %1613 = vmatprep.subr.mxu0 0.0
    %1614 = vmatpush1.msra.mxu0 0.0
    %1615 = vmatprep.subr.mxu0 0.0
    %1616 = vmatpush1.msra.mxu0 0.0
    %1617 = vmatprep.subr.mxu0 0.0
    %1618 = vmatpush1.msra.mxu0 0.0
    %1619 = vmatprep.subr.mxu0 0.0
    %1620 = vmatpush1.msra.mxu0 %v1277
    %1621 = vmatprep.subr.mxu0 0.0
    %1622 = vmatpush1.msra.mxu0 %v1276
    %1623 = vmatprep.subr.mxu0 0.0
    %1624 = vmatpush1.msra.mxu0 %v1275
    %1625 = vmatprep.subr.mxu0 0.0
    %1626 = vmatpush1.msra.mxu0 %v1274
    %1627 = vmatprep.subr.mxu0 0.0
    %1628 = vmatpush2.msra.mxu0 0.0
    %1629 = vmatprep.subr.mxu0 0.0
    %1630 = vmatpush2.msra.mxu0 0.0
    %1631 = vmatprep.subr.mxu0 0.0
    %1632 = vmatpush2.msra.mxu0 0.0
    %1633 = vmatprep.subr.mxu0 0.0
    %1634 = vmatpush2.msra.mxu0 0.0
    %1635 = vmatprep.subr.mxu0 0.0
    %1636 = vmatpush2.msra.mxu0 0.0
    %1637 = vmatprep.subr.mxu0 0.0
    %1638 = vmatpush2.msra.mxu0 0.0
    %1639 = vmatprep.subr.mxu0 0.0
    %1640 = vmatpush2.msra.mxu0 0.0
    %1641 = vmatprep.subr.mxu0 0.0
    %1642 = vmatpush2.msra.mxu0 0.0
    %1643 = vmatprep.subr.mxu0 0.0
    %1644 = vmatpush2.msra.mxu0 0.0
    %1645 = vmatprep.subr.mxu0 0.0
    %1646 = vmatpush2.msra.mxu0 0.0
    %1647 = vmatprep.subr.mxu0 0.0
    %1648 = vmatpush2.msra.mxu0 0.0
    %1649 = vmatprep.subr.mxu0 0.0
    %1650 = vmatpush2.msra.mxu0 0.0
    %1651 = vmatprep.subr.mxu0 0.0
    %1652 = vmatpush2.msra.mxu0 0.0
    %1653 = vmatprep.subr.mxu0 0.0
    %1654 = vmatpush2.msra.mxu0 0.0
    %1655 = vmatprep.subr.mxu0 0.0
    %1656 = vmatpush2.msra.mxu0 0.0
    %1657 = vmatprep.subr.mxu0 0.0
    %1658 = vmatpush2.msra.mxu0 0.0
    %1659 = vmatprep.mubr.f32.mxu0 0.0
    %1660 = vmatmul.mubr.f32.gmra.mxu0 %v1593
    %v1661 = vpop.f32.mrf.mxu0
    %v1662 = vadd.f32 0.0, %v1661
    %v1663 = vpop.f32.mrf.mxu0
    %1664 = vdwg.mxu0
    %v1666 = vrot.slane %v1662, 2
    %v1668 = vadd.f32 %v1266, %v1666
    %v1669 = vxor.u32 %v1668, 2147483648
    %v1670 = vmul.f32 %v1669, 1.442695
    %v1671 = vpow.pop %v1670
    %v1672 = vadd.f32 %v1671, 1.0
    %v1673 = vrcp.pop %v1672
    %v1674 = vmul.f32 1.0, %v1673
    %v1675 = vtanh.pop %v1668
    %v1677 = vrot.slane %v1582, 6
    %v1679 = vmul.f32 %v1674, %v1677
    %1681 = vrot.lane.b32.xlu0 %v1675, 64
    %v1682 = vpop.permute.xlu0 %1681
    %v1684 = vmul.f32 %v1674, %v1682
    %1686 = vrot.lane.b32.xlu0 %v1684, 32
    %v1687 = vpop.permute.xlu0 %1686
    %v1689 = vadd.f32 %v1679, %v1687
    %v1690 = vtanh.pop %v1689
    %1692 = vrot.lane.b32.xlu0 %v1690, 64
    %v1693 = vpop.permute.xlu0 %1692
    %v1695 = vmul.f32 %v1674, %v1693
    %v1697 = vrot.slane %v1695, 6
    %1698 = vrot.lane.b32.xlu0 %v1697, 32
    %v1699 = vpop.permute.xlu0 %1698
    %v1700 = vsel %vm1278, %v1699, 0
    %1702 = vmatprep.subr.mxu0 0.0
    %1703 = vmatpush1.msra.mxu0 0.0
    %1704 = vmatprep.subr.mxu0 0.0
    %1705 = vmatpush1.msra.mxu0 0.0
    %1706 = vmatprep.subr.mxu0 0.0
    %1707 = vmatpush1.msra.mxu0 0.0
    %1708 = vmatprep.subr.mxu0 0.0
    %1709 = vmatpush1.msra.mxu0 0.0
    %1710 = vmatprep.subr.mxu0 0.0
    %1711 = vmatpush1.msra.mxu0 0.0
    %1712 = vmatprep.subr.mxu0 0.0
    %1713 = vmatpush1.msra.mxu0 0.0
    %1714 = vmatprep.subr.mxu0 0.0
    %1715 = vmatpush1.msra.mxu0 0.0
    %1716 = vmatprep.subr.mxu0 0.0
    %1717 = vmatpush1.msra.mxu0 0.0
    %1718 = vmatprep.subr.mxu0 0.0
    %1719 = vmatpush1.msra.mxu0 0.0
    %1720 = vmatprep.subr.mxu0 0.0
    %1721 = vmatpush1.msra.mxu0 0.0
    %1722 = vmatprep.subr.mxu0 0.0
    %1723 = vmatpush1.msra.mxu0 0.0
    %1724 = vmatprep.subr.mxu0 0.0
    %1725 = vmatpush1.msra.mxu0 0.0
    %1726 = vmatprep.subr.mxu0 0.0
    %1727 = vmatpush1.msra.mxu0 %v1277
    %1728 = vmatprep.subr.mxu0 0.0
    %1729 = vmatpush1.msra.mxu0 %v1276
    %1730 = vmatprep.subr.mxu0 0.0
    %1731 = vmatpush1.msra.mxu0 %v1275
    %1732 = vmatprep.subr.mxu0 0.0
    %1733 = vmatpush1.msra.mxu0 %v1274
    %1734 = vmatprep.subr.mxu0 0.0
    %1735 = vmatpush2.msra.mxu0 0.0
    %1736 = vmatprep.subr.mxu0 0.0
    %1737 = vmatpush2.msra.mxu0 0.0
    %1738 = vmatprep.subr.mxu0 0.0
    %1739 = vmatpush2.msra.mxu0 0.0
    %1740 = vmatprep.subr.mxu0 0.0
    %1741 = vmatpush2.msra.mxu0 0.0
    %1742 = vmatprep.subr.mxu0 0.0
    %1743 = vmatpush2.msra.mxu0 0.0
    %1744 = vmatprep.subr.mxu0 0.0
    %1745 = vmatpush2.msra.mxu0 0.0
    %1746 = vmatprep.subr.mxu0 0.0
    %1747 = vmatpush2.msra.mxu0 0.0
    %1748 = vmatprep.subr.mxu0 0.0
    %1749 = vmatpush2.msra.mxu0 0.0
    %1750 = vmatprep.subr.mxu0 0.0
    %1751 = vmatpush2.msra.mxu0 0.0
    %1752 = vmatprep.subr.mxu0 0.0
    %1753 = vmatpush2.msra.mxu0 0.0
    %1754 = vmatprep.subr.mxu0 0.0
    %1755 = vmatpush2.msra.mxu0 0.0
    %1756 = vmatprep.subr.mxu0 0.0
    %1757 = vmatpush2.msra.mxu0 0.0
    %1758 = vmatprep.subr.mxu0 0.0
    %1759 = vmatpush2.msra.mxu0 0.0
    %1760 = vmatprep.subr.mxu0 0.0
    %1761 = vmatpush2.msra.mxu0 0.0
    %1762 = vmatprep.subr.mxu0 0.0
    %1763 = vmatpush2.msra.mxu0 0.0
    %1764 = vmatprep.subr.mxu0 0.0
    %1765 = vmatpush2.msra.mxu0 0.0
    %1766 = vmatprep.mubr.f32.mxu0 0.0
    %1767 = vmatmul.mubr.f32.gmra.mxu0 %v1700
    %v1768 = vpop.f32.mrf.mxu0
    %v1769 = vadd.f32 0.0, %v1768
    %v1770 = vpop.f32.mrf.mxu0
    %1771 = vdwg.mxu0
    %v1772 = vadd.f32 %v1271, %v1769
    %v1773 = vxor.u32 %v1772, 2147483648
    %v1774 = vmul.f32 %v1773, 1.442695
    %v1775 = vpow.pop %v1774
    %v1776 = vadd.f32 %v1775, 1.0
    %v1777 = vrcp.pop %v1776
    %v1778 = vmul.f32 1.0, %v1777
    %v1779 = vtanh.pop %v1772
    %v1781 = vrot.slane %v1689, 6
    %v1783 = vmul.f32 %v1778, %v1781
    %1785 = vrot.lane.b32.xlu0 %v1779, 64
    %v1786 = vpop.permute.xlu0 %1785
    %v1788 = vmul.f32 %v1778, %v1786
    %1790 = vrot.lane.b32.xlu0 %v1788, 32
    %v1791 = vpop.permute.xlu0 %1790
    %v1793 = vadd.f32 %v1783, %v1791
    %v1794 = vtanh.pop %v1793
    %1796 = vrot.lane.b32.xlu0 %v1794, 64
    %v1797 = vpop.permute.xlu0 %1796
    %v1799 = vmul.f32 %v1778, %v1797
    %1801 = vrot.lane.b32.xlu0 %v1799, 32
    %v1802 = vpop.permute.xlu0 %1801
    %v1803 = vsel %vm1278, %v1802, 0
    %1805 = vmatprep.subr.mxu0 0.0
    %1806 = vmatpush1.msra.mxu0 0.0
    %1807 = vmatprep.subr.mxu0 0.0
    %1808 = vmatpush1.msra.mxu0 0.0
    %1809 = vmatprep.subr.mxu0 0.0
    %1810 = vmatpush1.msra.mxu0 0.0
    %1811 = vmatprep.subr.mxu0 0.0
    %1812 = vmatpush1.msra.mxu0 0.0
    %1813 = vmatprep.subr.mxu0 0.0
    %1814 = vmatpush1.msra.mxu0 0.0
    %1815 = vmatprep.subr.mxu0 0.0
    %1816 = vmatpush1.msra.mxu0 0.0
    %1817 = vmatprep.subr.mxu0 0.0
    %1818 = vmatpush1.msra.mxu0 0.0
    %1819 = vmatprep.subr.mxu0 0.0
    %1820 = vmatpush1.msra.mxu0 0.0
    %1821 = vmatprep.subr.mxu0 0.0
    %1822 = vmatpush1.msra.mxu0 0.0
    %1823 = vmatprep.subr.mxu0 0.0
    %1824 = vmatpush1.msra.mxu0 0.0
    %1825 = vmatprep.subr.mxu0 0.0
    %1826 = vmatpush1.msra.mxu0 0.0
    %1827 = vmatprep.subr.mxu0 0.0
    %1828 = vmatpush1.msra.mxu0 0.0
    %1829 = vmatprep.subr.mxu0 0.0
    %1830 = vmatpush1.msra.mxu0 %v1277
    %1831 = vmatprep.subr.mxu0 0.0
    %1832 = vmatpush1.msra.mxu0 %v1276
    %1833 = vmatprep.subr.mxu0 0.0
    %1834 = vmatpush1.msra.mxu0 %v1275
    %1835 = vmatprep.subr.mxu0 0.0
    %1836 = vmatpush1.msra.mxu0 %v1274
    %1837 = vmatprep.subr.mxu0 0.0
    %1838 = vmatpush2.msra.mxu0 0.0
    %1839 = vmatprep.subr.mxu0 0.0
    %1840 = vmatpush2.msra.mxu0 0.0
    %1841 = vmatprep.subr.mxu0 0.0
    %1842 = vmatpush2.msra.mxu0 0.0
    %1843 = vmatprep.subr.mxu0 0.0
    %1844 = vmatpush2.msra.mxu0 0.0
    %1845 = vmatprep.subr.mxu0 0.0
    %1846 = vmatpush2.msra.mxu0 0.0
    %1847 = vmatprep.subr.mxu0 0.0
    %1848 = vmatpush2.msra.mxu0 0.0
    %1849 = vmatprep.subr.mxu0 0.0
    %1850 = vmatpush2.msra.mxu0 0.0
    %1851 = vmatprep.subr.mxu0 0.0
    %1852 = vmatpush2.msra.mxu0 0.0
    %1853 = vmatprep.subr.mxu0 0.0
    %1854 = vmatpush2.msra.mxu0 0.0
    %1855 = vmatprep.subr.mxu0 0.0
    %1856 = vmatpush2.msra.mxu0 0.0
    %1857 = vmatprep.subr.mxu0 0.0
    %1858 = vmatpush2.msra.mxu0 0.0
    %1859 = vmatprep.subr.mxu0 0.0
    %1860 = vmatpush2.msra.mxu0 0.0
    %1861 = vmatprep.subr.mxu0 0.0
    %1862 = vmatpush2.msra.mxu0 0.0
    %1863 = vmatprep.subr.mxu0 0.0
    %1864 = vmatpush2.msra.mxu0 0.0
    %1865 = vmatprep.subr.mxu0 0.0
    %1866 = vmatpush2.msra.mxu0 0.0
    %1867 = vmatprep.subr.mxu0 0.0
    %1868 = vmatpush2.msra.mxu0 0.0
    %1869 = vmatprep.mubr.f32.mxu0 0.0
    %1870 = vmatmul.mubr.f32.gmra.mxu0 %v1803
    %v1871 = vpop.f32.mrf.mxu0
    %v1872 = vadd.f32 0.0, %v1871
    %v1873 = vpop.f32.mrf.mxu0
    %1874 = vdwg.mxu0
    %v1876 = vrot.slane %v1872, 6
    %v1878 = vadd.f32 %v1271, %v1876
    %v1879 = vxor.u32 %v1878, 2147483648
    %v1880 = vmul.f32 %v1879, 1.442695
    %v1881 = vpow.pop %v1880
    %v1882 = vadd.f32 %v1881, 1.0
    %v1883 = vrcp.pop %v1882
    %v1884 = vmul.f32 1.0, %v1883
    %v1885 = vtanh.pop %v1878
    %v1887 = vrot.slane %v1793, 6
    %v1889 = vmul.f32 %v1884, %v1887
    %1891 = vrot.lane.b32.xlu0 %v1885, 64
    %v1892 = vpop.permute.xlu0 %1891
    %v1894 = vmul.f32 %v1884, %v1892
    %1896 = vrot.lane.b32.xlu0 %v1894, 32
    %v1897 = vpop.permute.xlu0 %1896
    %v1899 = vadd.f32 %v1889, %v1897
    %v1900 = vtanh.pop %v1899
    %1902 = vrot.lane.b32.xlu0 %v1900, 64
    %v1903 = vpop.permute.xlu0 %1902
    %v1905 = vmul.f32 %v1884, %v1903
    %v1907 = vrot.slane %v1905, 2
    %1908 = vrot.lane.b32.xlu0 %v1907, 32
    %v1909 = vpop.permute.xlu0 %1908
    %v1910 = vsel %vm1278, %v1909, 0
    %1912 = vmatprep.subr.mxu0 0.0
    %1913 = vmatpush1.msra.mxu0 0.0
    %1914 = vmatprep.subr.mxu0 0.0
    %1915 = vmatpush1.msra.mxu0 0.0
    %1916 = vmatprep.subr.mxu0 0.0
    %1917 = vmatpush1.msra.mxu0 0.0
    %1918 = vmatprep.subr.mxu0 0.0
    %1919 = vmatpush1.msra.mxu0 0.0
    %1920 = vmatprep.subr.mxu0 0.0
    %1921 = vmatpush1.msra.mxu0 0.0
    %1922 = vmatprep.subr.mxu0 0.0
    %1923 = vmatpush1.msra.mxu0 0.0
    %1924 = vmatprep.subr.mxu0 0.0
    %1925 = vmatpush1.msra.mxu0 0.0
    %1926 = vmatprep.subr.mxu0 0.0
    %1927 = vmatpush1.msra.mxu0 0.0
    %1928 = vmatprep.subr.mxu0 0.0
    %1929 = vmatpush1.msra.mxu0 0.0
    %1930 = vmatprep.subr.mxu0 0.0
    %1931 = vmatpush1.msra.mxu0 0.0
    %1932 = vmatprep.subr.mxu0 0.0
    %1933 = vmatpush1.msra.mxu0 0.0
    %1934 = vmatprep.subr.mxu0 0.0
    %1935 = vmatpush1.msra.mxu0 0.0
    %1936 = vmatprep.subr.mxu0 0.0
    %1937 = vmatpush1.msra.mxu0 %v1277
    %1938 = vmatprep.subr.mxu0 0.0
    %1939 = vmatpush1.msra.mxu0 %v1276
    %1940 = vmatprep.subr.mxu0 0.0
    %1941 = vmatpush1.msra.mxu0 %v1275
    %1942 = vmatprep.subr.mxu0 0.0
    %1943 = vmatpush1.msra.mxu0 %v1274
    %1944 = vmatprep.subr.mxu0 0.0
    %1945 = vmatpush2.msra.mxu0 0.0
    %1946 = vmatprep.subr.mxu0 0.0
    %1947 = vmatpush2.msra.mxu0 0.0
    %1948 = vmatprep.subr.mxu0 0.0
    %1949 = vmatpush2.msra.mxu0 0.0
    %1950 = vmatprep.subr.mxu0 0.0
    %1951 = vmatpush2.msra.mxu0 0.0
    %1952 = vmatprep.subr.mxu0 0.0
    %1953 = vmatpush2.msra.mxu0 0.0
    %1954 = vmatprep.subr.mxu0 0.0
    %1955 = vmatpush2.msra.mxu0 0.0
    %1956 = vmatprep.subr.mxu0 0.0
    %1957 = vmatpush2.msra.mxu0 0.0
    %1958 = vmatprep.subr.mxu0 0.0
    %1959 = vmatpush2.msra.mxu0 0.0
    %1960 = vmatprep.subr.mxu0 0.0
    %1961 = vmatpush2.msra.mxu0 0.0
    %1962 = vmatprep.subr.mxu0 0.0
    %1963 = vmatpush2.msra.mxu0 0.0
    %1964 = vmatprep.subr.mxu0 0.0
    %1965 = vmatpush2.msra.mxu0 0.0
    %1966 = vmatprep.subr.mxu0 0.0
    %1967 = vmatpush2.msra.mxu0 0.0
    %1968 = vmatprep.subr.mxu0 0.0
    %1969 = vmatpush2.msra.mxu0 0.0
    %1970 = vmatprep.subr.mxu0 0.0
    %1971 = vmatpush2.msra.mxu0 0.0
    %1972 = vmatprep.subr.mxu0 0.0
    %1973 = vmatpush2.msra.mxu0 0.0
    %1974 = vmatprep.subr.mxu0 0.0
    %1975 = vmatpush2.msra.mxu0 0.0
    %1976 = vmatprep.mubr.f32.mxu0 0.0
    %1977 = vmatmul.mubr.f32.gmra.mxu0 %v1910
    %v1978 = vpop.f32.mrf.mxu0
    %v1979 = vadd.f32 0.0, %v1978
    %v1980 = vpop.f32.mrf.mxu0
    %1981 = vdwg.mxu0
    %v1983 = vrot.slane %v1979, 4
    %v1985 = vadd.f32 %v1271, %v1983
    %v1986 = vxor.u32 %v1985, 2147483648
    %v1987 = vmul.f32 %v1986, 1.442695
    %v1988 = vpow.pop %v1987
    %v1989 = vadd.f32 %v1988, 1.0
    %v1990 = vrcp.pop %v1989
    %v1991 = vmul.f32 1.0, %v1990
    %v1992 = vtanh.pop %v1985
    %v1994 = vrot.slane %v1899, 6
    %v1996 = vmul.f32 %v1991, %v1994
    %1998 = vrot.lane.b32.xlu0 %v1992, 64
    %v1999 = vpop.permute.xlu0 %1998
    %v2001 = vmul.f32 %v1991, %v1999
    %2003 = vrot.lane.b32.xlu0 %v2001, 32
    %v2004 = vpop.permute.xlu0 %2003
    %v2006 = vadd.f32 %v1996, %v2004
    %v2007 = vtanh.pop %v2006
    %2009 = vrot.lane.b32.xlu0 %v2007, 64
    %v2010 = vpop.permute.xlu0 %2009
    %v2012 = vmul.f32 %v1991, %v2010
    %v2014 = vrot.slane %v2012, 4
    %2015 = vrot.lane.b32.xlu0 %v2014, 32
    %v2016 = vpop.permute.xlu0 %2015
    %v2017 = vsel %vm1278, %v2016, 0
    %2019 = vmatprep.subr.mxu0 0.0
    %2020 = vmatpush1.msra.mxu0 0.0
    %2021 = vmatprep.subr.mxu0 0.0
    %2022 = vmatpush1.msra.mxu0 0.0
    %2023 = vmatprep.subr.mxu0 0.0
    %2024 = vmatpush1.msra.mxu0 0.0
    %2025 = vmatprep.subr.mxu0 0.0
    %2026 = vmatpush1.msra.mxu0 0.0
    %2027 = vmatprep.subr.mxu0 0.0
    %2028 = vmatpush1.msra.mxu0 0.0
    %2029 = vmatprep.subr.mxu0 0.0
    %2030 = vmatpush1.msra.mxu0 0.0
    %2031 = vmatprep.subr.mxu0 0.0
    %2032 = vmatpush1.msra.mxu0 0.0
    %2033 = vmatprep.subr.mxu0 0.0
    %2034 = vmatpush1.msra.mxu0 0.0
    %2035 = vmatprep.subr.mxu0 0.0
    %2036 = vmatpush1.msra.mxu0 0.0
    %2037 = vmatprep.subr.mxu0 0.0
    %2038 = vmatpush1.msra.mxu0 0.0
    %2039 = vmatprep.subr.mxu0 0.0
    %2040 = vmatpush1.msra.mxu0 0.0
    %2041 = vmatprep.subr.mxu0 0.0
    %2042 = vmatpush1.msra.mxu0 0.0
    %2043 = vmatprep.subr.mxu0 0.0
    %2044 = vmatpush1.msra.mxu0 %v1277
    %2045 = vmatprep.subr.mxu0 0.0
    %2046 = vmatpush1.msra.mxu0 %v1276
    %2047 = vmatprep.subr.mxu0 0.0
    %2048 = vmatpush1.msra.mxu0 %v1275
    %2049 = vmatprep.subr.mxu0 0.0
    %2050 = vmatpush1.msra.mxu0 %v1274
    %2051 = vmatprep.subr.mxu0 0.0
    %2052 = vmatpush2.msra.mxu0 0.0
    %2053 = vmatprep.subr.mxu0 0.0
    %2054 = vmatpush2.msra.mxu0 0.0
    %2055 = vmatprep.subr.mxu0 0.0
    %2056 = vmatpush2.msra.mxu0 0.0
    %2057 = vmatprep.subr.mxu0 0.0
    %2058 = vmatpush2.msra.mxu0 0.0
    %2059 = vmatprep.subr.mxu0 0.0
    %2060 = vmatpush2.msra.mxu0 0.0
    %2061 = vmatprep.subr.mxu0 0.0
    %2062 = vmatpush2.msra.mxu0 0.0
    %2063 = vmatprep.subr.mxu0 0.0
    %2064 = vmatpush2.msra.mxu0 0.0
    %2065 = vmatprep.subr.mxu0 0.0
    %2066 = vmatpush2.msra.mxu0 0.0
    %2067 = vmatprep.subr.mxu0 0.0
    %2068 = vmatpush2.msra.mxu0 0.0
    %2069 = vmatprep.subr.mxu0 0.0
    %2070 = vmatpush2.msra.mxu0 0.0
    %2071 = vmatprep.subr.mxu0 0.0
    %2072 = vmatpush2.msra.mxu0 0.0
    %2073 = vmatprep.subr.mxu0 0.0
    %2074 = vmatpush2.msra.mxu0 0.0
    %2075 = vmatprep.subr.mxu0 0.0
    %2076 = vmatpush2.msra.mxu0 0.0
    %2077 = vmatprep.subr.mxu0 0.0
    %2078 = vmatpush2.msra.mxu0 0.0
    %2079 = vmatprep.subr.mxu0 0.0
    %2080 = vmatpush2.msra.mxu0 0.0
    %2081 = vmatprep.subr.mxu0 0.0
    %2082 = vmatpush2.msra.mxu0 0.0
    %2083 = vmatprep.mubr.f32.mxu0 0.0
    %2084 = vmatmul.mubr.f32.gmra.mxu0 %v2017
    %v2085 = vpop.f32.mrf.mxu0
    %v2086 = vadd.f32 0.0, %v2085
    %v2087 = vpop.f32.mrf.mxu0
    %2088 = vdwg.mxu0
    %v2090 = vrot.slane %v2086, 2
    %v2092 = vadd.f32 %v1271, %v2090
    %v2093 = vxor.u32 %v2092, 2147483648
    %v2094 = vmul.f32 %v2093, 1.442695
    %v2095 = vpow.pop %v2094
    %v2096 = vadd.f32 %v2095, 1.0
    %v2097 = vrcp.pop %v2096
    %v2098 = vmul.f32 1.0, %v2097
    %v2099 = vtanh.pop %v2092
    %v2101 = vrot.slane %v2006, 6
    %v2103 = vmul.f32 %v2098, %v2101
    %2105 = vrot.lane.b32.xlu0 %v2099, 64
    %v2106 = vpop.permute.xlu0 %2105
    %v2108 = vmul.f32 %v2098, %v2106
    %2110 = vrot.lane.b32.xlu0 %v2108, 32
    %v2111 = vpop.permute.xlu0 %2110
    %v2113 = vadd.f32 %v2103, %v2111
    %v2114 = vtanh.pop %v2113
    %2116 = vrot.lane.b32.xlu0 %v2114, 64
    %v2117 = vpop.permute.xlu0 %2116
    %v2119 = vmul.f32 %v2098, %v2117
    %v2120 = vsel %vm161, %v1375, %v1481
    %v2121 = vsel %vm163, %v2120, %v1588
    %v2122 = vsel %vm165, %v2121, %v1695
    %v2123 = vsel %vm161, %v1799, %v1905
    %v2124 = vsel %vm163, %v2123, %v2012
    %v2125 = vsel %vm165, %v2124, %v2119
    %v2126 = vld [vmem:[#allocation11] sm:$0xff]
    %v2127 = vld [vmem:[#allocation11 + $0x8] sm:$0xff]
    %v2128 = vld [vmem:[#allocation11 + $0x10] sm:$0xff]
    %v2129 = vld [vmem:[#allocation11 + $0x18] sm:$0xff]
    %v2130 = vld [vmem:[%s9] sm:$0x1]
    %v2132 = vlaneseq
    %v2133 = vshrl.u32 %v2132, 7
    %v2134 = vsub.s32 0, %v2133
    %v2135 = vrot.slane %v2130, %v2134
    %2139 = vrot.lane.b32.xlu0 %v2122, 32
    %v2140 = vpop.permute.xlu0 %2139
    %2141 = vrot.lane.b32.xlu0 %v2125, 32
    %v2142 = vpop.permute.xlu0 %2141
    %v2143 = vsel %vm1278, %v2140, 0
    %v2145 = vsel %vm1278, %v2142, 0
    %2147 = vmatprep.subr.mxu0 0.0
    %2148 = vmatpush1.msra.mxu0 0.0
    %2149 = vmatprep.subr.mxu0 0.0
    %2150 = vmatpush1.msra.mxu0 0.0
    %2151 = vmatprep.subr.mxu0 0.0
    %2152 = vmatpush1.msra.mxu0 0.0
    %2153 = vmatprep.subr.mxu0 0.0
    %2154 = vmatpush1.msra.mxu0 0.0
    %2155 = vmatprep.subr.mxu0 0.0
    %2156 = vmatpush1.msra.mxu0 0.0
    %2157 = vmatprep.subr.mxu0 0.0
    %2158 = vmatpush1.msra.mxu0 0.0
    %2159 = vmatprep.subr.mxu0 0.0
    %2160 = vmatpush1.msra.mxu0 0.0
    %2161 = vmatprep.subr.mxu0 0.0
    %2162 = vmatpush1.msra.mxu0 0.0
    %2163 = vmatprep.subr.mxu0 0.0
    %2164 = vmatpush1.msra.mxu0 0.0
    %2165 = vmatprep.subr.mxu0 0.0
    %2166 = vmatpush1.msra.mxu0 0.0
    %2167 = vmatprep.subr.mxu0 0.0
    %2168 = vmatpush1.msra.mxu0 0.0
    %2169 = vmatprep.subr.mxu0 0.0
    %2170 = vmatpush1.msra.mxu0 0.0
    %2171 = vmatprep.subr.mxu0 0.0
    %2172 = vmatpush1.msra.mxu0 %v2129
    %2173 = vmatprep.subr.mxu0 0.0
    %2174 = vmatpush1.msra.mxu0 %v2128
    %2175 = vmatprep.subr.mxu0 0.0
    %2176 = vmatpush1.msra.mxu0 %v2127
    %2177 = vmatprep.subr.mxu0 0.0
    %2178 = vmatpush1.msra.mxu0 %v2126
    %2179 = vmatprep.subr.mxu0 0.0
    %2180 = vmatpush2.msra.mxu0 0.0
    %2181 = vmatprep.subr.mxu0 0.0
    %2182 = vmatpush2.msra.mxu0 0.0
    %2183 = vmatprep.subr.mxu0 0.0
    %2184 = vmatpush2.msra.mxu0 0.0
    %2185 = vmatprep.subr.mxu0 0.0
    %2186 = vmatpush2.msra.mxu0 0.0
    %2187 = vmatprep.subr.mxu0 0.0
    %2188 = vmatpush2.msra.mxu0 0.0
    %2189 = vmatprep.subr.mxu0 0.0
    %2190 = vmatpush2.msra.mxu0 0.0
    %2191 = vmatprep.subr.mxu0 0.0
    %2192 = vmatpush2.msra.mxu0 0.0
    %2193 = vmatprep.subr.mxu0 0.0
    %2194 = vmatpush2.msra.mxu0 0.0
    %2195 = vmatprep.subr.mxu0 0.0
    %2196 = vmatpush2.msra.mxu0 0.0
    %2197 = vmatprep.subr.mxu0 0.0
    %2198 = vmatpush2.msra.mxu0 0.0
    %2199 = vmatprep.subr.mxu0 0.0
    %2200 = vmatpush2.msra.mxu0 0.0
    %2201 = vmatprep.subr.mxu0 0.0
    %2202 = vmatpush2.msra.mxu0 0.0
    %2203 = vmatprep.subr.mxu0 0.0
    %2204 = vmatpush2.msra.mxu0 0.0
    %2205 = vmatprep.subr.mxu0 0.0
    %2206 = vmatpush2.msra.mxu0 0.0
    %2207 = vmatprep.subr.mxu0 0.0
    %2208 = vmatpush2.msra.mxu0 0.0
    %2209 = vmatprep.subr.mxu0 0.0
    %2210 = vmatpush2.msra.mxu0 0.0
    %2211 = vmatprep.mubr.f32.mxu0 0.0
    %2212 = vmatmul.mubr.f32.gmra.mxu0 %v2143
    %v2213 = vpop.f32.mrf.mxu0
    %v2214 = vadd.f32 %v2135, %v2213
    %v2215 = vpop.f32.mrf.mxu0
    %2216 = vmatprep.mubr.f32.mxu0 0.0
    %2217 = vmatmul.mubr.f32.gmra.mxu0 %v2145
    %v2218 = vpop.f32.mrf.mxu0
    %v2219 = vadd.f32 %v2135, %v2218
    %v2220 = vpop.f32.mrf.mxu0
    %2221 = vdwg.mxu0
    %v2222 = vld [vmem:[%s8] sm:$0xff]
    %v2223 = vld [vmem:[%s8 + $0x8] sm:$0xff]
    %vm2224 = vcmask 130048
    %v2225 = vsel %vm2224, 0.0, 0
    %2227 = vmatprep.subr.mxu0 0.0
    %2228 = vmatpush1.msra.mxu0 0.0
    %2229 = vmatprep.subr.mxu0 0.0
    %2230 = vmatpush1.msra.mxu0 0.0
    %2231 = vmatprep.subr.mxu0 0.0
    %2232 = vmatpush1.msra.mxu0 0.0
    %2233 = vmatprep.subr.mxu0 0.0
    %2234 = vmatpush1.msra.mxu0 0.0
    %2235 = vmatprep.subr.mxu0 0.0
    %2236 = vmatpush1.msra.mxu0 0.0
    %2237 = vmatprep.subr.mxu0 0.0
    %2238 = vmatpush1.msra.mxu0 0.0
    %2239 = vmatprep.subr.mxu0 0.0
    %2240 = vmatpush1.msra.mxu0 0.0
    %2241 = vmatprep.subr.mxu0 0.0
    %2242 = vmatpush1.msra.mxu0 0.0
    %2243 = vmatprep.subr.mxu0 0.0
    %2244 = vmatpush1.msra.mxu0 0.0
    %2245 = vmatprep.subr.mxu0 0.0
    %2246 = vmatpush1.msra.mxu0 0.0
    %2247 = vmatprep.subr.mxu0 0.0
    %2248 = vmatpush1.msra.mxu0 0.0
    %2249 = vmatprep.subr.mxu0 0.0
    %2250 = vmatpush1.msra.mxu0 0.0
    %2251 = vmatprep.subr.mxu0 0.0
    %2252 = vmatpush1.msra.mxu0 0.0
    %2253 = vmatprep.subr.mxu0 0.0
    %2254 = vmatpush1.msra.mxu0 0.0
    %2255 = vmatprep.subr.mxu0 0.0
    %2256 = vmatpush1.msra.mxu0 %v2223
    %2257 = vmatprep.subr.mxu0 0.0
    %2258 = vmatpush1.msra.mxu0 %v2222
    %2259 = vmatprep.subr.mxu0 0.0
    %2260 = vmatpush2.msra.mxu0 0.0
    %2261 = vmatprep.subr.mxu0 0.0
    %2262 = vmatpush2.msra.mxu0 0.0
    %2263 = vmatprep.subr.mxu0 0.0
    %2264 = vmatpush2.msra.mxu0 0.0
    %2265 = vmatprep.subr.mxu0 0.0
    %2266 = vmatpush2.msra.mxu0 0.0
    %2267 = vmatprep.subr.mxu0 0.0
    %2268 = vmatpush2.msra.mxu0 0.0
    %2269 = vmatprep.subr.mxu0 0.0
    %2270 = vmatpush2.msra.mxu0 0.0
    %2271 = vmatprep.subr.mxu0 0.0
    %2272 = vmatpush2.msra.mxu0 0.0
    %2273 = vmatprep.subr.mxu0 0.0
    %2274 = vmatpush2.msra.mxu0 0.0
    %2275 = vmatprep.subr.mxu0 0.0
    %2276 = vmatpush2.msra.mxu0 0.0
    %2277 = vmatprep.subr.mxu0 0.0
    %2278 = vmatpush2.msra.mxu0 0.0
    %2279 = vmatprep.subr.mxu0 0.0
    %2280 = vmatpush2.msra.mxu0 0.0
    %2281 = vmatprep.subr.mxu0 0.0
    %2282 = vmatpush2.msra.mxu0 0.0
    %2283 = vmatprep.subr.mxu0 0.0
    %2284 = vmatpush2.msra.mxu0 0.0
    %2285 = vmatprep.subr.mxu0 0.0
    %2286 = vmatpush2.msra.mxu0 0.0
    %2287 = vmatprep.subr.mxu0 0.0
    %2288 = vmatpush2.msra.mxu0 0.0
    %2289 = vmatprep.subr.mxu0 0.0
    %2290 = vmatpush2.msra.mxu0 0.0
    %2291 = vmatprep.mubr.f32.mxu0 0.0
    %2292 = vmatmul.mubr.f32.gmra.mxu0 %v2225
    %v2293 = vpop.f32.mrf.mxu0
    %v2294 = vadd.f32 0.0, %v2293
    %v2295 = vpop.f32.mrf.mxu0
    %2296 = vdwg.mxu0
    %v2297 = vadd.f32 %v2214, %v2294
    %v2298 = vxor.u32 %v2297, 2147483648
    %v2299 = vmul.f32 %v2298, 1.442695
    %v2300 = vpow.pop %v2299
    %v2301 = vadd.f32 %v2300, 1.0
    %v2302 = vrcp.pop %v2301
    %v2303 = vmul.f32 1.0, %v2302
    %v2304 = vtanh.pop %v2297
    %v2305 = vmul.f32 %v2303, 0.0
    %2307 = vrot.lane.b32.xlu0 %v2304, 96
    %v2308 = vpop.permute.xlu0 %2307
    %v2310 = vmul.f32 %v2303, %v2308
    %2312 = vrot.lane.b32.xlu0 %v2310, 16
    %v2313 = vpop.permute.xlu0 %2312
    %v2315 = vadd.f32 %v2305, %v2313
    %v2316 = vtanh.pop %v2315
    %2318 = vrot.lane.b32.xlu0 %v2316, 32
    %v2319 = vpop.permute.xlu0 %2318
    %v2321 = vmul.f32 %v2303, %v2319
    %2323 = vrot.lane.b32.xlu0 %v2321, 80
    %v2324 = vpop.permute.xlu0 %2323
    %v2325 = vsel %vm2224, %v2324, 0
    %2327 = vmatprep.subr.mxu0 0.0
    %2328 = vmatpush1.msra.mxu0 0.0
    %2329 = vmatprep.subr.mxu0 0.0
    %2330 = vmatpush1.msra.mxu0 0.0
    %2331 = vmatprep.subr.mxu0 0.0
    %2332 = vmatpush1.msra.mxu0 0.0
    %2333 = vmatprep.subr.mxu0 0.0
    %2334 = vmatpush1.msra.mxu0 0.0
    %2335 = vmatprep.subr.mxu0 0.0
    %2336 = vmatpush1.msra.mxu0 0.0
    %2337 = vmatprep.subr.mxu0 0.0
    %2338 = vmatpush1.msra.mxu0 0.0
    %2339 = vmatprep.subr.mxu0 0.0
    %2340 = vmatpush1.msra.mxu0 0.0
    %2341 = vmatprep.subr.mxu0 0.0
    %2342 = vmatpush1.msra.mxu0 0.0
    %2343 = vmatprep.subr.mxu0 0.0
    %2344 = vmatpush1.msra.mxu0 0.0
    %2345 = vmatprep.subr.mxu0 0.0
    %2346 = vmatpush1.msra.mxu0 0.0
    %2347 = vmatprep.subr.mxu0 0.0
    %2348 = vmatpush1.msra.mxu0 0.0
    %2349 = vmatprep.subr.mxu0 0.0
    %2350 = vmatpush1.msra.mxu0 0.0
    %2351 = vmatprep.subr.mxu0 0.0
    %2352 = vmatpush1.msra.mxu0 0.0
    %2353 = vmatprep.subr.mxu0 0.0
    %2354 = vmatpush1.msra.mxu0 0.0
    %2355 = vmatprep.subr.mxu0 0.0
    %2356 = vmatpush1.msra.mxu0 %v2223
    %2357 = vmatprep.subr.mxu0 0.0
    %2358 = vmatpush1.msra.mxu0 %v2222
    %2359 = vmatprep.subr.mxu0 0.0
    %2360 = vmatpush2.msra.mxu0 0.0
    %2361 = vmatprep.subr.mxu0 0.0
    %2362 = vmatpush2.msra.mxu0 0.0
    %2363 = vmatprep.subr.mxu0 0.0
    %2364 = vmatpush2.msra.mxu0 0.0
    %2365 = vmatprep.subr.mxu0 0.0
    %2366 = vmatpush2.msra.mxu0 0.0
    %2367 = vmatprep.subr.mxu0 0.0
    %2368 = vmatpush2.msra.mxu0 0.0
    %2369 = vmatprep.subr.mxu0 0.0
    %2370 = vmatpush2.msra.mxu0 0.0
    %2371 = vmatprep.subr.mxu0 0.0
    %2372 = vmatpush2.msra.mxu0 0.0
    %2373 = vmatprep.subr.mxu0 0.0
    %2374 = vmatpush2.msra.mxu0 0.0
    %2375 = vmatprep.subr.mxu0 0.0
    %2376 = vmatpush2.msra.mxu0 0.0
    %2377 = vmatprep.subr.mxu0 0.0
    %2378 = vmatpush2.msra.mxu0 0.0
    %2379 = vmatprep.subr.mxu0 0.0
    %2380 = vmatpush2.msra.mxu0 0.0
    %2381 = vmatprep.subr.mxu0 0.0
    %2382 = vmatpush2.msra.mxu0 0.0
    %2383 = vmatprep.subr.mxu0 0.0
    %2384 = vmatpush2.msra.mxu0 0.0
    %2385 = vmatprep.subr.mxu0 0.0
    %2386 = vmatpush2.msra.mxu0 0.0
    %2387 = vmatprep.subr.mxu0 0.0
    %2388 = vmatpush2.msra.mxu0 0.0
    %2389 = vmatprep.subr.mxu0 0.0
    %2390 = vmatpush2.msra.mxu0 0.0
    %2391 = vmatprep.mubr.f32.mxu0 0.0
    %2392 = vmatmul.mubr.f32.gmra.mxu0 %v2325
    %v2393 = vpop.f32.mrf.mxu0
    %v2394 = vadd.f32 0.0, %v2393
    %v2395 = vpop.f32.mrf.mxu0
    %2396 = vdwg.mxu0
    %v2398 = vrot.slane %v2394, 6
    %v2400 = vadd.f32 %v2214, %v2398
    %v2401 = vxor.u32 %v2400, 2147483648
    %v2402 = vmul.f32 %v2401, 1.442695
    %v2403 = vpow.pop %v2402
    %v2404 = vadd.f32 %v2403, 1.0
    %v2405 = vrcp.pop %v2404
    %v2406 = vmul.f32 1.0, %v2405
    %v2407 = vtanh.pop %v2400
    %v2409 = vrot.slane %v2315, 6
    %v2411 = vmul.f32 %v2406, %v2409
    %2413 = vrot.lane.b32.xlu0 %v2407, 96
    %v2414 = vpop.permute.xlu0 %2413
    %v2416 = vmul.f32 %v2406, %v2414
    %2418 = vrot.lane.b32.xlu0 %v2416, 16
    %v2419 = vpop.permute.xlu0 %2418
    %v2421 = vadd.f32 %v2411, %v2419
    %v2422 = vtanh.pop %v2421
    %2424 = vrot.lane.b32.xlu0 %v2422, 32
    %v2425 = vpop.permute.xlu0 %2424
    %v2427 = vmul.f32 %v2406, %v2425
    %v2429 = vrot.slane %v2427, 2
    %2430 = vrot.lane.b32.xlu0 %v2429, 80
    %v2431 = vpop.permute.xlu0 %2430
    %v2432 = vsel %vm2224, %v2431, 0
    %2434 = vmatprep.subr.mxu0 0.0
    %2435 = vmatpush1.msra.mxu0 0.0
    %2436 = vmatprep.subr.mxu0 0.0
    %2437 = vmatpush1.msra.mxu0 0.0
    %2438 = vmatprep.subr.mxu0 0.0
    %2439 = vmatpush1.msra.mxu0 0.0
    %2440 = vmatprep.subr.mxu0 0.0
    %2441 = vmatpush1.msra.mxu0 0.0
    %2442 = vmatprep.subr.mxu0 0.0
    %2443 = vmatpush1.msra.mxu0 0.0
    %2444 = vmatprep.subr.mxu0 0.0
    %2445 = vmatpush1.msra.mxu0 0.0
    %2446 = vmatprep.subr.mxu0 0.0
    %2447 = vmatpush1.msra.mxu0 0.0
    %2448 = vmatprep.subr.mxu0 0.0
    %2449 = vmatpush1.msra.mxu0 0.0
    %2450 = vmatprep.subr.mxu0 0.0
    %2451 = vmatpush1.msra.mxu0 0.0
    %2452 = vmatprep.subr.mxu0 0.0
    %2453 = vmatpush1.msra.mxu0 0.0
    %2454 = vmatprep.subr.mxu0 0.0
    %2455 = vmatpush1.msra.mxu0 0.0
    %2456 = vmatprep.subr.mxu0 0.0
    %2457 = vmatpush1.msra.mxu0 0.0
    %2458 = vmatprep.subr.mxu0 0.0
    %2459 = vmatpush1.msra.mxu0 0.0
    %2460 = vmatprep.subr.mxu0 0.0
    %2461 = vmatpush1.msra.mxu0 0.0
    %2462 = vmatprep.subr.mxu0 0.0
    %2463 = vmatpush1.msra.mxu0 %v2223
    %2464 = vmatprep.subr.mxu0 0.0
    %2465 = vmatpush1.msra.mxu0 %v2222
    %2466 = vmatprep.subr.mxu0 0.0
    %2467 = vmatpush2.msra.mxu0 0.0
    %2468 = vmatprep.subr.mxu0 0.0
    %2469 = vmatpush2.msra.mxu0 0.0
    %2470 = vmatprep.subr.mxu0 0.0
    %2471 = vmatpush2.msra.mxu0 0.0
    %2472 = vmatprep.subr.mxu0 0.0
    %2473 = vmatpush2.msra.mxu0 0.0
    %2474 = vmatprep.subr.mxu0 0.0
    %2475 = vmatpush2.msra.mxu0 0.0
    %2476 = vmatprep.subr.mxu0 0.0
    %2477 = vmatpush2.msra.mxu0 0.0
    %2478 = vmatprep.subr.mxu0 0.0
    %2479 = vmatpush2.msra.mxu0 0.0
    %2480 = vmatprep.subr.mxu0 0.0
    %2481 = vmatpush2.msra.mxu0 0.0
    %2482 = vmatprep.subr.mxu0 0.0
    %2483 = vmatpush2.msra.mxu0 0.0
    %2484 = vmatprep.subr.mxu0 0.0
    %2485 = vmatpush2.msra.mxu0 0.0
    %2486 = vmatprep.subr.mxu0 0.0
    %2487 = vmatpush2.msra.mxu0 0.0
    %2488 = vmatprep.subr.mxu0 0.0
    %2489 = vmatpush2.msra.mxu0 0.0
    %2490 = vmatprep.subr.mxu0 0.0
    %2491 = vmatpush2.msra.mxu0 0.0
    %2492 = vmatprep.subr.mxu0 0.0
    %2493 = vmatpush2.msra.mxu0 0.0
    %2494 = vmatprep.subr.mxu0 0.0
    %2495 = vmatpush2.msra.mxu0 0.0
    %2496 = vmatprep.subr.mxu0 0.0
    %2497 = vmatpush2.msra.mxu0 0.0
    %2498 = vmatprep.mubr.f32.mxu0 0.0
    %2499 = vmatmul.mubr.f32.gmra.mxu0 %v2432
    %v2500 = vpop.f32.mrf.mxu0
    %v2501 = vadd.f32 0.0, %v2500
    %v2502 = vpop.f32.mrf.mxu0
    %2503 = vdwg.mxu0
    %v2505 = vrot.slane %v2501, 4
    %v2507 = vadd.f32 %v2214, %v2505
    %v2508 = vxor.u32 %v2507, 2147483648
    %v2509 = vmul.f32 %v2508, 1.442695
    %v2510 = vpow.pop %v2509
    %v2511 = vadd.f32 %v2510, 1.0
    %v2512 = vrcp.pop %v2511
    %v2513 = vmul.f32 1.0, %v2512
    %v2514 = vtanh.pop %v2507
    %v2516 = vrot.slane %v2421, 6
    %v2518 = vmul.f32 %v2513, %v2516
    %2520 = vrot.lane.b32.xlu0 %v2514, 96
    %v2521 = vpop.permute.xlu0 %2520
    %v2523 = vmul.f32 %v2513, %v2521
    %2525 = vrot.lane.b32.xlu0 %v2523, 16
    %v2526 = vpop.permute.xlu0 %2525
    %v2528 = vadd.f32 %v2518, %v2526
    %v2529 = vtanh.pop %v2528
    %2531 = vrot.lane.b32.xlu0 %v2529, 32
    %v2532 = vpop.permute.xlu0 %2531
    %v2534 = vmul.f32 %v2513, %v2532
    %v2536 = vrot.slane %v2534, 4
    %2537 = vrot.lane.b32.xlu0 %v2536, 80
    %v2538 = vpop.permute.xlu0 %2537
    %v2539 = vsel %vm2224, %v2538, 0
    %2541 = vmatprep.subr.mxu0 0.0
    %2542 = vmatpush1.msra.mxu0 0.0
    %2543 = vmatprep.subr.mxu0 0.0
    %2544 = vmatpush1.msra.mxu0 0.0
    %2545 = vmatprep.subr.mxu0 0.0
    %2546 = vmatpush1.msra.mxu0 0.0
    %2547 = vmatprep.subr.mxu0 0.0
    %2548 = vmatpush1.msra.mxu0 0.0
    %2549 = vmatprep.subr.mxu0 0.0
    %2550 = vmatpush1.msra.mxu0 0.0
    %2551 = vmatprep.subr.mxu0 0.0
    %2552 = vmatpush1.msra.mxu0 0.0
    %2553 = vmatprep.subr.mxu0 0.0
    %2554 = vmatpush1.msra.mxu0 0.0
    %2555 = vmatprep.subr.mxu0 0.0
    %2556 = vmatpush1.msra.mxu0 0.0
    %2557 = vmatprep.subr.mxu0 0.0
    %2558 = vmatpush1.msra.mxu0 0.0
    %2559 = vmatprep.subr.mxu0 0.0
    %2560 = vmatpush1.msra.mxu0 0.0
    %2561 = vmatprep.subr.mxu0 0.0
    %2562 = vmatpush1.msra.mxu0 0.0
    %2563 = vmatprep.subr.mxu0 0.0
    %2564 = vmatpush1.msra.mxu0 0.0
    %2565 = vmatprep.subr.mxu0 0.0
    %2566 = vmatpush1.msra.mxu0 0.0
    %2567 = vmatprep.subr.mxu0 0.0
    %2568 = vmatpush1.msra.mxu0 0.0
    %2569 = vmatprep.subr.mxu0 0.0
    %2570 = vmatpush1.msra.mxu0 %v2223
    %2571 = vmatprep.subr.mxu0 0.0
    %2572 = vmatpush1.msra.mxu0 %v2222
    %2573 = vmatprep.subr.mxu0 0.0
    %2574 = vmatpush2.msra.mxu0 0.0
    %2575 = vmatprep.subr.mxu0 0.0
    %2576 = vmatpush2.msra.mxu0 0.0
    %2577 = vmatprep.subr.mxu0 0.0
    %2578 = vmatpush2.msra.mxu0 0.0
    %2579 = vmatprep.subr.mxu0 0.0
    %2580 = vmatpush2.msra.mxu0 0.0
    %2581 = vmatprep.subr.mxu0 0.0
    %2582 = vmatpush2.msra.mxu0 0.0
    %2583 = vmatprep.subr.mxu0 0.0
    %2584 = vmatpush2.msra.mxu0 0.0
    %2585 = vmatprep.subr.mxu0 0.0
    %2586 = vmatpush2.msra.mxu0 0.0
    %2587 = vmatprep.subr.mxu0 0.0
    %2588 = vmatpush2.msra.mxu0 0.0
    %2589 = vmatprep.subr.mxu0 0.0
    %2590 = vmatpush2.msra.mxu0 0.0
    %2591 = vmatprep.subr.mxu0 0.0
    %2592 = vmatpush2.msra.mxu0 0.0
    %2593 = vmatprep.subr.mxu0 0.0
    %2594 = vmatpush2.msra.mxu0 0.0
    %2595 = vmatprep.subr.mxu0 0.0
    %2596 = vmatpush2.msra.mxu0 0.0
    %2597 = vmatprep.subr.mxu0 0.0
    %2598 = vmatpush2.msra.mxu0 0.0
    %2599 = vmatprep.subr.mxu0 0.0
    %2600 = vmatpush2.msra.mxu0 0.0
    %2601 = vmatprep.subr.mxu0 0.0
    %2602 = vmatpush2.msra.mxu0 0.0
    %2603 = vmatprep.subr.mxu0 0.0
    %2604 = vmatpush2.msra.mxu0 0.0
    %2605 = vmatprep.mubr.f32.mxu0 0.0
    %2606 = vmatmul.mubr.f32.gmra.mxu0 %v2539
    %v2607 = vpop.f32.mrf.mxu0
    %v2608 = vadd.f32 0.0, %v2607
    %v2609 = vpop.f32.mrf.mxu0
    %2610 = vdwg.mxu0
    %v2612 = vrot.slane %v2608, 2
    %v2614 = vadd.f32 %v2214, %v2612
    %v2615 = vxor.u32 %v2614, 2147483648
    %v2616 = vmul.f32 %v2615, 1.442695
    %v2617 = vpow.pop %v2616
    %v2618 = vadd.f32 %v2617, 1.0
    %v2619 = vrcp.pop %v2618
    %v2620 = vmul.f32 1.0, %v2619
    %v2621 = vtanh.pop %v2614
    %v2623 = vrot.slane %v2528, 6
    %v2625 = vmul.f32 %v2620, %v2623
    %2627 = vrot.lane.b32.xlu0 %v2621, 96
    %v2628 = vpop.permute.xlu0 %2627
    %v2630 = vmul.f32 %v2620, %v2628
    %2632 = vrot.lane.b32.xlu0 %v2630, 16
    %v2633 = vpop.permute.xlu0 %2632
    %v2635 = vadd.f32 %v2625, %v2633
    %v2636 = vtanh.pop %v2635
    %2638 = vrot.lane.b32.xlu0 %v2636, 32
    %v2639 = vpop.permute.xlu0 %2638
    %v2641 = vmul.f32 %v2620, %v2639
    %v2643 = vrot.slane %v2641, 6
    %2644 = vrot.lane.b32.xlu0 %v2643, 80
    %v2645 = vpop.permute.xlu0 %2644
    %v2646 = vsel %vm2224, %v2645, 0
    %2648 = vmatprep.subr.mxu0 0.0
    %2649 = vmatpush1.msra.mxu0 0.0
    %2650 = vmatprep.subr.mxu0 0.0
    %2651 = vmatpush1.msra.mxu0 0.0
    %2652 = vmatprep.subr.mxu0 0.0
    %2653 = vmatpush1.msra.mxu0 0.0
    %2654 = vmatprep.subr.mxu0 0.0
    %2655 = vmatpush1.msra.mxu0 0.0
    %2656 = vmatprep.subr.mxu0 0.0
    %2657 = vmatpush1.msra.mxu0 0.0
    %2658 = vmatprep.subr.mxu0 0.0
    %2659 = vmatpush1.msra.mxu0 0.0
    %2660 = vmatprep.subr.mxu0 0.0
    %2661 = vmatpush1.msra.mxu0 0.0
    %2662 = vmatprep.subr.mxu0 0.0
    %2663 = vmatpush1.msra.mxu0 0.0
    %2664 = vmatprep.subr.mxu0 0.0
    %2665 = vmatpush1.msra.mxu0 0.0
    %2666 = vmatprep.subr.mxu0 0.0
    %2667 = vmatpush1.msra.mxu0 0.0
    %2668 = vmatprep.subr.mxu0 0.0
    %2669 = vmatpush1.msra.mxu0 0.0
    %2670 = vmatprep.subr.mxu0 0.0
    %2671 = vmatpush1.msra.mxu0 0.0
    %2672 = vmatprep.subr.mxu0 0.0
    %2673 = vmatpush1.msra.mxu0 0.0
    %2674 = vmatprep.subr.mxu0 0.0
    %2675 = vmatpush1.msra.mxu0 0.0
    %2676 = vmatprep.subr.mxu0 0.0
    %2677 = vmatpush1.msra.mxu0 %v2223
    %2678 = vmatprep.subr.mxu0 0.0
    %2679 = vmatpush1.msra.mxu0 %v2222
    %2680 = vmatprep.subr.mxu0 0.0
    %2681 = vmatpush2.msra.mxu0 0.0
    %2682 = vmatprep.subr.mxu0 0.0
    %2683 = vmatpush2.msra.mxu0 0.0
    %2684 = vmatprep.subr.mxu0 0.0
    %2685 = vmatpush2.msra.mxu0 0.0
    %2686 = vmatprep.subr.mxu0 0.0
    %2687 = vmatpush2.msra.mxu0 0.0
    %2688 = vmatprep.subr.mxu0 0.0
    %2689 = vmatpush2.msra.mxu0 0.0
    %2690 = vmatprep.subr.mxu0 0.0
    %2691 = vmatpush2.msra.mxu0 0.0
    %2692 = vmatprep.subr.mxu0 0.0
    %2693 = vmatpush2.msra.mxu0 0.0
    %2694 = vmatprep.subr.mxu0 0.0
    %2695 = vmatpush2.msra.mxu0 0.0
    %2696 = vmatprep.subr.mxu0 0.0
    %2697 = vmatpush2.msra.mxu0 0.0
    %2698 = vmatprep.subr.mxu0 0.0
    %2699 = vmatpush2.msra.mxu0 0.0
    %2700 = vmatprep.subr.mxu0 0.0
    %2701 = vmatpush2.msra.mxu0 0.0
    %2702 = vmatprep.subr.mxu0 0.0
    %2703 = vmatpush2.msra.mxu0 0.0
    %2704 = vmatprep.subr.mxu0 0.0
    %2705 = vmatpush2.msra.mxu0 0.0
    %2706 = vmatprep.subr.mxu0 0.0
    %2707 = vmatpush2.msra.mxu0 0.0
    %2708 = vmatprep.subr.mxu0 0.0
    %2709 = vmatpush2.msra.mxu0 0.0
    %2710 = vmatprep.subr.mxu0 0.0
    %2711 = vmatpush2.msra.mxu0 0.0
    %2712 = vmatprep.mubr.f32.mxu0 0.0
    %2713 = vmatmul.mubr.f32.gmra.mxu0 %v2646
    %v2714 = vpop.f32.mrf.mxu0
    %v2715 = vadd.f32 0.0, %v2714
    %v2716 = vpop.f32.mrf.mxu0
    %2717 = vdwg.mxu0
    %v2718 = vadd.f32 %v2219, %v2715
    %v2719 = vxor.u32 %v2718, 2147483648
    %v2720 = vmul.f32 %v2719, 1.442695
    %v2721 = vpow.pop %v2720
    %v2722 = vadd.f32 %v2721, 1.0
    %v2723 = vrcp.pop %v2722
    %v2724 = vmul.f32 1.0, %v2723
    %v2725 = vtanh.pop %v2718
    %v2727 = vrot.slane %v2635, 6
    %v2729 = vmul.f32 %v2724, %v2727
    %2731 = vrot.lane.b32.xlu0 %v2725, 96
    %v2732 = vpop.permute.xlu0 %2731
    %v2734 = vmul.f32 %v2724, %v2732
    %2736 = vrot.lane.b32.xlu0 %v2734, 16
    %v2737 = vpop.permute.xlu0 %2736
    %v2739 = vadd.f32 %v2729, %v2737
    %v2740 = vtanh.pop %v2739
    %2742 = vrot.lane.b32.xlu0 %v2740, 32
    %v2743 = vpop.permute.xlu0 %2742
    %v2745 = vmul.f32 %v2724, %v2743
    %2747 = vrot.lane.b32.xlu0 %v2745, 80
    %v2748 = vpop.permute.xlu0 %2747
    %v2749 = vsel %vm2224, %v2748, 0
    %2751 = vmatprep.subr.mxu0 0.0
    %2752 = vmatpush1.msra.mxu0 0.0
    %2753 = vmatprep.subr.mxu0 0.0
    %2754 = vmatpush1.msra.mxu0 0.0
    %2755 = vmatprep.subr.mxu0 0.0
    %2756 = vmatpush1.msra.mxu0 0.0
    %2757 = vmatprep.subr.mxu0 0.0
    %2758 = vmatpush1.msra.mxu0 0.0
    %2759 = vmatprep.subr.mxu0 0.0
    %2760 = vmatpush1.msra.mxu0 0.0
    %2761 = vmatprep.subr.mxu0 0.0
    %2762 = vmatpush1.msra.mxu0 0.0
    %2763 = vmatprep.subr.mxu0 0.0
    %2764 = vmatpush1.msra.mxu0 0.0
    %2765 = vmatprep.subr.mxu0 0.0
    %2766 = vmatpush1.msra.mxu0 0.0
    %2767 = vmatprep.subr.mxu0 0.0
    %2768 = vmatpush1.msra.mxu0 0.0
    %2769 = vmatprep.subr.mxu0 0.0
    %2770 = vmatpush1.msra.mxu0 0.0
    %2771 = vmatprep.subr.mxu0 0.0
    %2772 = vmatpush1.msra.mxu0 0.0
    %2773 = vmatprep.subr.mxu0 0.0
    %2774 = vmatpush1.msra.mxu0 0.0
    %2775 = vmatprep.subr.mxu0 0.0
    %2776 = vmatpush1.msra.mxu0 0.0
    %2777 = vmatprep.subr.mxu0 0.0
    %2778 = vmatpush1.msra.mxu0 0.0
    %2779 = vmatprep.subr.mxu0 0.0
    %2780 = vmatpush1.msra.mxu0 %v2223
    %2781 = vmatprep.subr.mxu0 0.0
    %2782 = vmatpush1.msra.mxu0 %v2222
    %2783 = vmatprep.subr.mxu0 0.0
    %2784 = vmatpush2.msra.mxu0 0.0
    %2785 = vmatprep.subr.mxu0 0.0
    %2786 = vmatpush2.msra.mxu0 0.0
    %2787 = vmatprep.subr.mxu0 0.0
    %2788 = vmatpush2.msra.mxu0 0.0
    %2789 = vmatprep.subr.mxu0 0.0
    %2790 = vmatpush2.msra.mxu0 0.0
    %2791 = vmatprep.subr.mxu0 0.0
    %2792 = vmatpush2.msra.mxu0 0.0
    %2793 = vmatprep.subr.mxu0 0.0
    %2794 = vmatpush2.msra.mxu0 0.0
    %2795 = vmatprep.subr.mxu0 0.0
    %2796 = vmatpush2.msra.mxu0 0.0
    %2797 = vmatprep.subr.mxu0 0.0
    %2798 = vmatpush2.msra.mxu0 0.0
    %2799 = vmatprep.subr.mxu0 0.0
    %2800 = vmatpush2.msra.mxu0 0.0
    %2801 = vmatprep.subr.mxu0 0.0
    %2802 = vmatpush2.msra.mxu0 0.0
    %2803 = vmatprep.subr.mxu0 0.0
    %2804 = vmatpush2.msra.mxu0 0.0
    %2805 = vmatprep.subr.mxu0 0.0
    %2806 = vmatpush2.msra.mxu0 0.0
    %2807 = vmatprep.subr.mxu0 0.0
    %2808 = vmatpush2.msra.mxu0 0.0
    %2809 = vmatprep.subr.mxu0 0.0
    %2810 = vmatpush2.msra.mxu0 0.0
    %2811 = vmatprep.subr.mxu0 0.0
    %2812 = vmatpush2.msra.mxu0 0.0
    %2813 = vmatprep.subr.mxu0 0.0
    %2814 = vmatpush2.msra.mxu0 0.0
    %2815 = vmatprep.mubr.f32.mxu0 0.0
    %2816 = vmatmul.mubr.f32.gmra.mxu0 %v2749
    %v2817 = vpop.f32.mrf.mxu0
    %v2818 = vadd.f32 0.0, %v2817
    %v2819 = vpop.f32.mrf.mxu0
    %2820 = vdwg.mxu0
    %v2822 = vrot.slane %v2818, 6
    %v2824 = vadd.f32 %v2219, %v2822
    %v2825 = vxor.u32 %v2824, 2147483648
    %v2826 = vmul.f32 %v2825, 1.442695
    %v2827 = vpow.pop %v2826
    %v2828 = vadd.f32 %v2827, 1.0
    %v2829 = vrcp.pop %v2828
    %v2830 = vmul.f32 1.0, %v2829
    %v2831 = vtanh.pop %v2824
    %v2833 = vrot.slane %v2739, 6
    %v2835 = vmul.f32 %v2830, %v2833
    %2837 = vrot.lane.b32.xlu0 %v2831, 96
    %v2838 = vpop.permute.xlu0 %2837
    %v2840 = vmul.f32 %v2830, %v2838
    %2842 = vrot.lane.b32.xlu0 %v2840, 16
    %v2843 = vpop.permute.xlu0 %2842
    %v2845 = vadd.f32 %v2835, %v2843
    %v2846 = vtanh.pop %v2845
    %2848 = vrot.lane.b32.xlu0 %v2846, 32
    %v2849 = vpop.permute.xlu0 %2848
    %v2851 = vmul.f32 %v2830, %v2849
    %v2853 = vrot.slane %v2851, 2
    %2854 = vrot.lane.b32.xlu0 %v2853, 80
    %v2855 = vpop.permute.xlu0 %2854
    %v2856 = vsel %vm2224, %v2855, 0
    %2858 = vmatprep.subr.mxu0 0.0
    %2859 = vmatpush1.msra.mxu0 0.0
    %2860 = vmatprep.subr.mxu0 0.0
    %2861 = vmatpush1.msra.mxu0 0.0
    %2862 = vmatprep.subr.mxu0 0.0
    %2863 = vmatpush1.msra.mxu0 0.0
    %2864 = vmatprep.subr.mxu0 0.0
    %2865 = vmatpush1.msra.mxu0 0.0
    %2866 = vmatprep.subr.mxu0 0.0
    %2867 = vmatpush1.msra.mxu0 0.0
    %2868 = vmatprep.subr.mxu0 0.0
    %2869 = vmatpush1.msra.mxu0 0.0
    %2870 = vmatprep.subr.mxu0 0.0
    %2871 = vmatpush1.msra.mxu0 0.0
    %2872 = vmatprep.subr.mxu0 0.0
    %2873 = vmatpush1.msra.mxu0 0.0
    %2874 = vmatprep.subr.mxu0 0.0
    %2875 = vmatpush1.msra.mxu0 0.0
    %2876 = vmatprep.subr.mxu0 0.0
    %2877 = vmatpush1.msra.mxu0 0.0
    %2878 = vmatprep.subr.mxu0 0.0
    %2879 = vmatpush1.msra.mxu0 0.0
    %2880 = vmatprep.subr.mxu0 0.0
    %2881 = vmatpush1.msra.mxu0 0.0
    %2882 = vmatprep.subr.mxu0 0.0
    %2883 = vmatpush1.msra.mxu0 0.0
    %2884 = vmatprep.subr.mxu0 0.0
    %2885 = vmatpush1.msra.mxu0 0.0
    %2886 = vmatprep.subr.mxu0 0.0
    %2887 = vmatpush1.msra.mxu0 %v2223
    %2888 = vmatprep.subr.mxu0 0.0
    %2889 = vmatpush1.msra.mxu0 %v2222
    %2890 = vmatprep.subr.mxu0 0.0
    %2891 = vmatpush2.msra.mxu0 0.0
    %2892 = vmatprep.subr.mxu0 0.0
    %2893 = vmatpush2.msra.mxu0 0.0
    %2894 = vmatprep.subr.mxu0 0.0
    %2895 = vmatpush2.msra.mxu0 0.0
    %2896 = vmatprep.subr.mxu0 0.0
    %2897 = vmatpush2.msra.mxu0 0.0
    %2898 = vmatprep.subr.mxu0 0.0
    %2899 = vmatpush2.msra.mxu0 0.0
    %2900 = vmatprep.subr.mxu0 0.0
    %2901 = vmatpush2.msra.mxu0 0.0
    %2902 = vmatprep.subr.mxu0 0.0
    %2903 = vmatpush2.msra.mxu0 0.0
    %2904 = vmatprep.subr.mxu0 0.0
    %2905 = vmatpush2.msra.mxu0 0.0
    %2906 = vmatprep.subr.mxu0 0.0
    %2907 = vmatpush2.msra.mxu0 0.0
    %2908 = vmatprep.subr.mxu0 0.0
    %2909 = vmatpush2.msra.mxu0 0.0
    %2910 = vmatprep.subr.mxu0 0.0
    %2911 = vmatpush2.msra.mxu0 0.0
    %2912 = vmatprep.subr.mxu0 0.0
    %2913 = vmatpush2.msra.mxu0 0.0
    %2914 = vmatprep.subr.mxu0 0.0
    %2915 = vmatpush2.msra.mxu0 0.0
    %2916 = vmatprep.subr.mxu0 0.0
    %2917 = vmatpush2.msra.mxu0 0.0
    %2918 = vmatprep.subr.mxu0 0.0
    %2919 = vmatpush2.msra.mxu0 0.0
    %2920 = vmatprep.subr.mxu0 0.0
    %2921 = vmatpush2.msra.mxu0 0.0
    %2922 = vmatprep.mubr.f32.mxu0 0.0
    %2923 = vmatmul.mubr.f32.gmra.mxu0 %v2856
    %v2924 = vpop.f32.mrf.mxu0
    %v2925 = vadd.f32 0.0, %v2924
    %v2926 = vpop.f32.mrf.mxu0
    %2927 = vdwg.mxu0
    %v2929 = vrot.slane %v2925, 4
    %v2931 = vadd.f32 %v2219, %v2929
    %v2932 = vxor.u32 %v2931, 2147483648
    %v2933 = vmul.f32 %v2932, 1.442695
    %v2934 = vpow.pop %v2933
    %v2935 = vadd.f32 %v2934, 1.0
    %v2936 = vrcp.pop %v2935
    %v2937 = vmul.f32 1.0, %v2936
    %v2938 = vtanh.pop %v2931
    %v2940 = vrot.slane %v2845, 6
    %v2942 = vmul.f32 %v2937, %v2940
    %2944 = vrot.lane.b32.xlu0 %v2938, 96
    %v2945 = vpop.permute.xlu0 %2944
    %v2947 = vmul.f32 %v2937, %v2945
    %2949 = vrot.lane.b32.xlu0 %v2947, 16
    %v2950 = vpop.permute.xlu0 %2949
    %v2952 = vadd.f32 %v2942, %v2950
    %v2953 = vtanh.pop %v2952
    %2955 = vrot.lane.b32.xlu0 %v2953, 32
    %v2956 = vpop.permute.xlu0 %2955
    %v2958 = vmul.f32 %v2937, %v2956
    %v2960 = vrot.slane %v2958, 4
    %2961 = vrot.lane.b32.xlu0 %v2960, 80
    %v2962 = vpop.permute.xlu0 %2961
    %v2963 = vsel %vm2224, %v2962, 0
    %2965 = vmatprep.subr.mxu0 0.0
    %2966 = vmatpush1.msra.mxu0 0.0
    %2967 = vmatprep.subr.mxu0 0.0
    %2968 = vmatpush1.msra.mxu0 0.0
    %2969 = vmatprep.subr.mxu0 0.0
    %2970 = vmatpush1.msra.mxu0 0.0
    %2971 = vmatprep.subr.mxu0 0.0
    %2972 = vmatpush1.msra.mxu0 0.0
    %2973 = vmatprep.subr.mxu0 0.0
    %2974 = vmatpush1.msra.mxu0 0.0
    %2975 = vmatprep.subr.mxu0 0.0
    %2976 = vmatpush1.msra.mxu0 0.0
    %2977 = vmatprep.subr.mxu0 0.0
    %2978 = vmatpush1.msra.mxu0 0.0
    %2979 = vmatprep.subr.mxu0 0.0
    %2980 = vmatpush1.msra.mxu0 0.0
    %2981 = vmatprep.subr.mxu0 0.0
    %2982 = vmatpush1.msra.mxu0 0.0
    %2983 = vmatprep.subr.mxu0 0.0
    %2984 = vmatpush1.msra.mxu0 0.0
    %2985 = vmatprep.subr.mxu0 0.0
    %2986 = vmatpush1.msra.mxu0 0.0
    %2987 = vmatprep.subr.mxu0 0.0
    %2988 = vmatpush1.msra.mxu0 0.0
    %2989 = vmatprep.subr.mxu0 0.0
    %2990 = vmatpush1.msra.mxu0 0.0
    %2991 = vmatprep.subr.mxu0 0.0
    %2992 = vmatpush1.msra.mxu0 0.0
    %2993 = vmatprep.subr.mxu0 0.0
    %2994 = vmatpush1.msra.mxu0 %v2223
    %2995 = vmatprep.subr.mxu0 0.0
    %2996 = vmatpush1.msra.mxu0 %v2222
    %2997 = vmatprep.subr.mxu0 0.0
    %2998 = vmatpush2.msra.mxu0 0.0
    %2999 = vmatprep.subr.mxu0 0.0
    %3000 = vmatpush2.msra.mxu0 0.0
    %3001 = vmatprep.subr.mxu0 0.0
    %3002 = vmatpush2.msra.mxu0 0.0
    %3003 = vmatprep.subr.mxu0 0.0
    %3004 = vmatpush2.msra.mxu0 0.0
    %3005 = vmatprep.subr.mxu0 0.0
    %3006 = vmatpush2.msra.mxu0 0.0
    %3007 = vmatprep.subr.mxu0 0.0
    %3008 = vmatpush2.msra.mxu0 0.0
    %3009 = vmatprep.subr.mxu0 0.0
    %3010 = vmatpush2.msra.mxu0 0.0
    %3011 = vmatprep.subr.mxu0 0.0
    %3012 = vmatpush2.msra.mxu0 0.0
    %3013 = vmatprep.subr.mxu0 0.0
    %3014 = vmatpush2.msra.mxu0 0.0
    %3015 = vmatprep.subr.mxu0 0.0
    %3016 = vmatpush2.msra.mxu0 0.0
    %3017 = vmatprep.subr.mxu0 0.0
    %3018 = vmatpush2.msra.mxu0 0.0
    %3019 = vmatprep.subr.mxu0 0.0
    %3020 = vmatpush2.msra.mxu0 0.0
    %3021 = vmatprep.subr.mxu0 0.0
    %3022 = vmatpush2.msra.mxu0 0.0
    %3023 = vmatprep.subr.mxu0 0.0
    %3024 = vmatpush2.msra.mxu0 0.0
    %3025 = vmatprep.subr.mxu0 0.0
    %3026 = vmatpush2.msra.mxu0 0.0
    %3027 = vmatprep.subr.mxu0 0.0
    %3028 = vmatpush2.msra.mxu0 0.0
    %3029 = vmatprep.mubr.f32.mxu0 0.0
    %3030 = vmatmul.mubr.f32.gmra.mxu0 %v2963
    %v3031 = vpop.f32.mrf.mxu0
    %v3032 = vadd.f32 0.0, %v3031
    %v3033 = vpop.f32.mrf.mxu0
    %3034 = vdwg.mxu0
    %v3036 = vrot.slane %v3032, 2
    %v3038 = vadd.f32 %v2219, %v3036
    %v3039 = vxor.u32 %v3038, 2147483648
    %v3040 = vmul.f32 %v3039, 1.442695
    %v3041 = vpow.pop %v3040
    %v3042 = vadd.f32 %v3041, 1.0
    %v3043 = vrcp.pop %v3042
    %v3044 = vmul.f32 1.0, %v3043
    %v3045 = vtanh.pop %v3038
    %v3047 = vrot.slane %v2952, 6
    %v3049 = vmul.f32 %v3044, %v3047
    %3051 = vrot.lane.b32.xlu0 %v3045, 96
    %v3052 = vpop.permute.xlu0 %3051
    %v3054 = vmul.f32 %v3044, %v3052
    %3056 = vrot.lane.b32.xlu0 %v3054, 16
    %v3057 = vpop.permute.xlu0 %3056
    %v3059 = vadd.f32 %v3049, %v3057
    %v3060 = vtanh.pop %v3059
    %3062 = vrot.lane.b32.xlu0 %v3060, 32
    %v3063 = vpop.permute.xlu0 %3062
    %v3065 = vmul.f32 %v3044, %v3063
    %v3066 = vsel %vm161, %v2321, %v2427
    %v3067 = vsel %vm163, %v3066, %v2534
    %v3068 = vsel %vm165, %v3067, %v2641
    %v3069 = vsel %vm161, %v2745, %v2851
    %v3070 = vsel %vm163, %v3069, %v2958
    %v3071 = vsel %vm165, %v3070, %v3065
    %v3073 = vrot.slane %v3068, 1
    %v3075 = vrot.slane %v3068, 2
    %v3077 = vrot.slane %v3068, 3
    %v3079 = vrot.slane %v3068, 4
    %v3082 = vrot.slane %v3071, 5
    %v3084 = vrot.slane %v3071, 6
    %v3086 = vrot.slane %v3071, 7
    %vm3088 = vcmask 1040384
    %v3089 = vsel %vm3088, %v3073, %v3075
    %v3090 = vsel %vm161, %v3089, %v3077
    %vm3091 = vcmask 1042432
    %v3092 = vsel %vm3091, %v3090, %v3079
    %v3093 = vsel %vm163, %v3092, %v3082
    %vm3094 = vcmask 1044480
    %v3095 = vsel %vm3094, %v3093, %v3084
    %v3096 = vsel %vm165, %v3095, %v3086
    %vm3097 = vcmask 1046528
    %v3098 = vsel %vm3097, %v3096, %v3071
    %v3099 = vld [vmem:[%s10] sm:$0xff]
    %v3100 = vld [vmem:[%s10 + $0x8] sm:$0xff]
    %v3101 = vld [vmem:[#allocation2] sm:$0x1]
    %v3103 = vlaneseq
    %v3104 = vshrl.u32 %v3103, 7
    %v3105 = vsub.s32 0, %v3104
    %v3106 = vrot.slane %v3101, %v3105
    %3109 = vrot.lane.b32.xlu0 %v3098, 80
    %v3110 = vpop.permute.xlu0 %3109
    %v3111 = vsel %vm2224, %v3110, 0
    %3113 = vmatprep.subr.mxu0 0.0
    %3114 = vmatpush1.msra.mxu0 0.0
    %3115 = vmatprep.subr.mxu0 0.0
    %3116 = vmatpush1.msra.mxu0 0.0
    %3117 = vmatprep.subr.mxu0 0.0
    %3118 = vmatpush1.msra.mxu0 0.0
    %3119 = vmatprep.subr.mxu0 0.0
    %3120 = vmatpush1.msra.mxu0 0.0
    %3121 = vmatprep.subr.mxu0 0.0
    %3122 = vmatpush1.msra.mxu0 0.0
    %3123 = vmatprep.subr.mxu0 0.0
    %3124 = vmatpush1.msra.mxu0 0.0
    %3125 = vmatprep.subr.mxu0 0.0
    %3126 = vmatpush1.msra.mxu0 0.0
    %3127 = vmatprep.subr.mxu0 0.0
    %3128 = vmatpush1.msra.mxu0 0.0
    %3129 = vmatprep.subr.mxu0 0.0
    %3130 = vmatpush1.msra.mxu0 0.0
    %3131 = vmatprep.subr.mxu0 0.0
    %3132 = vmatpush1.msra.mxu0 0.0
    %3133 = vmatprep.subr.mxu0 0.0
    %3134 = vmatpush1.msra.mxu0 0.0
    %3135 = vmatprep.subr.mxu0 0.0
    %3136 = vmatpush1.msra.mxu0 0.0
    %3137 = vmatprep.subr.mxu0 0.0
    %3138 = vmatpush1.msra.mxu0 0.0
    %3139 = vmatprep.subr.mxu0 0.0
    %3140 = vmatpush1.msra.mxu0 0.0
    %3141 = vmatprep.subr.mxu0 0.0
    %3142 = vmatpush1.msra.mxu0 %v3100
    %3143 = vmatprep.subr.mxu0 0.0
    %3144 = vmatpush1.msra.mxu0 %v3099
    %3145 = vmatprep.subr.mxu0 0.0
    %3146 = vmatpush2.msra.mxu0 0.0
    %3147 = vmatprep.subr.mxu0 0.0
    %3148 = vmatpush2.msra.mxu0 0.0
    %3149 = vmatprep.subr.mxu0 0.0
    %3150 = vmatpush2.msra.mxu0 0.0
    %3151 = vmatprep.subr.mxu0 0.0
    %3152 = vmatpush2.msra.mxu0 0.0
    %3153 = vmatprep.subr.mxu0 0.0
    %3154 = vmatpush2.msra.mxu0 0.0
    %3155 = vmatprep.subr.mxu0 0.0
    %3156 = vmatpush2.msra.mxu0 0.0
    %3157 = vmatprep.subr.mxu0 0.0
    %3158 = vmatpush2.msra.mxu0 0.0
    %3159 = vmatprep.subr.mxu0 0.0
    %3160 = vmatpush2.msra.mxu0 0.0
    %3161 = vmatprep.subr.mxu0 0.0
    %3162 = vmatpush2.msra.mxu0 0.0
    %3163 = vmatprep.subr.mxu0 0.0
    %3164 = vmatpush2.msra.mxu0 0.0
    %3165 = vmatprep.subr.mxu0 0.0
    %3166 = vmatpush2.msra.mxu0 0.0
    %3167 = vmatprep.subr.mxu0 0.0
    %3168 = vmatpush2.msra.mxu0 0.0
    %3169 = vmatprep.subr.mxu0 0.0
    %3170 = vmatpush2.msra.mxu0 0.0
    %3171 = vmatprep.subr.mxu0 0.0
    %3172 = vmatpush2.msra.mxu0 0.0
    %3173 = vmatprep.subr.mxu0 0.0
    %3174 = vmatpush2.msra.mxu0 0.0
    %3175 = vmatprep.subr.mxu0 0.0
    %3176 = vmatpush2.msra.mxu0 0.0
    %3177 = vmatprep.mubr.f32.mxu0 0.0
    %3178 = vmatmul.mubr.f32.gmra.mxu0 %v3111
    %v3179 = vpop.f32.mrf.mxu0
    %v3180 = vadd.f32 %v3106, %v3179
    %v3181 = vpop.f32.mrf.mxu0
    %3182 = vdwg.mxu0
    %vm3183 = vcmask 7168
    %3184 = vst.msk [vmem:[%s12] sm:$0xff] %vm3183, %v3180
    // Predicated region
    $region74: #{param_lstm_forward.1} parent=1 // pred_check
      _
    $region75: #{param_lstm_forward.1} parent=1 // pred_check_branch
      %3186 = sbr.rel (0) target = $region77
    $region76: #{param_lstm_forward.1} parent=1 // pred_region
      _
    $region77: #{param_lstm_forward.1} parent=1 // pred_fallthru
      _
    // Predicated region
    $region78: #{param_lstm_forward.1} parent=1 // pred_check
      _
    $region79: #{param_lstm_forward.1} parent=1 // pred_check_branch
      %3188 = sbr.rel (0) target = $region81
    $region80: #{param_lstm_forward.1} parent=1 // pred_region
      _
    $region81: #{param_lstm_forward.1} parent=1 // pred_fallthru
      _
    %3189 = vsyncpa [#allocation4], 1
    %3190 = vsyncpa [#allocation6], 1
    %3191 = vsyncpa [#allocation9], 1
    %3192 = vsyncpa [#allocation12], 1

</llo_original>
